<compile_context>
chip_gen: v5e
topology: v5e:2x2
jax: 0.10.0
libtpu: 0.0.40
codegen_flags: <defaults>
</compile_context>

<pallas_src>
import functools

import jax
import jax.numpy as jnp
from jax import lax
from jax.experimental import pallas as pl
from jax.experimental.pallas import tpu as pltpu

K_PAD = 896        # 7 * 128  (784 padded up)
H1, H2, H3 = 1024, 512, 128
OUT_PAD = 128      # 10 padded up to a full lane tile
BN_EPS = 1e-5


def _round_up(x, m):
    return (x + m - 1) // m * m


# ---------------------------------------------------------------------------
# Pass 1: h1 = x @ w1 + b1  (per batch tile) + masked batch sum / sum-of-squares
# ---------------------------------------------------------------------------
def clasnet_stage1_kernel(n_ref, x_ref, w1_ref, b1_ref, h1_ref, stats_ref):
    i = pl.program_id(0)

    # bf16 x bf16 -> f32 accumulation on the MXU
    h = jnp.dot(x_ref[...], w1_ref[...],
                preferred_element_type=jnp.float32) + b1_ref[...]
    h1_ref[...] = h

    # mask rows beyond the true batch size (batch was zero-padded to the tile)
    tm = h.shape[0]
    row = i * tm + lax.broadcasted_iota(jnp.int32, h.shape, 0)
    hm = h * (row < n_ref[0]).astype(jnp.float32)

    part = jnp.concatenate(
        [jnp.sum(hm, axis=0, keepdims=True),
         jnp.sum(hm * hm, axis=0, keepdims=True)], axis=0)     # (2, 1024)

    @pl.when(i == 0)
    def _():
        stats_ref[...] = jnp.zeros_like(stats_ref)

    stats_ref[...] += part


# ---------------------------------------------------------------------------
# Pass 2: folded BN + LeakyReLU(0.2) + Linear/ReLU/Linear/ReLU/Linear
# ---------------------------------------------------------------------------
def clasnet_stage2_kernel(n_ref, h1_ref, stats_ref, gamma_ref, beta_ref,
                          w2_ref, b2_ref, w3_ref, b3_ref, w4_ref, b4_ref,
                          out_ref):
    inv_n = 1.0 / n_ref[0].astype(jnp.float32)
    stats = stats_ref[...]
    mean = stats[0:1, :] * inv_n
    # biased variance, E[h^2] - mean^2 (kept in f32; cancellation is benign for
    # post-Linear activations but must not be done in bf16)
    var = stats[1:2, :] * inv_n - mean * mean
    scale = gamma_ref[...] * lax.rsqrt(var + BN_EPS)            # (1, 1024)
    shift = beta_ref[...] - mean * scale                        # (1, 1024)

    # folded BN fused with LeakyReLU(0.2), then cast once for the MXU
    h = h1_ref[...] * scale + shift
    h = jnp.where(h > 0, h, 0.2 * h).astype(jnp.bfloat16)

    h = jnp.dot(h, w2_ref[...], preferred_element_type=jnp.float32) + b2_ref[...]
    h = jnp.maximum(h.astype(jnp.bfloat16), 0)                  # ReLU after cast

    h = jnp.dot(h, w3_ref[...], preferred_element_type=jnp.float32) + b3_ref[...]
    h = jnp.maximum(h.astype(jnp.bfloat16), 0)

    out = jnp.dot(h, w4_ref[...], preferred_element_type=jnp.float32) + b4_ref[...]
    out_ref[...] = out.astype(out_ref.dtype)


# ---------------------------------------------------------------------------
# Wrapper
# ---------------------------------------------------------------------------
@functools.partial(jax.jit, static_argnames=())
def clasnet_forward(x_nchw, params):
    """x_nchw: (B, 1, 28, 28) float32.  Returns (B, 10) f32 logits."""
    B = x_nchw.shape[0]
    x = x_nchw.reshape(B, 28 * 28)                 # same as torch .view(-1, 784)

    # batch tile: 256 rows (v6e/v7x MXU geometry); small batches -> single tile
    TM = 256 if B >= 256 else _round_up(B, 16)
    B_pad = _round_up(B, TM)
    n_tiles = B_pad // TM

    # zero-pad rows to B_pad, features 784 -> 896, and cast to bf16 (halves x DMA)
    x = jnp.pad(x, ((0, B_pad - B), (0, K_PAD - 28 * 28))).astype(jnp.bfloat16)
    n_arr = jnp.array([B], jnp.int32)              # true batch size (SMEM prefetch)

    # ---- pass 1 -----------------------------------------------------------
    flops1 = 2 * B_pad * K_PAD * H1
    bytes1 = (B_pad * K_PAD * 2 + K_PAD * H1 * 2 + H1 * 4
              + B_pad * H1 * 4 + 2 * H1 * 4)
    gs1 = pltpu.PrefetchScalarGridSpec(
        num_scalar_prefetch=1,
        grid=(n_tiles,),
        in_specs=[
            pl.BlockSpec((TM, K_PAD), lambda i, n: (i, 0)),    # x tile
            pl.BlockSpec((K_PAD, H1), lambda i, n: (0, 0)),    # w1 (resident)
            pl.BlockSpec((1, H1), lambda i, n: (0, 0)),        # b1 (resident)
        ],
        out_specs=[
            pl.BlockSpec((TM, H1), lambda i, n: (i, 0)),       # h1 tile
            pl.BlockSpec((2, H1), lambda i, n: (0, 0)),        # stats accumulator
        ],
    )
    h1, stats = pl.pallas_call(
        clasnet_stage1_kernel,
        out_shape=(jax.ShapeDtypeStruct((B_pad, H1), jnp.float32),
                   jax.ShapeDtypeStruct((2, H1), jnp.float32)),
        grid_spec=gs1,
        compiler_params=pltpu.CompilerParams(
            dimension_semantics=("arbitrary",)),               # stats accumulator
        cost_estimate=pl.CostEstimate(
            flops=flops1, bytes_accessed=bytes1, transcendentals=0),
    )(n_arr, x, params["w1"], params["b1"])

    # ---- pass 2 -----------------------------------------------------------
    flops2 = 2 * B_pad * (H1 * H2 + H2 * H3 + H3 * OUT_PAD)
    bytes2 = (B_pad * H1 * 4 + 2 * H1 * 4 + 2 * H1 * 4
              + (H1 * H2 + H2 * H3 + H3 * OUT_PAD) * 2
              + (H2 + H3 + OUT_PAD) * 4
              + B_pad * OUT_PAD * 4)
    gs2 = pltpu.PrefetchScalarGridSpec(
        num_scalar_prefetch=1,
        grid=(n_tiles,),
        in_specs=[
            pl.BlockSpec((TM, H1), lambda i, n: (i, 0)),       # h1 tile
            pl.BlockSpec((2, H1), lambda i, n: (0, 0)),        # stats (resident)
            pl.BlockSpec((1, H1), lambda i, n: (0, 0)),        # gamma
            pl.BlockSpec((1, H1), lambda i, n: (0, 0)),        # beta
            pl.BlockSpec((H1, H2), lambda i, n: (0, 0)),       # w2 (resident)
            pl.BlockSpec((1, H2), lambda i, n: (0, 0)),        # b2
            pl.BlockSpec((H2, H3), lambda i, n: (0, 0)),       # w3 (resident)
            pl.BlockSpec((1, H3), lambda i, n: (0, 0)),        # b3
            pl.BlockSpec((H3, OUT_PAD), lambda i, n: (0, 0)),  # w4 (resident)
            pl.BlockSpec((1, OUT_PAD), lambda i, n: (0, 0)),   # b4
        ],
        out_specs=pl.BlockSpec((TM, OUT_PAD), lambda i, n: (i, 0)),
    )
    out_padded = pl.pallas_call(
        clasnet_stage2_kernel,
        out_shape=jax.ShapeDtypeStruct((B_pad, OUT_PAD), jnp.float32),
        grid_spec=gs2,
        compiler_params=pltpu.CompilerParams(
            dimension_semantics=("parallel",)),                # both v7x TCs
        cost_estimate=pl.CostEstimate(
            flops=flops2, bytes_accessed=bytes2,
            transcendentals=H1 * n_tiles),
    )(n_arr, h1, stats, params["gamma"], params["beta"],
      params["w2"], params["b2"], params["w3"], params["b3"],
      params["w4"], params["b4"])

    return out_padded[:B, :10]


# ---------------------------------------------------------------------------
# Parameter init (PyTorch default Linear init; weights pre-transposed (in, out),
# cast to bf16, padded for lane alignment)
# ---------------------------------------------------------------------------
def init_params(key):
    dims = [(784, H1), (H1, H2), (H2, H3), (H3, 10)]
    keys = jax.random.split(key, len(dims))
    params = {}
    for idx, ((din, dout), k) in enumerate(zip(dims, keys), start=1):
        bound = 1.0 / jnp.sqrt(jnp.float32(din))
        kw, kb = jax.random.split(k)
        w = jax.random.uniform(kw, (din, dout), jnp.float32,
                               minval=-bound, maxval=bound)
        b = jax.random.uniform(kb, (1, dout), jnp.float32,
                               minval=-bound, maxval=bound)
        params[f"w{idx}"] = w.astype(jnp.bfloat16)
        params[f"b{idx}"] = b
    # pad w1 K-dim 784 -> 896 with zero rows (matches zero-padded x columns)
    params["w1"] = jnp.pad(params["w1"], ((0, K_PAD - 784), (0, 0)))
    # pad last layer 10 -> 128 output columns with zeros (lane-dense store)
    params["w4"] = jnp.pad(params["w4"], ((0, 0), (0, OUT_PAD - 10)))
    params["b4"] = jnp.pad(params["b4"], ((0, 0), (0, OUT_PAD - 10)))
    # BatchNorm1d(1024) affine params (default init: gamma=1, beta=0), f32
    params["gamma"] = jnp.ones((1, H1), jnp.float32)
    params["beta"] = jnp.zeros((1, H1), jnp.float32)
    return params


if __name__ == "__main__":
    key = jax.random.PRNGKey(0)
    k_x, k_p = jax.random.split(key)

    B = 8  # small demo batch
    x = jax.random.normal(k_x, (B, 1, 28, 28), jnp.float32)
    params = init_params(k_p)

    logits = clasnet_forward(x, params)
    jax.block_until_ready(logits)
    assert logits.shape == (B, 10) and logits.dtype == jnp.float32
    assert bool(jnp.all(jnp.isfinite(logits)))
    print("KERNEL_OK")
</pallas_src>

<mosaic_0001>
module attributes {stable_mosaic.version = 11 : i64} {
  func.func @clasnet_stage1_kernel(%arg0: i32, %arg1: memref<1xi32, #tpu.memory_space<smem>>, %arg2: memref<16x896xbf16, #tpu.memory_space<vmem>>, %arg3: memref<896x1024xbf16, #tpu.memory_space<vmem>>, %arg4: memref<1x1024xf32, #tpu.memory_space<vmem>>, %arg5: memref<16x1024xf32, #tpu.memory_space<vmem>>, %arg6: memref<2x1024xf32, #tpu.memory_space<vmem>>) attributes {dimension_semantics = [#tpu.dimension_semantics<arbitrary>], iteration_bounds = array<i64: 1>, scalar_prefetch = 1 : i64, scratch_operands = 0 : i64, tpu.core_type = #tpu.core_type<tc>, window_params = [{transform_indices = @transform_0, window_bounds = array<i64: 16, 896>}, {pipeline_mode = #tpu.pipeline_mode<synchronous>, transform_indices = @transform_1, window_bounds = array<i64: 896, 1024>}, {pipeline_mode = #tpu.pipeline_mode<synchronous>, transform_indices = @transform_2, window_bounds = array<i64: 1, 1024>}, {transform_indices = @transform_3, window_bounds = array<i64: 16, 1024>}, {pipeline_mode = #tpu.pipeline_mode<synchronous>, transform_indices = @transform_4, window_bounds = array<i64: 2, 1024>}]} {
    %c0 = arith.constant 0 : index
    %c0_0 = arith.constant 0 : index
    %0 = vector.load %arg2[%c0, %c0_0] : memref<16x896xbf16, #tpu.memory_space<vmem>>, vector<16x896xbf16>
    %c0_1 = arith.constant 0 : index
    %c0_2 = arith.constant 0 : index
    %1 = vector.load %arg3[%c0_1, %c0_2] : memref<896x1024xbf16, #tpu.memory_space<vmem>>, vector<896x1024xbf16>
    %cst = arith.constant dense<0.000000e+00> : vector<16x1024xf32>
    %2 = tpu.matmul %0, %1, %cst {dimension_numbers = #tpu.dot_dimension_numbers<[1], [0], [0], [1], [0, 0, 1, 1], [], []>} : vector<16x896xbf16>, vector<896x1024xbf16>, vector<16x1024xf32> -> vector<16x1024xf32>
    %c0_3 = arith.constant 0 : index
    %c0_4 = arith.constant 0 : index
    %3 = vector.load %arg4[%c0_3, %c0_4] : memref<1x1024xf32, #tpu.memory_space<vmem>>, vector<1x1024xf32>
    %4 = vector.broadcast %3 : vector<1x1024xf32> to vector<16x1024xf32>
    %5 = arith.addf %2, %4 : vector<16x1024xf32>
    %c0_5 = arith.constant 0 : index
    %c0_6 = arith.constant 0 : index
    %6 = vector.load %arg5[%c0_5, %c0_6] : memref<16x1024xf32, #tpu.memory_space<vmem>>, vector<16x1024xf32>
    tpu.vector_store %arg5[%c0_5, %c0_6], %5 {strides = array<i32>} : memref<16x1024xf32, #tpu.memory_space<vmem>>, vector<16x1024xf32>,
    %c16_i32 = arith.constant 16 : i32
    %7 = arith.muli %arg0, %c16_i32 : i32
    %8 = tpu.iota {dimensions = array<i32: 0>} : vector<16x1024xi32>
    %9 = vector.broadcast %7 : i32 to vector<16x1024xi32>
    %10 = arith.addi %9, %8 : vector<16x1024xi32>
    %c0_7 = arith.constant 0 : index
    %11 = memref.load %arg1[%c0_7] : memref<1xi32, #tpu.memory_space<smem>>
    %12 = vector.broadcast %11 : i32 to vector<16x1024xi32>
    %13 = arith.cmpi slt, %10, %12 : vector<16x1024xi32>
    %14 = arith.extui %13 : vector<16x1024xi1> to vector<16x1024xi32>
    %15 = arith.sitofp %14 : vector<16x1024xi32> to vector<16x1024xf32>
    %16 = arith.mulf %5, %15 : vector<16x1024xf32>
    %cst_8 = arith.constant dense<0.000000e+00> : vector<1024xf32>
    %17 = vector.multi_reduction <add>, %16, %cst_8 [0] : vector<16x1024xf32> to vector<1024xf32>
    %18 = vector.shape_cast %17 : vector<1024xf32> to vector<1x1024xf32>
    %19 = arith.mulf %16, %16 : vector<16x1024xf32>
    %cst_9 = arith.constant dense<0.000000e+00> : vector<1024xf32>
    %20 = vector.multi_reduction <add>, %19, %cst_9 [0] : vector<16x1024xf32> to vector<1024xf32>
    %21 = vector.shape_cast %20 : vector<1024xf32> to vector<1x1024xf32>
    %22 = tpu.concatenate %18, %21 in 0 : vector<1x1024xf32>, vector<1x1024xf32> -> vector<2x1024xf32>
    %c0_i32 = arith.constant 0 : i32
    %23 = arith.cmpi eq, %arg0, %c0_i32 : i32
    %24 = arith.extui %23 : i1 to i32
    %c0_i32_10 = arith.constant 0 : i32
    %25 = arith.cmpi ne, %24, %c0_i32_10 : i32
    scf.if %25 {
      %cst_15 = arith.constant 0.000000e+00 : f32
      %29 = vector.broadcast %cst_15 : f32 to vector<2x1024xf32>
      %c0_16 = arith.constant 0 : index
      %c0_17 = arith.constant 0 : index
      %30 = vector.load %arg6[%c0_16, %c0_17] : memref<2x1024xf32, #tpu.memory_space<vmem>>, vector<2x1024xf32>
      tpu.vector_store %arg6[%c0_16, %c0_17], %29 {strides = array<i32>} : memref<2x1024xf32, #tpu.memory_space<vmem>>, vector<2x1024xf32>,
    } else {
    }
    %c0_11 = arith.constant 0 : index
    %c0_12 = arith.constant 0 : index
    %26 = vector.load %arg6[%c0_11, %c0_12] : memref<2x1024xf32, #tpu.memory_space<vmem>>, vector<2x1024xf32>
    %27 = arith.addf %26, %22 : vector<2x1024xf32>
    %c0_13 = arith.constant 0 : index
    %c0_14 = arith.constant 0 : index
    %28 = vector.load %arg6[%c0_13, %c0_14] : memref<2x1024xf32, #tpu.memory_space<vmem>>, vector<2x1024xf32>
    tpu.vector_store %arg6[%c0_13, %c0_14], %27 {strides = array<i32>} : memref<2x1024xf32, #tpu.memory_space<vmem>>, vector<2x1024xf32>,
    return
  }
  func.func @transform_0(%arg0: i32, %arg1: memref<1xi32, #tpu.memory_space<smem>>) -> (i32, i32) {
    %c0_i32 = arith.constant 0 : i32
    %c0_i32_0 = arith.constant 0 : i32
    return %arg0, %c0_i32 : i32, i32
  }
  func.func @transform_1(%arg0: i32, %arg1: memref<1xi32, #tpu.memory_space<smem>>) -> (i32, i32) {
    %c0_i32 = arith.constant 0 : i32
    %c0_i32_0 = arith.constant 0 : i32
    %c0_i32_1 = arith.constant 0 : i32
    return %c0_i32, %c0_i32_0 : i32, i32
  }
  func.func @transform_2(%arg0: i32, %arg1: memref<1xi32, #tpu.memory_space<smem>>) -> (i32, i32) {
    %c0_i32 = arith.constant 0 : i32
    %c0_i32_0 = arith.constant 0 : i32
    %c0_i32_1 = arith.constant 0 : i32
    return %c0_i32, %c0_i32_0 : i32, i32
  }
  func.func @transform_3(%arg0: i32, %arg1: memref<1xi32, #tpu.memory_space<smem>>) -> (i32, i32) {
    %c0_i32 = arith.constant 0 : i32
    %c0_i32_0 = arith.constant 0 : i32
    return %arg0, %c0_i32 : i32, i32
  }
  func.func @transform_4(%arg0: i32, %arg1: memref<1xi32, #tpu.memory_space<smem>>) -> (i32, i32) {
    %c0_i32 = arith.constant 0 : i32
    %c0_i32_0 = arith.constant 0 : i32
    %c0_i32_1 = arith.constant 0 : i32
    return %c0_i32, %c0_i32_0 : i32, i32
  }
}

module attributes {stable_mosaic.version = 11 : i64} {
  func.func @clasnet_stage2_kernel(%arg0: i32, %arg1: memref<1xi32, #tpu.memory_space<smem>>, %arg2: memref<16x1024xf32, #tpu.memory_space<vmem>>, %arg3: memref<2x1024xf32, #tpu.memory_space<vmem>>, %arg4: memref<1x1024xf32, #tpu.memory_space<vmem>>, %arg5: memref<1x1024xf32, #tpu.memory_space<vmem>>, %arg6: memref<1024x512xbf16, #tpu.memory_space<vmem>>, %arg7: memref<1x512xf32, #tpu.memory_space<vmem>>, %arg8: memref<512x128xbf16, #tpu.memory_space<vmem>>, %arg9: memref<1x128xf32, #tpu.memory_space<vmem>>, %arg10: memref<128x128xbf16, #tpu.memory_space<vmem>>, %arg11: memref<1x128xf32, #tpu.memory_space<vmem>>, %arg12: memref<16x128xf32, #tpu.memory_space<vmem>>) attributes {dimension_semantics = [#tpu.dimension_semantics<parallel>], iteration_bounds = array<i64: 1>, scalar_prefetch = 1 : i64, scratch_operands = 0 : i64, tpu.core_type = #tpu.core_type<tc>, window_params = [{transform_indices = @transform_0, window_bounds = array<i64: 16, 1024>}, {pipeline_mode = #tpu.pipeline_mode<synchronous>, transform_indices = @transform_1, window_bounds = array<i64: 2, 1024>}, {pipeline_mode = #tpu.pipeline_mode<synchronous>, transform_indices = @transform_2, window_bounds = array<i64: 1, 1024>}, {pipeline_mode = #tpu.pipeline_mode<synchronous>, transform_indices = @transform_3, window_bounds = array<i64: 1, 1024>}, {pipeline_mode = #tpu.pipeline_mode<synchronous>, transform_indices = @transform_4, window_bounds = array<i64: 1024, 512>}, {pipeline_mode = #tpu.pipeline_mode<synchronous>, transform_indices = @transform_5, window_bounds = array<i64: 1, 512>}, {pipeline_mode = #tpu.pipeline_mode<synchronous>, transform_indices = @transform_6, window_bounds = array<i64: 512, 128>}, {pipeline_mode = #tpu.pipeline_mode<synchronous>, transform_indices = @transform_7, window_bounds = array<i64: 1, 128>}, {pipeline_mode = #tpu.pipeline_mode<synchronous>, transform_indices = @transform_8, window_bounds = array<i64: 128, 128>}, {pipeline_mode = #tpu.pipeline_mode<synchronous>, transform_indices = @transform_9, window_bounds = array<i64: 1, 128>}, {transform_indices = @transform_10, window_bounds = array<i64: 16, 128>}]} {
    %c0 = arith.constant 0 : index
    %0 = memref.load %arg1[%c0] : memref<1xi32, #tpu.memory_space<smem>>
    %1 = arith.sitofp %0 : i32 to f32
    %cst = arith.constant 1.000000e+00 : f32
    %2 = arith.divf %cst, %1 : f32
    %c0_0 = arith.constant 0 : index
    %c0_1 = arith.constant 0 : index
    %3 = vector.load %arg3[%c0_0, %c0_1] : memref<2x1024xf32, #tpu.memory_space<vmem>>, vector<2x1024xf32>
    %4 = vector.extract_strided_slice %3 {offsets = [0, 0], sizes = [1, 1024], strides = [1, 1]} : vector<2x1024xf32> to vector<1x1024xf32>
    %5 = vector.broadcast %2 : f32 to vector<1x1024xf32>
    %6 = arith.mulf %4, %5 : vector<1x1024xf32>
    %7 = vector.extract_strided_slice %3 {offsets = [1, 0], sizes = [1, 1024], strides = [1, 1]} : vector<2x1024xf32> to vector<1x1024xf32>
    %8 = vector.broadcast %2 : f32 to vector<1x1024xf32>
    %9 = arith.mulf %7, %8 : vector<1x1024xf32>
    %10 = arith.mulf %6, %6 : vector<1x1024xf32>
    %11 = arith.subf %9, %10 : vector<1x1024xf32>
    %c0_2 = arith.constant 0 : index
    %c0_3 = arith.constant 0 : index
    %12 = vector.load %arg4[%c0_2, %c0_3] : memref<1x1024xf32, #tpu.memory_space<vmem>>, vector<1x1024xf32>
    %cst_4 = arith.constant 9.99999974E-6 : f32
    %13 = vector.broadcast %cst_4 : f32 to vector<1x1024xf32>
    %14 = arith.addf %11, %13 : vector<1x1024xf32>
    %15 = math.rsqrt %14 : vector<1x1024xf32>
    %16 = arith.mulf %12, %15 : vector<1x1024xf32>
    %c0_5 = arith.constant 0 : index
    %c0_6 = arith.constant 0 : index
    %17 = vector.load %arg5[%c0_5, %c0_6] : memref<1x1024xf32, #tpu.memory_space<vmem>>, vector<1x1024xf32>
    %18 = arith.mulf %6, %16 : vector<1x1024xf32>
    %19 = arith.subf %17, %18 : vector<1x1024xf32>
    %c0_7 = arith.constant 0 : index
    %c0_8 = arith.constant 0 : index
    %20 = vector.load %arg2[%c0_7, %c0_8] : memref<16x1024xf32, #tpu.memory_space<vmem>>, vector<16x1024xf32>
    %21 = vector.broadcast %16 : vector<1x1024xf32> to vector<16x1024xf32>
    %22 = arith.mulf %20, %21 : vector<16x1024xf32>
    %23 = vector.broadcast %19 : vector<1x1024xf32> to vector<16x1024xf32>
    %24 = arith.addf %22, %23 : vector<16x1024xf32>
    %cst_9 = arith.constant 0.000000e+00 : f32
    %25 = vector.broadcast %cst_9 : f32 to vector<16x1024xf32>
    %26 = arith.cmpf ogt, %24, %25 : vector<16x1024xf32>
    %cst_10 = arith.constant 2.000000e-01 : f32
    %27 = vector.broadcast %cst_10 : f32 to vector<16x1024xf32>
    %28 = arith.mulf %27, %24 : vector<16x1024xf32>
    %29 = arith.select %26, %24, %28 : vector<16x1024xi1>, vector<16x1024xf32>
    %30 = arith.truncf %29 : vector<16x1024xf32> to vector<16x1024xbf16>
    %c0_11 = arith.constant 0 : index
    %c0_12 = arith.constant 0 : index
    %31 = vector.load %arg6[%c0_11, %c0_12] : memref<1024x512xbf16, #tpu.memory_space<vmem>>, vector<1024x512xbf16>
    %cst_13 = arith.constant dense<0.000000e+00> : vector<16x512xf32>
    %32 = tpu.matmul %30, %31, %cst_13 {dimension_numbers = #tpu.dot_dimension_numbers<[1], [0], [0], [1], [0, 0, 1, 1], [], []>} : vector<16x1024xbf16>, vector<1024x512xbf16>, vector<16x512xf32> -> vector<16x512xf32>
    %c0_14 = arith.constant 0 : index
    %c0_15 = arith.constant 0 : index
    %33 = vector.load %arg7[%c0_14, %c0_15] : memref<1x512xf32, #tpu.memory_space<vmem>>, vector<1x512xf32>
    %34 = vector.broadcast %33 : vector<1x512xf32> to vector<16x512xf32>
    %35 = arith.addf %32, %34 : vector<16x512xf32>
    %36 = arith.truncf %35 : vector<16x512xf32> to vector<16x512xbf16>
    %cst_16 = arith.constant 0.000000e+00 : bf16
    %37 = vector.broadcast %cst_16 : bf16 to vector<16x512xbf16>
    %38 = arith.maximumf %36, %37 : vector<16x512xbf16>
    %c0_17 = arith.constant 0 : index
    %c0_18 = arith.constant 0 : index
    %39 = vector.load %arg8[%c0_17, %c0_18] : memref<512x128xbf16, #tpu.memory_space<vmem>>, vector<512x128xbf16>
    %cst_19 = arith.constant dense<0.000000e+00> : vector<16x128xf32>
    %40 = tpu.matmul %38, %39, %cst_19 {dimension_numbers = #tpu.dot_dimension_numbers<[1], [0], [0], [1], [0, 0, 1, 1], [], []>} : vector<16x512xbf16>, vector<512x128xbf16>, vector<16x128xf32> -> vector<16x128xf32>
    %c0_20 = arith.constant 0 : index
    %c0_21 = arith.constant 0 : index
    %41 = vector.load %arg9[%c0_20, %c0_21] : memref<1x128xf32, #tpu.memory_space<vmem>>, vector<1x128xf32>
    %42 = vector.broadcast %41 : vector<1x128xf32> to vector<16x128xf32>
    %43 = arith.addf %40, %42 : vector<16x128xf32>
    %44 = arith.truncf %43 : vector<16x128xf32> to vector<16x128xbf16>
    %cst_22 = arith.constant 0.000000e+00 : bf16
    %45 = vector.broadcast %cst_22 : bf16 to vector<16x128xbf16>
    %46 = arith.maximumf %44, %45 : vector<16x128xbf16>
    %c0_23 = arith.constant 0 : index
    %c0_24 = arith.constant 0 : index
    %47 = vector.load %arg10[%c0_23, %c0_24] : memref<128x128xbf16, #tpu.memory_space<vmem>>, vector<128x128xbf16>
    %cst_25 = arith.constant dense<0.000000e+00> : vector<16x128xf32>
    %48 = tpu.matmul %46, %47, %cst_25 {dimension_numbers = #tpu.dot_dimension_numbers<[1], [0], [0], [1], [0, 0, 1, 1], [], []>} : vector<16x128xbf16>, vector<128x128xbf16>, vector<16x128xf32> -> vector<16x128xf32>
    %c0_26 = arith.constant 0 : index
    %c0_27 = arith.constant 0 : index
    %49 = vector.load %arg11[%c0_26, %c0_27] : memref<1x128xf32, #tpu.memory_space<vmem>>, vector<1x128xf32>
    %50 = vector.broadcast %49 : vector<1x128xf32> to vector<16x128xf32>
    %51 = arith.addf %48, %50 : vector<16x128xf32>
    %c0_28 = arith.constant 0 : index
    %c0_29 = arith.constant 0 : index
    %52 = vector.load %arg12[%c0_28, %c0_29] : memref<16x128xf32, #tpu.memory_space<vmem>>, vector<16x128xf32>
    tpu.vector_store %arg12[%c0_28, %c0_29], %51 {strides = array<i32>} : memref<16x128xf32, #tpu.memory_space<vmem>>, vector<16x128xf32>,
    return
  }
  func.func @transform_0(%arg0: i32, %arg1: memref<1xi32, #tpu.memory_space<smem>>) -> (i32, i32) {
    %c0_i32 = arith.constant 0 : i32
    %c0_i32_0 = arith.constant 0 : i32
    return %arg0, %c0_i32 : i32, i32
  }
  func.func @transform_1(%arg0: i32, %arg1: memref<1xi32, #tpu.memory_space<smem>>) -> (i32, i32) {
    %c0_i32 = arith.constant 0 : i32
    %c0_i32_0 = arith.constant 0 : i32
    %c0_i32_1 = arith.constant 0 : i32
    return %c0_i32, %c0_i32_0 : i32, i32
  }
  func.func @transform_2(%arg0: i32, %arg1: memref<1xi32, #tpu.memory_space<smem>>) -> (i32, i32) {
    %c0_i32 = arith.constant 0 : i32
    %c0_i32_0 = arith.constant 0 : i32
    %c0_i32_1 = arith.constant 0 : i32
    return %c0_i32, %c0_i32_0 : i32, i32
  }
  func.func @transform_3(%arg0: i32, %arg1: memref<1xi32, #tpu.memory_space<smem>>) -> (i32, i32) {
    %c0_i32 = arith.constant 0 : i32
    %c0_i32_0 = arith.constant 0 : i32
    %c0_i32_1 = arith.constant 0 : i32
    return %c0_i32, %c0_i32_0 : i32, i32
  }
  func.func @transform_4(%arg0: i32, %arg1: memref<1xi32, #tpu.memory_space<smem>>) -> (i32, i32) {
    %c0_i32 = arith.constant 0 : i32
    %c0_i32_0 = arith.constant 0 : i32
    %c0_i32_1 = arith.constant 0 : i32
    return %c0_i32, %c0_i32_0 : i32, i32
  }
  func.func @transform_5(%arg0: i32, %arg1: memref<1xi32, #tpu.memory_space<smem>>) -> (i32, i32) {
    %c0_i32 = arith.constant 0 : i32
    %c0_i32_0 = arith.constant 0 : i32
    %c0_i32_1 = arith.constant 0 : i32
    return %c0_i32, %c0_i32_0 : i32, i32
  }
  func.func @transform_6(%arg0: i32, %arg1: memref<1xi32, #tpu.memory_space<smem>>) -> (i32, i32) {
    %c0_i32 = arith.constant 0 : i32
    %c0_i32_0 = arith.constant 0 : i32
    %c0_i32_1 = arith.constant 0 : i32
    return %c0_i32, %c0_i32_0 : i32, i32
  }
  func.func @transform_7(%arg0: i32, %arg1: memref<1xi32, #tpu.memory_space<smem>>) -> (i32, i32) {
    %c0_i32 = arith.constant 0 : i32
    %c0_i32_0 = arith.constant 0 : i32
    %c0_i32_1 = arith.constant 0 : i32
    return %c0_i32, %c0_i32_0 : i32, i32
  }
  func.func @transform_8(%arg0: i32, %arg1: memref<1xi32, #tpu.memory_space<smem>>) -> (i32, i32) {
    %c0_i32 = arith.constant 0 : i32
    %c0_i32_0 = arith.constant 0 : i32
    %c0_i32_1 = arith.constant 0 : i32
    return %c0_i32, %c0_i32_0 : i32, i32
  }
  func.func @transform_9(%arg0: i32, %arg1: memref<1xi32, #tpu.memory_space<smem>>) -> (i32, i32) {
    %c0_i32 = arith.constant 0 : i32
    %c0_i32_0 = arith.constant 0 : i32
    %c0_i32_1 = arith.constant 0 : i32
    return %c0_i32, %c0_i32_0 : i32, i32
  }
  func.func @transform_10(%arg0: i32, %arg1: memref<1xi32, #tpu.memory_space<smem>>) -> (i32, i32) {
    %c0_i32 = arith.constant 0 : i32
    %c0_i32_0 = arith.constant 0 : i32
    return %arg0, %c0_i32 : i32, i32
  }
}

</mosaic_0001>

<llo_original>
// kernel: clasnet_forward.3
$region0: #{clasnet_forward.3}
  #allocation0 [shape = 'u32[]', space=smem, size = 0x4, offset = 0x4, fixed_abs, tag = 'smem constant byte address 0x4 - core index']
  #allocation1 [shape = 'u32[72,128]{1,0:T(1,128)}', space=vmem, size = 0x9000, scoped, tag = 'internal scratch']
  #allocation2 [shape = 's32[1]{0}', space=sflag, size = 0x4, scoped, tag = 'scoped memory for clasnet_forward.3']
  #allocation3 [shape = 's32[1]{0:T(128)S(6)}', space=smem, size = 0x200, scoped, tag = 'prefetched SMEM operand 0']
  %s0 = inlined_call_operand.<no memory space> [shape: s32[1], index: 0, kind: input, shape index: {}]
  %s1 = inlined_call_operand.vmem [shape: f32[16,1024], index: 1, kind: input, shape index: {}]
  %s2 = inlined_call_operand.vmem [shape: f32[2,1024], index: 2, kind: input, shape index: {}]
  %s3 = inlined_call_operand.vmem [shape: f32[1,1024], index: 3, kind: input, shape index: {}]
  %s4 = inlined_call_operand.vmem [shape: f32[1,1024], index: 4, kind: input, shape index: {}]
  %s5 = inlined_call_operand.vmem [shape: bf16[1024,512], index: 5, kind: input, shape index: {}]
  %s6 = inlined_call_operand.vmem [shape: f32[1,512], index: 6, kind: input, shape index: {}]
  %s7 = inlined_call_operand.vmem [shape: bf16[512,128], index: 7, kind: input, shape index: {}]
  %s8 = inlined_call_operand.vmem [shape: f32[1,128], index: 8, kind: input, shape index: {}]
  %s9 = inlined_call_operand.vmem [shape: bf16[128,128], index: 9, kind: input, shape index: {}]
  %s10 = inlined_call_operand.vmem [shape: f32[1,128], index: 10, kind: input, shape index: {}]
  %s11 = inlined_call_operand.vmem [shape: f32[16,128], index: 11, kind: output, shape index: {}]
  %s12 = sld [smem:[#allocation0]]
  $region50: #{clasnet_forward.3} parent=0
    _
  %s14 = ssub.s32 1, %s12
  %s15 = scalar_select 0, %s14, %s12
  %16 = sst [smem:[#allocation3]] %s0
  // Predicated region
  $region2: #{clasnet_forward.3} parent=0 // pred_check
    _
  $region3: #{clasnet_forward.3} parent=0 // pred_check_branch
    %18 = sbr.rel (0) target = $region5
  $region4: #{clasnet_forward.3} parent=0 // pred_region
    _
  $region5: #{clasnet_forward.3} parent=0 // pred_fallthru
    _
  // Predicated region
  $region6: #{clasnet_forward.3} parent=0 // pred_check
    _
  $region7: #{clasnet_forward.3} parent=0 // pred_check_branch
    %20 = sbr.rel (0) target = $region9
  $region8: #{clasnet_forward.3} parent=0 // pred_region
    _
  $region9: #{clasnet_forward.3} parent=0 // pred_fallthru
    _
  // Predicated region
  $region10: #{clasnet_forward.3} parent=0 // pred_check
    _
  $region11: #{clasnet_forward.3} parent=0 // pred_check_branch
    %22 = sbr.rel (0) target = $region13
  $region12: #{clasnet_forward.3} parent=0 // pred_region
    _
  $region13: #{clasnet_forward.3} parent=0 // pred_fallthru
    _
  // Predicated region
  $region14: #{clasnet_forward.3} parent=0 // pred_check
    _
  $region15: #{clasnet_forward.3} parent=0 // pred_check_branch
    %24 = sbr.rel (0) target = $region17
  $region16: #{clasnet_forward.3} parent=0 // pred_region
    _
  $region17: #{clasnet_forward.3} parent=0 // pred_fallthru
    _
  // Predicated region
  $region18: #{clasnet_forward.3} parent=0 // pred_check
    _
  $region19: #{clasnet_forward.3} parent=0 // pred_check_branch
    %26 = sbr.rel (0) target = $region21
  $region20: #{clasnet_forward.3} parent=0 // pred_region
    _
  $region21: #{clasnet_forward.3} parent=0 // pred_fallthru
    _
  // Predicated region
  $region22: #{clasnet_forward.3} parent=0 // pred_check
    _
  $region23: #{clasnet_forward.3} parent=0 // pred_check_branch
    %28 = sbr.rel (0) target = $region25
  $region24: #{clasnet_forward.3} parent=0 // pred_region
    _
  $region25: #{clasnet_forward.3} parent=0 // pred_fallthru
    _
  // Predicated region
  $region26: #{clasnet_forward.3} parent=0 // pred_check
    _
  $region27: #{clasnet_forward.3} parent=0 // pred_check_branch
    %30 = sbr.rel (0) target = $region29
  $region28: #{clasnet_forward.3} parent=0 // pred_region
    _
  $region29: #{clasnet_forward.3} parent=0 // pred_fallthru
    _
  // Predicated region
  $region30: #{clasnet_forward.3} parent=0 // pred_check
    _
  $region31: #{clasnet_forward.3} parent=0 // pred_check_branch
    %32 = sbr.rel (0) target = $region33
  $region32: #{clasnet_forward.3} parent=0 // pred_region
    _
  $region33: #{clasnet_forward.3} parent=0 // pred_fallthru
    _
  // Predicated region
  $region34: #{clasnet_forward.3} parent=0 // pred_check
    _
  $region35: #{clasnet_forward.3} parent=0 // pred_check_branch
    %34 = sbr.rel (0) target = $region37
  $region36: #{clasnet_forward.3} parent=0 // pred_region
    _
  $region37: #{clasnet_forward.3} parent=0 // pred_fallthru
    _
  // Predicated region
  $region38: #{clasnet_forward.3} parent=0 // pred_check
    _
  $region39: #{clasnet_forward.3} parent=0 // pred_check_branch
    %36 = sbr.rel (0) target = $region41
  $region40: #{clasnet_forward.3} parent=0 // pred_region
    _
  $region41: #{clasnet_forward.3} parent=0 // pred_fallthru
    _
  %s37 = sld [smem:[#allocation3]]
  %s38 = scvt.s32.f32 %s37
  %v39 = vstv %s38
  %v40 = vrcp.pop %v39
  %v41 = vmul.f32 %v39, %v40
  %v42 = vsub.f32 1.0, %v41
  %v43 = vmul.f32 %v40, %v42
  %v44 = vadd.f32 %v40, %v43
  %vm45 = vweird.f32 %v39
  %vm46 = vweird.f32 %v40
  %vm47 = vmor %vm45, %vm46
  %v48 = vsel %vm47, %v40, %v44
  %v49 = vand.u32 2147483647, %v39
  %vm50 = vcmp.eq.f32.partialorder %v49, 8.507059e+37
  %v51 = vand.u32 %v39, 2147483648
  %v52 = vor.u32 1.1754944e-38, %v51
  %v53 = vsel %vm50, %v52, %v48
  %s54 = vtos %v53
  %v55 = vld [vmem:[%s2] sm:$0xff]
  %v56 = vld [vmem:[%s2 + $0x8] sm:$0xff]
  %v57 = vstv %s54
  %v58 = vmul.f32 %v55, %v57
  %v59 = vmul.f32 %v56, %v57
  %v60 = vmul.f32 %v58, %v58
  %v61 = vmul.f32 %v59, %v59
  %v64 = vrot.slane %v60, 7
  %v65 = vrot.slane %v61, 7
  %v68 = vsub.f32 %v58, %v64
  %v69 = vsub.f32 %v59, %v65
  %v70 = vld [vmem:[%s3] sm:$0xff]
  %v71 = vadd.f32 %v68, 1e-05
  %v72 = vadd.f32 %v69, 1e-05
  %v73 = vrsqrt.pop %v71
  %v74 = vmul.f32 %v73, %v71
  %v75 = vmul.f32 %v74, %v73
  %v76 = vmul.f32 0.5, %v75
  %v77 = vsub.f32 1.5, %v76
  %v78 = vmul.f32 %v73, %v77
  %vm79 = vweird.f32 %v71
  %vm80 = vweird.f32 %v73
  %vm81 = vmor %vm79, %vm80
  %v82 = vsel %vm81, %v73, %v78
  %v83 = vrsqrt.pop %v72
  %v84 = vmul.f32 %v83, %v72
  %v85 = vmul.f32 %v84, %v83
  %v86 = vmul.f32 0.5, %v85
  %v87 = vsub.f32 1.5, %v86
  %v88 = vmul.f32 %v83, %v87
  %vm89 = vweird.f32 %v72
  %vm90 = vweird.f32 %v83
  %vm91 = vmor %vm89, %vm90
  %v92 = vsel %vm91, %v83, %v88
  %95 = vst [vmem:[#allocation1] sm:$0xff] %v82
  %96 = vst [vmem:[#allocation1 + $0x8] sm:$0xff] %v92
  %s97 = scalar_lea.vmem [#allocation1], 1
  %v98 = vld [vmem:[%s97] ss:$2 sm:$0xff]
  %v100 = vmul.f32 %v70, %v98
  %v101 = vld [vmem:[%s4] sm:$0xff]
  %v104 = vunpack.c.l.s4 857870592
  %v105 = vunpack.c.0.s8 %v104
  %v106 = vperm.slane %v100, %v105
  %v108 = vunpack.c.l.s4 2003195204
  %v109 = vunpack.c.0.s8 %v108
  %v110 = vperm.slane %v100, %v109
  %v113 = vmul.f32 %v58, %v106
  %v114 = vmul.f32 %v59, %v110
  %v117 = vrot.slane %v113, 1
  %v118 = vrot.slane %v113, 2
  %v119 = vrot.slane %v113, 3
  %v120 = vrot.slane %v114, 4
  %v121 = vrot.slane %v114, 5
  %v122 = vrot.slane %v114, 6
  %v123 = vrot.slane %v114, 7
  %vm124 = vcmask 1040384
  %v125 = vsel %vm124, %v113, %v117
  %vm126 = vcmask 1042434
  %v127 = vsel %vm126, %v118, %v119
  %vm128 = vcmask 1041408
  %v129 = vsel %vm128, %v125, %v127
  %vm130 = vcmask 1044484
  %v131 = vsel %vm130, %v120, %v121
  %vm132 = vcmask 1046534
  %v133 = vsel %vm132, %v122, %v123
  %vm134 = vcmask 1045508
  %v135 = vsel %vm134, %v131, %v133
  %vm136 = vcmask 1043456
  %v137 = vsel %vm136, %v129, %v135
  %v139 = vsub.f32 %v101, %v137
  %v140 = vld [vmem:[%s1] sm:$0xff]
  %v141 = vld [vmem:[%s1 + $0x8] sm:$0xff]
  %v142 = vld [vmem:[%s1 + $0x10] sm:$0xff]
  %v143 = vld [vmem:[%s1 + $0x18] sm:$0xff]
  %v144 = vld [vmem:[%s1 + $0x20] sm:$0xff]
  %v145 = vld [vmem:[%s1 + $0x28] sm:$0xff]
  %v146 = vld [vmem:[%s1 + $0x30] sm:$0xff]
  %v147 = vld [vmem:[%s1 + $0x38] sm:$0xff]
  %v148 = vld [vmem:[%s1 + $0x40] sm:$0xff]
  %v149 = vld [vmem:[%s1 + $0x48] sm:$0xff]
  %v150 = vld [vmem:[%s1 + $0x50] sm:$0xff]
  %v151 = vld [vmem:[%s1 + $0x58] sm:$0xff]
  %v152 = vld [vmem:[%s1 + $0x60] sm:$0xff]
  %v153 = vld [vmem:[%s1 + $0x68] sm:$0xff]
  %v154 = vld [vmem:[%s1 + $0x70] sm:$0xff]
  %v155 = vld [vmem:[%s1 + $0x78] sm:$0xff]
  %v156 = vperm.slane %v100, 0
  %v157 = vperm.slane %v100, 1
  %v158 = vperm.slane %v100, 2
  %v159 = vperm.slane %v100, 3
  %v160 = vperm.slane %v100, 4
  %v161 = vperm.slane %v100, 5
  %v162 = vperm.slane %v100, 6
  %v163 = vperm.slane %v100, 7
  %v172 = vmul.f32 %v140, %v156
  %v173 = vmul.f32 %v141, %v157
  %v174 = vmul.f32 %v142, %v158
  %v175 = vmul.f32 %v143, %v159
  %v176 = vmul.f32 %v144, %v160
  %v177 = vmul.f32 %v145, %v161
  %v178 = vmul.f32 %v146, %v162
  %v179 = vmul.f32 %v147, %v163
  %v180 = vmul.f32 %v148, %v156
  %v181 = vmul.f32 %v149, %v157
  %v182 = vmul.f32 %v150, %v158
  %v183 = vmul.f32 %v151, %v159
  %v184 = vmul.f32 %v152, %v160
  %v185 = vmul.f32 %v153, %v161
  %v186 = vmul.f32 %v154, %v162
  %v187 = vmul.f32 %v155, %v163
  %v189 = vperm.slane %v139, 0
  %v190 = vperm.slane %v139, 1
  %v191 = vperm.slane %v139, 2
  %v192 = vperm.slane %v139, 3
  %v193 = vperm.slane %v139, 4
  %v194 = vperm.slane %v139, 5
  %v195 = vperm.slane %v139, 6
  %v196 = vperm.slane %v139, 7
  %v205 = vadd.f32 %v172, %v189
  %v206 = vadd.f32 %v173, %v190
  %v207 = vadd.f32 %v174, %v191
  %v208 = vadd.f32 %v175, %v192
  %v209 = vadd.f32 %v176, %v193
  %v210 = vadd.f32 %v177, %v194
  %v211 = vadd.f32 %v178, %v195
  %v212 = vadd.f32 %v179, %v196
  %v213 = vadd.f32 %v180, %v189
  %v214 = vadd.f32 %v181, %v190
  %v215 = vadd.f32 %v182, %v191
  %v216 = vadd.f32 %v183, %v192
  %v217 = vadd.f32 %v184, %v193
  %v218 = vadd.f32 %v185, %v194
  %v219 = vadd.f32 %v186, %v195
  %v220 = vadd.f32 %v187, %v196
  %vm221 = vcmp.gt.f32.partialorder %v205, 0.0
  %vm222 = vcmp.gt.f32.partialorder %v206, 0.0
  %vm223 = vcmp.gt.f32.partialorder %v207, 0.0
  %vm224 = vcmp.gt.f32.partialorder %v208, 0.0
  %vm225 = vcmp.gt.f32.partialorder %v209, 0.0
  %vm226 = vcmp.gt.f32.partialorder %v210, 0.0
  %vm227 = vcmp.gt.f32.partialorder %v211, 0.0
  %vm228 = vcmp.gt.f32.partialorder %v212, 0.0
  %vm229 = vcmp.gt.f32.partialorder %v213, 0.0
  %vm230 = vcmp.gt.f32.partialorder %v214, 0.0
  %vm231 = vcmp.gt.f32.partialorder %v215, 0.0
  %vm232 = vcmp.gt.f32.partialorder %v216, 0.0
  %vm233 = vcmp.gt.f32.partialorder %v217, 0.0
  %vm234 = vcmp.gt.f32.partialorder %v218, 0.0
  %vm235 = vcmp.gt.f32.partialorder %v219, 0.0
  %vm236 = vcmp.gt.f32.partialorder %v220, 0.0
  %v237 = vmul.f32 %v205, 0.2
  %v238 = vmul.f32 %v206, 0.2
  %v239 = vmul.f32 %v207, 0.2
  %v240 = vmul.f32 %v208, 0.2
  %v241 = vmul.f32 %v209, 0.2
  %v242 = vmul.f32 %v210, 0.2
  %v243 = vmul.f32 %v211, 0.2
  %v244 = vmul.f32 %v212, 0.2
  %v245 = vmul.f32 %v213, 0.2
  %v246 = vmul.f32 %v214, 0.2
  %v247 = vmul.f32 %v215, 0.2
  %v248 = vmul.f32 %v216, 0.2
  %v249 = vmul.f32 %v217, 0.2
  %v250 = vmul.f32 %v218, 0.2
  %v251 = vmul.f32 %v219, 0.2
  %v252 = vmul.f32 %v220, 0.2
  %v253 = vsel %vm221, %v205, %v237
  %v254 = vsel %vm222, %v206, %v238
  %v255 = vsel %vm223, %v207, %v239
  %v256 = vsel %vm224, %v208, %v240
  %v257 = vsel %vm225, %v209, %v241
  %v258 = vsel %vm226, %v210, %v242
  %v259 = vsel %vm227, %v211, %v243
  %v260 = vsel %vm228, %v212, %v244
  %v261 = vsel %vm229, %v213, %v245
  %v262 = vsel %vm230, %v214, %v246
  %v263 = vsel %vm231, %v215, %v247
  %v264 = vsel %vm232, %v216, %v248
  %v265 = vsel %vm233, %v217, %v249
  %v266 = vsel %vm234, %v218, %v250
  %v267 = vsel %vm235, %v219, %v251
  %v268 = vsel %vm236, %v220, %v252
  %v269 = vpack.c.bf16 %v261, %v253
  %v270 = vpack.c.bf16 %v262, %v254
  %v271 = vpack.c.bf16 %v263, %v255
  %v272 = vpack.c.bf16 %v264, %v256
  %v273 = vpack.c.bf16 %v265, %v257
  %v274 = vpack.c.bf16 %v266, %v258
  %v275 = vpack.c.bf16 %v267, %v259
  %v276 = vpack.c.bf16 %v268, %v260
  %v277 = vld [vmem:[%s5] sm:$0xff]
  %v278 = vld [vmem:[%s5 + $0x8] sm:$0xff]
  %v279 = vld [vmem:[%s5 + $0x10] sm:$0xff]
  %v280 = vld [vmem:[%s5 + $0x18] sm:$0xff]
  %v281 = vld [vmem:[%s5 + $0x20] sm:$0xff]
  %v282 = vld [vmem:[%s5 + $0x28] sm:$0xff]
  %v283 = vld [vmem:[%s5 + $0x30] sm:$0xff]
  %v284 = vld [vmem:[%s5 + $0x38] sm:$0xff]
  %v285 = vld [vmem:[%s5 + $0x40] sm:$0xff]
  %v286 = vld [vmem:[%s5 + $0x48] sm:$0xff]
  %v287 = vld [vmem:[%s5 + $0x50] sm:$0xff]
  %v288 = vld [vmem:[%s5 + $0x58] sm:$0xff]
  %v289 = vld [vmem:[%s5 + $0x60] sm:$0xff]
  %v290 = vld [vmem:[%s5 + $0x68] sm:$0xff]
  %v291 = vld [vmem:[%s5 + $0x70] sm:$0xff]
  %v292 = vld [vmem:[%s5 + $0x78] sm:$0xff]
  %v293 = vld [vmem:[%s5 + $0x80] sm:$0xff]
  %v294 = vld [vmem:[%s5 + $0x88] sm:$0xff]
  %v295 = vld [vmem:[%s5 + $0x90] sm:$0xff]
  %v296 = vld [vmem:[%s5 + $0x98] sm:$0xff]
  %v297 = vld [vmem:[%s5 + $0xa0] sm:$0xff]
  %v298 = vld [vmem:[%s5 + $0xa8] sm:$0xff]
  %v299 = vld [vmem:[%s5 + $0xb0] sm:$0xff]
  %v300 = vld [vmem:[%s5 + $0xb8] sm:$0xff]
  %v301 = vld [vmem:[%s5 + $0xc0] sm:$0xff]
  %v302 = vld [vmem:[%s5 + $0xc8] sm:$0xff]
  %v303 = vld [vmem:[%s5 + $0xd0] sm:$0xff]
  %v304 = vld [vmem:[%s5 + $0xd8] sm:$0xff]
  %v305 = vld [vmem:[%s5 + $0xe0] sm:$0xff]
  %v306 = vld [vmem:[%s5 + $0xe8] sm:$0xff]
  %v307 = vld [vmem:[%s5 + $0xf0] sm:$0xff]
  %v308 = vld [vmem:[%s5 + $0xf8] sm:$0xff]
  %v309 = vld [vmem:[%s5 + $0x100] sm:$0xff]
  %v310 = vld [vmem:[%s5 + $0x108] sm:$0xff]
  %v311 = vld [vmem:[%s5 + $0x110] sm:$0xff]
  %v312 = vld [vmem:[%s5 + $0x118] sm:$0xff]
  %v313 = vld [vmem:[%s5 + $0x120] sm:$0xff]
  %v314 = vld [vmem:[%s5 + $0x128] sm:$0xff]
  %v315 = vld [vmem:[%s5 + $0x130] sm:$0xff]
  %v316 = vld [vmem:[%s5 + $0x138] sm:$0xff]
  %v317 = vld [vmem:[%s5 + $0x140] sm:$0xff]
  %v318 = vld [vmem:[%s5 + $0x148] sm:$0xff]
  %v319 = vld [vmem:[%s5 + $0x150] sm:$0xff]
  %v320 = vld [vmem:[%s5 + $0x158] sm:$0xff]
  %v321 = vld [vmem:[%s5 + $0x160] sm:$0xff]
  %v322 = vld [vmem:[%s5 + $0x168] sm:$0xff]
  %v323 = vld [vmem:[%s5 + $0x170] sm:$0xff]
  %v324 = vld [vmem:[%s5 + $0x178] sm:$0xff]
  %v325 = vld [vmem:[%s5 + $0x180] sm:$0xff]
  %v326 = vld [vmem:[%s5 + $0x188] sm:$0xff]
  %v327 = vld [vmem:[%s5 + $0x190] sm:$0xff]
  %v328 = vld [vmem:[%s5 + $0x198] sm:$0xff]
  %v329 = vld [vmem:[%s5 + $0x1a0] sm:$0xff]
  %v330 = vld [vmem:[%s5 + $0x1a8] sm:$0xff]
  %v331 = vld [vmem:[%s5 + $0x1b0] sm:$0xff]
  %v332 = vld [vmem:[%s5 + $0x1b8] sm:$0xff]
  %v333 = vld [vmem:[%s5 + $0x1c0] sm:$0xff]
  %v334 = vld [vmem:[%s5 + $0x1c8] sm:$0xff]
  %v335 = vld [vmem:[%s5 + $0x1d0] sm:$0xff]
  %v336 = vld [vmem:[%s5 + $0x1d8] sm:$0xff]
  %v337 = vld [vmem:[%s5 + $0x1e0] sm:$0xff]
  %v338 = vld [vmem:[%s5 + $0x1e8] sm:$0xff]
  %v339 = vld [vmem:[%s5 + $0x1f0] sm:$0xff]
  %v340 = vld [vmem:[%s5 + $0x1f8] sm:$0xff]
  %v341 = vld [vmem:[%s5 + $0x200] sm:$0xff]
  %v342 = vld [vmem:[%s5 + $0x208] sm:$0xff]
  %v343 = vld [vmem:[%s5 + $0x210] sm:$0xff]
  %v344 = vld [vmem:[%s5 + $0x218] sm:$0xff]
  %v345 = vld [vmem:[%s5 + $0x220] sm:$0xff]
  %v346 = vld [vmem:[%s5 + $0x228] sm:$0xff]
  %v347 = vld [vmem:[%s5 + $0x230] sm:$0xff]
  %v348 = vld [vmem:[%s5 + $0x238] sm:$0xff]
  %v349 = vld [vmem:[%s5 + $0x240] sm:$0xff]
  %v350 = vld [vmem:[%s5 + $0x248] sm:$0xff]
  %v351 = vld [vmem:[%s5 + $0x250] sm:$0xff]
  %v352 = vld [vmem:[%s5 + $0x258] sm:$0xff]
  %v353 = vld [vmem:[%s5 + $0x260] sm:$0xff]
  %v354 = vld [vmem:[%s5 + $0x268] sm:$0xff]
  %v355 = vld [vmem:[%s5 + $0x270] sm:$0xff]
  %v356 = vld [vmem:[%s5 + $0x278] sm:$0xff]
  %v357 = vld [vmem:[%s5 + $0x280] sm:$0xff]
  %v358 = vld [vmem:[%s5 + $0x288] sm:$0xff]
  %v359 = vld [vmem:[%s5 + $0x290] sm:$0xff]
  %v360 = vld [vmem:[%s5 + $0x298] sm:$0xff]
  %v361 = vld [vmem:[%s5 + $0x2a0] sm:$0xff]
  %v362 = vld [vmem:[%s5 + $0x2a8] sm:$0xff]
  %v363 = vld [vmem:[%s5 + $0x2b0] sm:$0xff]
  %v364 = vld [vmem:[%s5 + $0x2b8] sm:$0xff]
  %v365 = vld [vmem:[%s5 + $0x2c0] sm:$0xff]
  %v366 = vld [vmem:[%s5 + $0x2c8] sm:$0xff]
  %v367 = vld [vmem:[%s5 + $0x2d0] sm:$0xff]
  %v368 = vld [vmem:[%s5 + $0x2d8] sm:$0xff]
  %v369 = vld [vmem:[%s5 + $0x2e0] sm:$0xff]
  %v370 = vld [vmem:[%s5 + $0x2e8] sm:$0xff]
  %v371 = vld [vmem:[%s5 + $0x2f0] sm:$0xff]
  %v372 = vld [vmem:[%s5 + $0x2f8] sm:$0xff]
  %v373 = vld [vmem:[%s5 + $0x300] sm:$0xff]
  %v374 = vld [vmem:[%s5 + $0x308] sm:$0xff]
  %v375 = vld [vmem:[%s5 + $0x310] sm:$0xff]
  %v376 = vld [vmem:[%s5 + $0x318] sm:$0xff]
  %v377 = vld [vmem:[%s5 + $0x320] sm:$0xff]
  %v378 = vld [vmem:[%s5 + $0x328] sm:$0xff]
  %v379 = vld [vmem:[%s5 + $0x330] sm:$0xff]
  %v380 = vld [vmem:[%s5 + $0x338] sm:$0xff]
  %v381 = vld [vmem:[%s5 + $0x340] sm:$0xff]
  %v382 = vld [vmem:[%s5 + $0x348] sm:$0xff]
  %v383 = vld [vmem:[%s5 + $0x350] sm:$0xff]
  %v384 = vld [vmem:[%s5 + $0x358] sm:$0xff]
  %v385 = vld [vmem:[%s5 + $0x360] sm:$0xff]
  %v386 = vld [vmem:[%s5 + $0x368] sm:$0xff]
  %v387 = vld [vmem:[%s5 + $0x370] sm:$0xff]
  %v388 = vld [vmem:[%s5 + $0x378] sm:$0xff]
  %v389 = vld [vmem:[%s5 + $0x380] sm:$0xff]
  %v390 = vld [vmem:[%s5 + $0x388] sm:$0xff]
  %v391 = vld [vmem:[%s5 + $0x390] sm:$0xff]
  %v392 = vld [vmem:[%s5 + $0x398] sm:$0xff]
  %v393 = vld [vmem:[%s5 + $0x3a0] sm:$0xff]
  %v394 = vld [vmem:[%s5 + $0x3a8] sm:$0xff]
  %v395 = vld [vmem:[%s5 + $0x3b0] sm:$0xff]
  %v396 = vld [vmem:[%s5 + $0x3b8] sm:$0xff]
  %v397 = vld [vmem:[%s5 + $0x3c0] sm:$0xff]
  %v398 = vld [vmem:[%s5 + $0x3c8] sm:$0xff]
  %v399 = vld [vmem:[%s5 + $0x3d0] sm:$0xff]
  %v400 = vld [vmem:[%s5 + $0x3d8] sm:$0xff]
  %v401 = vld [vmem:[%s5 + $0x3e0] sm:$0xff]
  %v402 = vld [vmem:[%s5 + $0x3e8] sm:$0xff]
  %v403 = vld [vmem:[%s5 + $0x3f0] sm:$0xff]
  %v404 = vld [vmem:[%s5 + $0x3f8] sm:$0xff]
  %v405 = vld [vmem:[%s5 + $0x400] sm:$0xff]
  %v406 = vld [vmem:[%s5 + $0x408] sm:$0xff]
  %v407 = vld [vmem:[%s5 + $0x410] sm:$0xff]
  %v408 = vld [vmem:[%s5 + $0x418] sm:$0xff]
  %v409 = vld [vmem:[%s5 + $0x420] sm:$0xff]
  %v410 = vld [vmem:[%s5 + $0x428] sm:$0xff]
  %v411 = vld [vmem:[%s5 + $0x430] sm:$0xff]
  %v412 = vld [vmem:[%s5 + $0x438] sm:$0xff]
  %v413 = vld [vmem:[%s5 + $0x440] sm:$0xff]
  %v414 = vld [vmem:[%s5 + $0x448] sm:$0xff]
  %v415 = vld [vmem:[%s5 + $0x450] sm:$0xff]
  %v416 = vld [vmem:[%s5 + $0x458] sm:$0xff]
  %v417 = vld [vmem:[%s5 + $0x460] sm:$0xff]
  %v418 = vld [vmem:[%s5 + $0x468] sm:$0xff]
  %v419 = vld [vmem:[%s5 + $0x470] sm:$0xff]
  %v420 = vld [vmem:[%s5 + $0x478] sm:$0xff]
  %v421 = vld [vmem:[%s5 + $0x480] sm:$0xff]
  %v422 = vld [vmem:[%s5 + $0x488] sm:$0xff]
  %v423 = vld [vmem:[%s5 + $0x490] sm:$0xff]
  %v424 = vld [vmem:[%s5 + $0x498] sm:$0xff]
  %v425 = vld [vmem:[%s5 + $0x4a0] sm:$0xff]
  %v426 = vld [vmem:[%s5 + $0x4a8] sm:$0xff]
  %v427 = vld [vmem:[%s5 + $0x4b0] sm:$0xff]
  %v428 = vld [vmem:[%s5 + $0x4b8] sm:$0xff]
  %v429 = vld [vmem:[%s5 + $0x4c0] sm:$0xff]
  %v430 = vld [vmem:[%s5 + $0x4c8] sm:$0xff]
  %v431 = vld [vmem:[%s5 + $0x4d0] sm:$0xff]
  %v432 = vld [vmem:[%s5 + $0x4d8] sm:$0xff]
  %v433 = vld [vmem:[%s5 + $0x4e0] sm:$0xff]
  %v434 = vld [vmem:[%s5 + $0x4e8] sm:$0xff]
  %v435 = vld [vmem:[%s5 + $0x4f0] sm:$0xff]
  %v436 = vld [vmem:[%s5 + $0x4f8] sm:$0xff]
  %v437 = vld [vmem:[%s5 + $0x500] sm:$0xff]
  %v438 = vld [vmem:[%s5 + $0x508] sm:$0xff]
  %v439 = vld [vmem:[%s5 + $0x510] sm:$0xff]
  %v440 = vld [vmem:[%s5 + $0x518] sm:$0xff]
  %v441 = vld [vmem:[%s5 + $0x520] sm:$0xff]
  %v442 = vld [vmem:[%s5 + $0x528] sm:$0xff]
  %v443 = vld [vmem:[%s5 + $0x530] sm:$0xff]
  %v444 = vld [vmem:[%s5 + $0x538] sm:$0xff]
  %v445 = vld [vmem:[%s5 + $0x540] sm:$0xff]
  %v446 = vld [vmem:[%s5 + $0x548] sm:$0xff]
  %v447 = vld [vmem:[%s5 + $0x550] sm:$0xff]
  %v448 = vld [vmem:[%s5 + $0x558] sm:$0xff]
  %v449 = vld [vmem:[%s5 + $0x560] sm:$0xff]
  %v450 = vld [vmem:[%s5 + $0x568] sm:$0xff]
  %v451 = vld [vmem:[%s5 + $0x570] sm:$0xff]
  %v452 = vld [vmem:[%s5 + $0x578] sm:$0xff]
  %v453 = vld [vmem:[%s5 + $0x580] sm:$0xff]
  %v454 = vld [vmem:[%s5 + $0x588] sm:$0xff]
  %v455 = vld [vmem:[%s5 + $0x590] sm:$0xff]
  %v456 = vld [vmem:[%s5 + $0x598] sm:$0xff]
  %v457 = vld [vmem:[%s5 + $0x5a0] sm:$0xff]
  %v458 = vld [vmem:[%s5 + $0x5a8] sm:$0xff]
  %v459 = vld [vmem:[%s5 + $0x5b0] sm:$0xff]
  %v460 = vld [vmem:[%s5 + $0x5b8] sm:$0xff]
  %v461 = vld [vmem:[%s5 + $0x5c0] sm:$0xff]
  %v462 = vld [vmem:[%s5 + $0x5c8] sm:$0xff]
  %v463 = vld [vmem:[%s5 + $0x5d0] sm:$0xff]
  %v464 = vld [vmem:[%s5 + $0x5d8] sm:$0xff]
  %v465 = vld [vmem:[%s5 + $0x5e0] sm:$0xff]
  %v466 = vld [vmem:[%s5 + $0x5e8] sm:$0xff]
  %v467 = vld [vmem:[%s5 + $0x5f0] sm:$0xff]
  %v468 = vld [vmem:[%s5 + $0x5f8] sm:$0xff]
  %v469 = vld [vmem:[%s5 + $0x600] sm:$0xff]
  %v470 = vld [vmem:[%s5 + $0x608] sm:$0xff]
  %v471 = vld [vmem:[%s5 + $0x610] sm:$0xff]
  %v472 = vld [vmem:[%s5 + $0x618] sm:$0xff]
  %v473 = vld [vmem:[%s5 + $0x620] sm:$0xff]
  %v474 = vld [vmem:[%s5 + $0x628] sm:$0xff]
  %v475 = vld [vmem:[%s5 + $0x630] sm:$0xff]
  %v476 = vld [vmem:[%s5 + $0x638] sm:$0xff]
  %v477 = vld [vmem:[%s5 + $0x640] sm:$0xff]
  %v478 = vld [vmem:[%s5 + $0x648] sm:$0xff]
  %v479 = vld [vmem:[%s5 + $0x650] sm:$0xff]
  %v480 = vld [vmem:[%s5 + $0x658] sm:$0xff]
  %v481 = vld [vmem:[%s5 + $0x660] sm:$0xff]
  %v482 = vld [vmem:[%s5 + $0x668] sm:$0xff]
  %v483 = vld [vmem:[%s5 + $0x670] sm:$0xff]
  %v484 = vld [vmem:[%s5 + $0x678] sm:$0xff]
  %v485 = vld [vmem:[%s5 + $0x680] sm:$0xff]
  %v486 = vld [vmem:[%s5 + $0x688] sm:$0xff]
  %v487 = vld [vmem:[%s5 + $0x690] sm:$0xff]
  %v488 = vld [vmem:[%s5 + $0x698] sm:$0xff]
  %v489 = vld [vmem:[%s5 + $0x6a0] sm:$0xff]
  %v490 = vld [vmem:[%s5 + $0x6a8] sm:$0xff]
  %v491 = vld [vmem:[%s5 + $0x6b0] sm:$0xff]
  %v492 = vld [vmem:[%s5 + $0x6b8] sm:$0xff]
  %v493 = vld [vmem:[%s5 + $0x6c0] sm:$0xff]
  %v494 = vld [vmem:[%s5 + $0x6c8] sm:$0xff]
  %v495 = vld [vmem:[%s5 + $0x6d0] sm:$0xff]
  %v496 = vld [vmem:[%s5 + $0x6d8] sm:$0xff]
  %v497 = vld [vmem:[%s5 + $0x6e0] sm:$0xff]
  %v498 = vld [vmem:[%s5 + $0x6e8] sm:$0xff]
  %v499 = vld [vmem:[%s5 + $0x6f0] sm:$0xff]
  %v500 = vld [vmem:[%s5 + $0x6f8] sm:$0xff]
  %v501 = vld [vmem:[%s5 + $0x700] sm:$0xff]
  %v502 = vld [vmem:[%s5 + $0x708] sm:$0xff]
  %v503 = vld [vmem:[%s5 + $0x710] sm:$0xff]
  %v504 = vld [vmem:[%s5 + $0x718] sm:$0xff]
  %v505 = vld [vmem:[%s5 + $0x720] sm:$0xff]
  %v506 = vld [vmem:[%s5 + $0x728] sm:$0xff]
  %v507 = vld [vmem:[%s5 + $0x730] sm:$0xff]
  %v508 = vld [vmem:[%s5 + $0x738] sm:$0xff]
  %v509 = vld [vmem:[%s5 + $0x740] sm:$0xff]
  %v510 = vld [vmem:[%s5 + $0x748] sm:$0xff]
  %v511 = vld [vmem:[%s5 + $0x750] sm:$0xff]
  %v512 = vld [vmem:[%s5 + $0x758] sm:$0xff]
  %v513 = vld [vmem:[%s5 + $0x760] sm:$0xff]
  %v514 = vld [vmem:[%s5 + $0x768] sm:$0xff]
  %v515 = vld [vmem:[%s5 + $0x770] sm:$0xff]
  %v516 = vld [vmem:[%s5 + $0x778] sm:$0xff]
  %v517 = vld [vmem:[%s5 + $0x780] sm:$0xff]
  %v518 = vld [vmem:[%s5 + $0x788] sm:$0xff]
  %v519 = vld [vmem:[%s5 + $0x790] sm:$0xff]
  %v520 = vld [vmem:[%s5 + $0x798] sm:$0xff]
  %v521 = vld [vmem:[%s5 + $0x7a0] sm:$0xff]
  %v522 = vld [vmem:[%s5 + $0x7a8] sm:$0xff]
  %v523 = vld [vmem:[%s5 + $0x7b0] sm:$0xff]
  %v524 = vld [vmem:[%s5 + $0x7b8] sm:$0xff]
  %v525 = vld [vmem:[%s5 + $0x7c0] sm:$0xff]
  %v526 = vld [vmem:[%s5 + $0x7c8] sm:$0xff]
  %v527 = vld [vmem:[%s5 + $0x7d0] sm:$0xff]
  %v528 = vld [vmem:[%s5 + $0x7d8] sm:$0xff]
  %v529 = vld [vmem:[%s5 + $0x7e0] sm:$0xff]
  %v530 = vld [vmem:[%s5 + $0x7e8] sm:$0xff]
  %v531 = vld [vmem:[%s5 + $0x7f0] sm:$0xff]
  %v532 = vld [vmem:[%s5 + $0x7f8] sm:$0xff]
  %v533 = vld [vmem:[%s6] sm:$0xf]
  %v535 = vperm.slane %v533, 0
  %v536 = vperm.slane %v533, 1
  %v537 = vperm.slane %v533, 2
  %v538 = vperm.slane %v533, 3
  %v799 = vunpack.c.l.b16 %v277
  %v800 = vunpack.c.h.b16 %v277
  %v801 = vunpack.c.l.b16 %v278
  %v802 = vunpack.c.h.b16 %v278
  %v803 = vunpack.c.l.b16 %v279
  %v804 = vunpack.c.h.b16 %v279
  %v805 = vunpack.c.l.b16 %v280
  %v806 = vunpack.c.h.b16 %v280
  %v807 = vunpack.c.l.b16 %v281
  %v808 = vunpack.c.h.b16 %v281
  %v809 = vunpack.c.l.b16 %v282
  %v810 = vunpack.c.h.b16 %v282
  %v811 = vunpack.c.l.b16 %v283
  %v812 = vunpack.c.h.b16 %v283
  %v813 = vunpack.c.l.b16 %v284
  %v814 = vunpack.c.h.b16 %v284
  %v815 = vunpack.c.l.b16 %v285
  %v816 = vunpack.c.h.b16 %v285
  %v817 = vunpack.c.l.b16 %v286
  %v818 = vunpack.c.h.b16 %v286
  %v819 = vunpack.c.l.b16 %v287
  %v820 = vunpack.c.h.b16 %v287
  %v821 = vunpack.c.l.b16 %v288
  %v822 = vunpack.c.h.b16 %v288
  %v823 = vunpack.c.l.b16 %v289
  %v824 = vunpack.c.h.b16 %v289
  %v825 = vunpack.c.l.b16 %v290
  %v826 = vunpack.c.h.b16 %v290
  %v827 = vunpack.c.l.b16 %v291
  %v828 = vunpack.c.h.b16 %v291
  %v829 = vunpack.c.l.b16 %v292
  %v830 = vunpack.c.h.b16 %v292
  %v831 = vunpack.c.l.b16 %v293
  %v832 = vunpack.c.h.b16 %v293
  %v833 = vunpack.c.l.b16 %v294
  %v834 = vunpack.c.h.b16 %v294
  %v835 = vunpack.c.l.b16 %v295
  %v836 = vunpack.c.h.b16 %v295
  %v837 = vunpack.c.l.b16 %v296
  %v838 = vunpack.c.h.b16 %v296
  %v839 = vunpack.c.l.b16 %v297
  %v840 = vunpack.c.h.b16 %v297
  %v841 = vunpack.c.l.b16 %v298
  %v842 = vunpack.c.h.b16 %v298
  %v843 = vunpack.c.l.b16 %v299
  %v844 = vunpack.c.h.b16 %v299
  %v845 = vunpack.c.l.b16 %v300
  %v846 = vunpack.c.h.b16 %v300
  %v847 = vunpack.c.l.b16 %v301
  %v848 = vunpack.c.h.b16 %v301
  %v849 = vunpack.c.l.b16 %v302
  %v850 = vunpack.c.h.b16 %v302
  %v851 = vunpack.c.l.b16 %v303
  %v852 = vunpack.c.h.b16 %v303
  %v853 = vunpack.c.l.b16 %v304
  %v854 = vunpack.c.h.b16 %v304
  %v855 = vunpack.c.l.b16 %v305
  %v856 = vunpack.c.h.b16 %v305
  %v857 = vunpack.c.l.b16 %v306
  %v858 = vunpack.c.h.b16 %v306
  %v859 = vunpack.c.l.b16 %v307
  %v860 = vunpack.c.h.b16 %v307
  %v861 = vunpack.c.l.b16 %v308
  %v862 = vunpack.c.h.b16 %v308
  %v863 = vunpack.c.l.b16 %v309
  %v864 = vunpack.c.h.b16 %v309
  %v865 = vunpack.c.l.b16 %v310
  %v866 = vunpack.c.h.b16 %v310
  %v867 = vunpack.c.l.b16 %v311
  %v868 = vunpack.c.h.b16 %v311
  %v869 = vunpack.c.l.b16 %v312
  %v870 = vunpack.c.h.b16 %v312
  %v871 = vunpack.c.l.b16 %v313
  %v872 = vunpack.c.h.b16 %v313
  %v873 = vunpack.c.l.b16 %v314
  %v874 = vunpack.c.h.b16 %v314
  %v875 = vunpack.c.l.b16 %v315
  %v876 = vunpack.c.h.b16 %v315
  %v877 = vunpack.c.l.b16 %v316
  %v878 = vunpack.c.h.b16 %v316
  %v879 = vunpack.c.l.b16 %v317
  %v880 = vunpack.c.h.b16 %v317
  %v881 = vunpack.c.l.b16 %v318
  %v882 = vunpack.c.h.b16 %v318
  %v883 = vunpack.c.l.b16 %v319
  %v884 = vunpack.c.h.b16 %v319
  %v885 = vunpack.c.l.b16 %v320
  %v886 = vunpack.c.h.b16 %v320
  %v887 = vunpack.c.l.b16 %v321
  %v888 = vunpack.c.h.b16 %v321
  %v889 = vunpack.c.l.b16 %v322
  %v890 = vunpack.c.h.b16 %v322
  %v891 = vunpack.c.l.b16 %v323
  %v892 = vunpack.c.h.b16 %v323
  %v893 = vunpack.c.l.b16 %v324
  %v894 = vunpack.c.h.b16 %v324
  %v895 = vunpack.c.l.b16 %v325
  %v896 = vunpack.c.h.b16 %v325
  %v897 = vunpack.c.l.b16 %v326
  %v898 = vunpack.c.h.b16 %v326
  %v899 = vunpack.c.l.b16 %v327
  %v900 = vunpack.c.h.b16 %v327
  %v901 = vunpack.c.l.b16 %v328
  %v902 = vunpack.c.h.b16 %v328
  %v903 = vunpack.c.l.b16 %v329
  %v904 = vunpack.c.h.b16 %v329
  %v905 = vunpack.c.l.b16 %v330
  %v906 = vunpack.c.h.b16 %v330
  %v907 = vunpack.c.l.b16 %v331
  %v908 = vunpack.c.h.b16 %v331
  %v909 = vunpack.c.l.b16 %v332
  %v910 = vunpack.c.h.b16 %v332
  %v911 = vunpack.c.l.b16 %v333
  %v912 = vunpack.c.h.b16 %v333
  %v913 = vunpack.c.l.b16 %v334
  %v914 = vunpack.c.h.b16 %v334
  %v915 = vunpack.c.l.b16 %v335
  %v916 = vunpack.c.h.b16 %v335
  %v917 = vunpack.c.l.b16 %v336
  %v918 = vunpack.c.h.b16 %v336
  %v919 = vunpack.c.l.b16 %v337
  %v920 = vunpack.c.h.b16 %v337
  %v921 = vunpack.c.l.b16 %v338
  %v922 = vunpack.c.h.b16 %v338
  %v923 = vunpack.c.l.b16 %v339
  %v924 = vunpack.c.h.b16 %v339
  %v925 = vunpack.c.l.b16 %v340
  %v926 = vunpack.c.h.b16 %v340
  %v927 = vunpack.c.l.b16 %v341
  %v928 = vunpack.c.h.b16 %v341
  %v929 = vunpack.c.l.b16 %v342
  %v930 = vunpack.c.h.b16 %v342
  %v931 = vunpack.c.l.b16 %v343
  %v932 = vunpack.c.h.b16 %v343
  %v933 = vunpack.c.l.b16 %v344
  %v934 = vunpack.c.h.b16 %v344
  %v935 = vunpack.c.l.b16 %v345
  %v936 = vunpack.c.h.b16 %v345
  %v937 = vunpack.c.l.b16 %v346
  %v938 = vunpack.c.h.b16 %v346
  %v939 = vunpack.c.l.b16 %v347
  %v940 = vunpack.c.h.b16 %v347
  %v941 = vunpack.c.l.b16 %v348
  %v942 = vunpack.c.h.b16 %v348
  %v943 = vunpack.c.l.b16 %v349
  %v944 = vunpack.c.h.b16 %v349
  %v945 = vunpack.c.l.b16 %v350
  %v946 = vunpack.c.h.b16 %v350
  %v947 = vunpack.c.l.b16 %v351
  %v948 = vunpack.c.h.b16 %v351
  %v949 = vunpack.c.l.b16 %v352
  %v950 = vunpack.c.h.b16 %v352
  %v951 = vunpack.c.l.b16 %v353
  %v952 = vunpack.c.h.b16 %v353
  %v953 = vunpack.c.l.b16 %v354
  %v954 = vunpack.c.h.b16 %v354
  %v955 = vunpack.c.l.b16 %v355
  %v956 = vunpack.c.h.b16 %v355
  %v957 = vunpack.c.l.b16 %v356
  %v958 = vunpack.c.h.b16 %v356
  %v959 = vunpack.c.l.b16 %v357
  %v960 = vunpack.c.h.b16 %v357
  %v961 = vunpack.c.l.b16 %v358
  %v962 = vunpack.c.h.b16 %v358
  %v963 = vunpack.c.l.b16 %v359
  %v964 = vunpack.c.h.b16 %v359
  %v965 = vunpack.c.l.b16 %v360
  %v966 = vunpack.c.h.b16 %v360
  %v967 = vunpack.c.l.b16 %v361
  %v968 = vunpack.c.h.b16 %v361
  %v969 = vunpack.c.l.b16 %v362
  %v970 = vunpack.c.h.b16 %v362
  %v971 = vunpack.c.l.b16 %v363
  %v972 = vunpack.c.h.b16 %v363
  %v973 = vunpack.c.l.b16 %v364
  %v974 = vunpack.c.h.b16 %v364
  %v975 = vunpack.c.l.b16 %v365
  %v976 = vunpack.c.h.b16 %v365
  %v977 = vunpack.c.l.b16 %v366
  %v978 = vunpack.c.h.b16 %v366
  %v979 = vunpack.c.l.b16 %v367
  %v980 = vunpack.c.h.b16 %v367
  %v981 = vunpack.c.l.b16 %v368
  %v982 = vunpack.c.h.b16 %v368
  %v983 = vunpack.c.l.b16 %v369
  %v984 = vunpack.c.h.b16 %v369
  %v985 = vunpack.c.l.b16 %v370
  %v986 = vunpack.c.h.b16 %v370
  %v987 = vunpack.c.l.b16 %v371
  %v988 = vunpack.c.h.b16 %v371
  %v989 = vunpack.c.l.b16 %v372
  %v990 = vunpack.c.h.b16 %v372
  %v991 = vunpack.c.l.b16 %v373
  %v992 = vunpack.c.h.b16 %v373
  %v993 = vunpack.c.l.b16 %v374
  %v994 = vunpack.c.h.b16 %v374
  %v995 = vunpack.c.l.b16 %v375
  %v996 = vunpack.c.h.b16 %v375
  %v997 = vunpack.c.l.b16 %v376
  %v998 = vunpack.c.h.b16 %v376
  %v999 = vunpack.c.l.b16 %v377
  %v1000 = vunpack.c.h.b16 %v377
  %v1001 = vunpack.c.l.b16 %v378
  %v1002 = vunpack.c.h.b16 %v378
  %v1003 = vunpack.c.l.b16 %v379
  %v1004 = vunpack.c.h.b16 %v379
  %v1005 = vunpack.c.l.b16 %v380
  %v1006 = vunpack.c.h.b16 %v380
  %v1007 = vunpack.c.l.b16 %v381
  %v1008 = vunpack.c.h.b16 %v381
  %v1009 = vunpack.c.l.b16 %v382
  %v1010 = vunpack.c.h.b16 %v382
  %v1011 = vunpack.c.l.b16 %v383
  %v1012 = vunpack.c.h.b16 %v383
  %v1013 = vunpack.c.l.b16 %v384
  %v1014 = vunpack.c.h.b16 %v384
  %v1015 = vunpack.c.l.b16 %v385
  %v1016 = vunpack.c.h.b16 %v385
  %v1017 = vunpack.c.l.b16 %v386
  %v1018 = vunpack.c.h.b16 %v386
  %v1019 = vunpack.c.l.b16 %v387
  %v1020 = vunpack.c.h.b16 %v387
  %v1021 = vunpack.c.l.b16 %v388
  %v1022 = vunpack.c.h.b16 %v388
  %v1023 = vunpack.c.l.b16 %v389
  %v1024 = vunpack.c.h.b16 %v389
  %v1025 = vunpack.c.l.b16 %v390
  %v1026 = vunpack.c.h.b16 %v390
  %v1027 = vunpack.c.l.b16 %v391
  %v1028 = vunpack.c.h.b16 %v391
  %v1029 = vunpack.c.l.b16 %v392
  %v1030 = vunpack.c.h.b16 %v392
  %v1031 = vunpack.c.l.b16 %v393
  %v1032 = vunpack.c.h.b16 %v393
  %v1033 = vunpack.c.l.b16 %v394
  %v1034 = vunpack.c.h.b16 %v394
  %v1035 = vunpack.c.l.b16 %v395
  %v1036 = vunpack.c.h.b16 %v395
  %v1037 = vunpack.c.l.b16 %v396
  %v1038 = vunpack.c.h.b16 %v396
  %v1039 = vunpack.c.l.b16 %v397
  %v1040 = vunpack.c.h.b16 %v397
  %v1041 = vunpack.c.l.b16 %v398
  %v1042 = vunpack.c.h.b16 %v398
  %v1043 = vunpack.c.l.b16 %v399
  %v1044 = vunpack.c.h.b16 %v399
  %v1045 = vunpack.c.l.b16 %v400
  %v1046 = vunpack.c.h.b16 %v400
  %v1047 = vunpack.c.l.b16 %v401
  %v1048 = vunpack.c.h.b16 %v401
  %v1049 = vunpack.c.l.b16 %v402
  %v1050 = vunpack.c.h.b16 %v402
  %v1051 = vunpack.c.l.b16 %v403
  %v1052 = vunpack.c.h.b16 %v403
  %v1053 = vunpack.c.l.b16 %v404
  %v1054 = vunpack.c.h.b16 %v404
  %v1055 = vunpack.c.l.b16 %v405
  %v1056 = vunpack.c.h.b16 %v405
  %v1057 = vunpack.c.l.b16 %v406
  %v1058 = vunpack.c.h.b16 %v406
  %v1059 = vunpack.c.l.b16 %v407
  %v1060 = vunpack.c.h.b16 %v407
  %v1061 = vunpack.c.l.b16 %v408
  %v1062 = vunpack.c.h.b16 %v408
  %v1063 = vunpack.c.l.b16 %v409
  %v1064 = vunpack.c.h.b16 %v409
  %v1065 = vunpack.c.l.b16 %v410
  %v1066 = vunpack.c.h.b16 %v410
  %v1067 = vunpack.c.l.b16 %v411
  %v1068 = vunpack.c.h.b16 %v411
  %v1069 = vunpack.c.l.b16 %v412
  %v1070 = vunpack.c.h.b16 %v412
  %v1071 = vunpack.c.l.b16 %v413
  %v1072 = vunpack.c.h.b16 %v413
  %v1073 = vunpack.c.l.b16 %v414
  %v1074 = vunpack.c.h.b16 %v414
  %v1075 = vunpack.c.l.b16 %v415
  %v1076 = vunpack.c.h.b16 %v415
  %v1077 = vunpack.c.l.b16 %v416
  %v1078 = vunpack.c.h.b16 %v416
  %v1079 = vunpack.c.l.b16 %v417
  %v1080 = vunpack.c.h.b16 %v417
  %v1081 = vunpack.c.l.b16 %v418
  %v1082 = vunpack.c.h.b16 %v418
  %v1083 = vunpack.c.l.b16 %v419
  %v1084 = vunpack.c.h.b16 %v419
  %v1085 = vunpack.c.l.b16 %v420
  %v1086 = vunpack.c.h.b16 %v420
  %v1087 = vunpack.c.l.b16 %v421
  %v1088 = vunpack.c.h.b16 %v421
  %v1089 = vunpack.c.l.b16 %v422
  %v1090 = vunpack.c.h.b16 %v422
  %v1091 = vunpack.c.l.b16 %v423
  %v1092 = vunpack.c.h.b16 %v423
  %v1093 = vunpack.c.l.b16 %v424
  %v1094 = vunpack.c.h.b16 %v424
  %v1095 = vunpack.c.l.b16 %v425
  %v1096 = vunpack.c.h.b16 %v425
  %v1097 = vunpack.c.l.b16 %v426
  %v1098 = vunpack.c.h.b16 %v426
  %v1099 = vunpack.c.l.b16 %v427
  %v1100 = vunpack.c.h.b16 %v427
  %v1101 = vunpack.c.l.b16 %v428
  %v1102 = vunpack.c.h.b16 %v428
  %v1103 = vunpack.c.l.b16 %v429
  %v1104 = vunpack.c.h.b16 %v429
  %v1105 = vunpack.c.l.b16 %v430
  %v1106 = vunpack.c.h.b16 %v430
  %v1107 = vunpack.c.l.b16 %v431
  %v1108 = vunpack.c.h.b16 %v431
  %v1109 = vunpack.c.l.b16 %v432
  %v1110 = vunpack.c.h.b16 %v432
  %v1111 = vunpack.c.l.b16 %v433
  %v1112 = vunpack.c.h.b16 %v433
  %v1113 = vunpack.c.l.b16 %v434
  %v1114 = vunpack.c.h.b16 %v434
  %v1115 = vunpack.c.l.b16 %v435
  %v1116 = vunpack.c.h.b16 %v435
  %v1117 = vunpack.c.l.b16 %v436
  %v1118 = vunpack.c.h.b16 %v436
  %v1119 = vunpack.c.l.b16 %v437
  %v1120 = vunpack.c.h.b16 %v437
  %v1121 = vunpack.c.l.b16 %v438
  %v1122 = vunpack.c.h.b16 %v438
  %v1123 = vunpack.c.l.b16 %v439
  %v1124 = vunpack.c.h.b16 %v439
  %v1125 = vunpack.c.l.b16 %v440
  %v1126 = vunpack.c.h.b16 %v440
  %v1127 = vunpack.c.l.b16 %v441
  %v1128 = vunpack.c.h.b16 %v441
  %v1129 = vunpack.c.l.b16 %v442
  %v1130 = vunpack.c.h.b16 %v442
  %v1131 = vunpack.c.l.b16 %v443
  %v1132 = vunpack.c.h.b16 %v443
  %v1133 = vunpack.c.l.b16 %v444
  %v1134 = vunpack.c.h.b16 %v444
  %v1135 = vunpack.c.l.b16 %v445
  %v1136 = vunpack.c.h.b16 %v445
  %v1137 = vunpack.c.l.b16 %v446
  %v1138 = vunpack.c.h.b16 %v446
  %v1139 = vunpack.c.l.b16 %v447
  %v1140 = vunpack.c.h.b16 %v447
  %v1141 = vunpack.c.l.b16 %v448
  %v1142 = vunpack.c.h.b16 %v448
  %v1143 = vunpack.c.l.b16 %v449
  %v1144 = vunpack.c.h.b16 %v449
  %v1145 = vunpack.c.l.b16 %v450
  %v1146 = vunpack.c.h.b16 %v450
  %v1147 = vunpack.c.l.b16 %v451
  %v1148 = vunpack.c.h.b16 %v451
  %v1149 = vunpack.c.l.b16 %v452
  %v1150 = vunpack.c.h.b16 %v452
  %v1151 = vunpack.c.l.b16 %v453
  %v1152 = vunpack.c.h.b16 %v453
  %v1153 = vunpack.c.l.b16 %v454
  %v1154 = vunpack.c.h.b16 %v454
  %v1155 = vunpack.c.l.b16 %v455
  %v1156 = vunpack.c.h.b16 %v455
  %v1157 = vunpack.c.l.b16 %v456
  %v1158 = vunpack.c.h.b16 %v456
  %v1159 = vunpack.c.l.b16 %v457
  %v1160 = vunpack.c.h.b16 %v457
  %v1161 = vunpack.c.l.b16 %v458
  %v1162 = vunpack.c.h.b16 %v458
  %v1163 = vunpack.c.l.b16 %v459
  %v1164 = vunpack.c.h.b16 %v459
  %v1165 = vunpack.c.l.b16 %v460
  %v1166 = vunpack.c.h.b16 %v460
  %v1167 = vunpack.c.l.b16 %v461
  %v1168 = vunpack.c.h.b16 %v461
  %v1169 = vunpack.c.l.b16 %v462
  %v1170 = vunpack.c.h.b16 %v462
  %v1171 = vunpack.c.l.b16 %v463
  %v1172 = vunpack.c.h.b16 %v463
  %v1173 = vunpack.c.l.b16 %v464
  %v1174 = vunpack.c.h.b16 %v464
  %v1175 = vunpack.c.l.b16 %v465
  %v1176 = vunpack.c.h.b16 %v465
  %v1177 = vunpack.c.l.b16 %v466
  %v1178 = vunpack.c.h.b16 %v466
  %v1179 = vunpack.c.l.b16 %v467
  %v1180 = vunpack.c.h.b16 %v467
  %v1181 = vunpack.c.l.b16 %v468
  %v1182 = vunpack.c.h.b16 %v468
  %v1183 = vunpack.c.l.b16 %v469
  %v1184 = vunpack.c.h.b16 %v469
  %v1185 = vunpack.c.l.b16 %v470
  %v1186 = vunpack.c.h.b16 %v470
  %v1187 = vunpack.c.l.b16 %v471
  %v1188 = vunpack.c.h.b16 %v471
  %v1189 = vunpack.c.l.b16 %v472
  %v1190 = vunpack.c.h.b16 %v472
  %v1191 = vunpack.c.l.b16 %v473
  %v1192 = vunpack.c.h.b16 %v473
  %v1193 = vunpack.c.l.b16 %v474
  %v1194 = vunpack.c.h.b16 %v474
  %v1195 = vunpack.c.l.b16 %v475
  %v1196 = vunpack.c.h.b16 %v475
  %v1197 = vunpack.c.l.b16 %v476
  %v1198 = vunpack.c.h.b16 %v476
  %v1199 = vunpack.c.l.b16 %v477
  %v1200 = vunpack.c.h.b16 %v477
  %v1201 = vunpack.c.l.b16 %v478
  %v1202 = vunpack.c.h.b16 %v478
  %v1203 = vunpack.c.l.b16 %v479
  %v1204 = vunpack.c.h.b16 %v479
  %v1205 = vunpack.c.l.b16 %v480
  %v1206 = vunpack.c.h.b16 %v480
  %v1207 = vunpack.c.l.b16 %v481
  %v1208 = vunpack.c.h.b16 %v481
  %v1209 = vunpack.c.l.b16 %v482
  %v1210 = vunpack.c.h.b16 %v482
  %v1211 = vunpack.c.l.b16 %v483
  %v1212 = vunpack.c.h.b16 %v483
  %v1213 = vunpack.c.l.b16 %v484
  %v1214 = vunpack.c.h.b16 %v484
  %v1215 = vunpack.c.l.b16 %v485
  %v1216 = vunpack.c.h.b16 %v485
  %v1217 = vunpack.c.l.b16 %v486
  %v1218 = vunpack.c.h.b16 %v486
  %v1219 = vunpack.c.l.b16 %v487
  %v1220 = vunpack.c.h.b16 %v487
  %v1221 = vunpack.c.l.b16 %v488
  %v1222 = vunpack.c.h.b16 %v488
  %v1223 = vunpack.c.l.b16 %v489
  %v1224 = vunpack.c.h.b16 %v489
  %v1225 = vunpack.c.l.b16 %v490
  %v1226 = vunpack.c.h.b16 %v490
  %v1227 = vunpack.c.l.b16 %v491
  %v1228 = vunpack.c.h.b16 %v491
  %v1229 = vunpack.c.l.b16 %v492
  %v1230 = vunpack.c.h.b16 %v492
  %v1231 = vunpack.c.l.b16 %v493
  %v1232 = vunpack.c.h.b16 %v493
  %v1233 = vunpack.c.l.b16 %v494
  %v1234 = vunpack.c.h.b16 %v494
  %v1235 = vunpack.c.l.b16 %v495
  %v1236 = vunpack.c.h.b16 %v495
  %v1237 = vunpack.c.l.b16 %v496
  %v1238 = vunpack.c.h.b16 %v496
  %v1239 = vunpack.c.l.b16 %v497
  %v1240 = vunpack.c.h.b16 %v497
  %v1241 = vunpack.c.l.b16 %v498
  %v1242 = vunpack.c.h.b16 %v498
  %v1243 = vunpack.c.l.b16 %v499
  %v1244 = vunpack.c.h.b16 %v499
  %v1245 = vunpack.c.l.b16 %v500
  %v1246 = vunpack.c.h.b16 %v500
  %v1247 = vunpack.c.l.b16 %v501
  %v1248 = vunpack.c.h.b16 %v501
  %v1249 = vunpack.c.l.b16 %v502
  %v1250 = vunpack.c.h.b16 %v502
  %v1251 = vunpack.c.l.b16 %v503
  %v1252 = vunpack.c.h.b16 %v503
  %v1253 = vunpack.c.l.b16 %v504
  %v1254 = vunpack.c.h.b16 %v504
  %v1255 = vunpack.c.l.b16 %v505
  %v1256 = vunpack.c.h.b16 %v505
  %v1257 = vunpack.c.l.b16 %v506
  %v1258 = vunpack.c.h.b16 %v506
  %v1259 = vunpack.c.l.b16 %v507
  %v1260 = vunpack.c.h.b16 %v507
  %v1261 = vunpack.c.l.b16 %v508
  %v1262 = vunpack.c.h.b16 %v508
  %v1263 = vunpack.c.l.b16 %v509
  %v1264 = vunpack.c.h.b16 %v509
  %v1265 = vunpack.c.l.b16 %v510
  %v1266 = vunpack.c.h.b16 %v510
  %v1267 = vunpack.c.l.b16 %v511
  %v1268 = vunpack.c.h.b16 %v511
  %v1269 = vunpack.c.l.b16 %v512
  %v1270 = vunpack.c.h.b16 %v512
  %v1271 = vunpack.c.l.b16 %v513
  %v1272 = vunpack.c.h.b16 %v513
  %v1273 = vunpack.c.l.b16 %v514
  %v1274 = vunpack.c.h.b16 %v514
  %v1275 = vunpack.c.l.b16 %v515
  %v1276 = vunpack.c.h.b16 %v515
  %v1277 = vunpack.c.l.b16 %v516
  %v1278 = vunpack.c.h.b16 %v516
  %v1279 = vunpack.c.l.b16 %v517
  %v1280 = vunpack.c.h.b16 %v517
  %v1281 = vunpack.c.l.b16 %v518
  %v1282 = vunpack.c.h.b16 %v518
  %v1283 = vunpack.c.l.b16 %v519
  %v1284 = vunpack.c.h.b16 %v519
  %v1285 = vunpack.c.l.b16 %v520
  %v1286 = vunpack.c.h.b16 %v520
  %v1287 = vunpack.c.l.b16 %v521
  %v1288 = vunpack.c.h.b16 %v521
  %v1289 = vunpack.c.l.b16 %v522
  %v1290 = vunpack.c.h.b16 %v522
  %v1291 = vunpack.c.l.b16 %v523
  %v1292 = vunpack.c.h.b16 %v523
  %v1293 = vunpack.c.l.b16 %v524
  %v1294 = vunpack.c.h.b16 %v524
  %v1295 = vunpack.c.l.b16 %v525
  %v1296 = vunpack.c.h.b16 %v525
  %v1297 = vunpack.c.l.b16 %v526
  %v1298 = vunpack.c.h.b16 %v526
  %v1299 = vunpack.c.l.b16 %v527
  %v1300 = vunpack.c.h.b16 %v527
  %v1301 = vunpack.c.l.b16 %v528
  %v1302 = vunpack.c.h.b16 %v528
  %v1303 = vunpack.c.l.b16 %v529
  %v1304 = vunpack.c.h.b16 %v529
  %v1305 = vunpack.c.l.b16 %v530
  %v1306 = vunpack.c.h.b16 %v530
  %v1307 = vunpack.c.l.b16 %v531
  %v1308 = vunpack.c.h.b16 %v531
  %v1309 = vunpack.c.l.b16 %v532
  %v1310 = vunpack.c.h.b16 %v532
  %v1311 = vpack.c.b16 %v803, %v799
  %v1312 = vpack.c.b16 %v804, %v800
  %v1313 = vpack.c.b16 %v805, %v801
  %v1314 = vpack.c.b16 %v806, %v802
  %v1315 = vpack.c.b16 %v811, %v807
  %v1316 = vpack.c.b16 %v812, %v808
  %v1317 = vpack.c.b16 %v813, %v809
  %v1318 = vpack.c.b16 %v814, %v810
  %v1319 = vpack.c.b16 %v819, %v815
  %v1320 = vpack.c.b16 %v820, %v816
  %v1321 = vpack.c.b16 %v821, %v817
  %v1322 = vpack.c.b16 %v822, %v818
  %v1323 = vpack.c.b16 %v827, %v823
  %v1324 = vpack.c.b16 %v828, %v824
  %v1325 = vpack.c.b16 %v829, %v825
  %v1326 = vpack.c.b16 %v830, %v826
  %v1327 = vpack.c.b16 %v835, %v831
  %v1328 = vpack.c.b16 %v836, %v832
  %v1329 = vpack.c.b16 %v837, %v833
  %v1330 = vpack.c.b16 %v838, %v834
  %v1331 = vpack.c.b16 %v843, %v839
  %v1332 = vpack.c.b16 %v844, %v840
  %v1333 = vpack.c.b16 %v845, %v841
  %v1334 = vpack.c.b16 %v846, %v842
  %v1335 = vpack.c.b16 %v851, %v847
  %v1336 = vpack.c.b16 %v852, %v848
  %v1337 = vpack.c.b16 %v853, %v849
  %v1338 = vpack.c.b16 %v854, %v850
  %v1339 = vpack.c.b16 %v859, %v855
  %v1340 = vpack.c.b16 %v860, %v856
  %v1341 = vpack.c.b16 %v861, %v857
  %v1342 = vpack.c.b16 %v862, %v858
  %v1343 = vpack.c.b16 %v867, %v863
  %v1344 = vpack.c.b16 %v868, %v864
  %v1345 = vpack.c.b16 %v869, %v865
  %v1346 = vpack.c.b16 %v870, %v866
  %v1347 = vpack.c.b16 %v875, %v871
  %v1348 = vpack.c.b16 %v876, %v872
  %v1349 = vpack.c.b16 %v877, %v873
  %v1350 = vpack.c.b16 %v878, %v874
  %v1351 = vpack.c.b16 %v883, %v879
  %v1352 = vpack.c.b16 %v884, %v880
  %v1353 = vpack.c.b16 %v885, %v881
  %v1354 = vpack.c.b16 %v886, %v882
  %v1355 = vpack.c.b16 %v891, %v887
  %v1356 = vpack.c.b16 %v892, %v888
  %v1357 = vpack.c.b16 %v893, %v889
  %v1358 = vpack.c.b16 %v894, %v890
  %v1359 = vpack.c.b16 %v899, %v895
  %v1360 = vpack.c.b16 %v900, %v896
  %v1361 = vpack.c.b16 %v901, %v897
  %v1362 = vpack.c.b16 %v902, %v898
  %v1363 = vpack.c.b16 %v907, %v903
  %v1364 = vpack.c.b16 %v908, %v904
  %v1365 = vpack.c.b16 %v909, %v905
  %v1366 = vpack.c.b16 %v910, %v906
  %v1367 = vpack.c.b16 %v915, %v911
  %v1368 = vpack.c.b16 %v916, %v912
  %v1369 = vpack.c.b16 %v917, %v913
  %v1370 = vpack.c.b16 %v918, %v914
  %v1371 = vpack.c.b16 %v923, %v919
  %v1372 = vpack.c.b16 %v924, %v920
  %v1373 = vpack.c.b16 %v925, %v921
  %v1374 = vpack.c.b16 %v926, %v922
  %v1375 = vpack.c.b16 %v931, %v927
  %v1376 = vpack.c.b16 %v932, %v928
  %v1377 = vpack.c.b16 %v933, %v929
  %v1378 = vpack.c.b16 %v934, %v930
  %v1379 = vpack.c.b16 %v939, %v935
  %v1380 = vpack.c.b16 %v940, %v936
  %v1381 = vpack.c.b16 %v941, %v937
  %v1382 = vpack.c.b16 %v942, %v938
  %v1383 = vpack.c.b16 %v947, %v943
  %v1384 = vpack.c.b16 %v948, %v944
  %v1385 = vpack.c.b16 %v949, %v945
  %v1386 = vpack.c.b16 %v950, %v946
  %v1387 = vpack.c.b16 %v955, %v951
  %v1388 = vpack.c.b16 %v956, %v952
  %v1389 = vpack.c.b16 %v957, %v953
  %v1390 = vpack.c.b16 %v958, %v954
  %v1391 = vpack.c.b16 %v963, %v959
  %v1392 = vpack.c.b16 %v964, %v960
  %v1393 = vpack.c.b16 %v965, %v961
  %v1394 = vpack.c.b16 %v966, %v962
  %v1395 = vpack.c.b16 %v971, %v967
  %v1396 = vpack.c.b16 %v972, %v968
  %v1397 = vpack.c.b16 %v973, %v969
  %v1398 = vpack.c.b16 %v974, %v970
  %v1399 = vpack.c.b16 %v979, %v975
  %v1400 = vpack.c.b16 %v980, %v976
  %v1401 = vpack.c.b16 %v981, %v977
  %v1402 = vpack.c.b16 %v982, %v978
  %v1403 = vpack.c.b16 %v987, %v983
  %v1404 = vpack.c.b16 %v988, %v984
  %v1405 = vpack.c.b16 %v989, %v985
  %v1406 = vpack.c.b16 %v990, %v986
  %v1407 = vpack.c.b16 %v995, %v991
  %v1408 = vpack.c.b16 %v996, %v992
  %v1409 = vpack.c.b16 %v997, %v993
  %v1410 = vpack.c.b16 %v998, %v994
  %v1411 = vpack.c.b16 %v1003, %v999
  %v1412 = vpack.c.b16 %v1004, %v1000
  %v1413 = vpack.c.b16 %v1005, %v1001
  %v1414 = vpack.c.b16 %v1006, %v1002
  %v1415 = vpack.c.b16 %v1011, %v1007
  %v1416 = vpack.c.b16 %v1012, %v1008
  %v1417 = vpack.c.b16 %v1013, %v1009
  %v1418 = vpack.c.b16 %v1014, %v1010
  %v1419 = vpack.c.b16 %v1019, %v1015
  %v1420 = vpack.c.b16 %v1020, %v1016
  %v1421 = vpack.c.b16 %v1021, %v1017
  %v1422 = vpack.c.b16 %v1022, %v1018
  %v1423 = vpack.c.b16 %v1027, %v1023
  %v1424 = vpack.c.b16 %v1028, %v1024
  %v1425 = vpack.c.b16 %v1029, %v1025
  %v1426 = vpack.c.b16 %v1030, %v1026
  %v1427 = vpack.c.b16 %v1035, %v1031
  %v1428 = vpack.c.b16 %v1036, %v1032
  %v1429 = vpack.c.b16 %v1037, %v1033
  %v1430 = vpack.c.b16 %v1038, %v1034
  %v1431 = vpack.c.b16 %v1043, %v1039
  %v1432 = vpack.c.b16 %v1044, %v1040
  %v1433 = vpack.c.b16 %v1045, %v1041
  %v1434 = vpack.c.b16 %v1046, %v1042
  %v1435 = vpack.c.b16 %v1051, %v1047
  %v1436 = vpack.c.b16 %v1052, %v1048
  %v1437 = vpack.c.b16 %v1053, %v1049
  %v1438 = vpack.c.b16 %v1054, %v1050
  %v1439 = vpack.c.b16 %v1059, %v1055
  %v1440 = vpack.c.b16 %v1060, %v1056
  %v1441 = vpack.c.b16 %v1061, %v1057
  %v1442 = vpack.c.b16 %v1062, %v1058
  %v1443 = vpack.c.b16 %v1067, %v1063
  %v1444 = vpack.c.b16 %v1068, %v1064
  %v1445 = vpack.c.b16 %v1069, %v1065
  %v1446 = vpack.c.b16 %v1070, %v1066
  %v1447 = vpack.c.b16 %v1075, %v1071
  %v1448 = vpack.c.b16 %v1076, %v1072
  %v1449 = vpack.c.b16 %v1077, %v1073
  %v1450 = vpack.c.b16 %v1078, %v1074
  %v1451 = vpack.c.b16 %v1083, %v1079
  %v1452 = vpack.c.b16 %v1084, %v1080
  %v1453 = vpack.c.b16 %v1085, %v1081
  %v1454 = vpack.c.b16 %v1086, %v1082
  %v1455 = vpack.c.b16 %v1091, %v1087
  %v1456 = vpack.c.b16 %v1092, %v1088
  %v1457 = vpack.c.b16 %v1093, %v1089
  %v1458 = vpack.c.b16 %v1094, %v1090
  %v1459 = vpack.c.b16 %v1099, %v1095
  %v1460 = vpack.c.b16 %v1100, %v1096
  %v1461 = vpack.c.b16 %v1101, %v1097
  %v1462 = vpack.c.b16 %v1102, %v1098
  %v1463 = vpack.c.b16 %v1107, %v1103
  %v1464 = vpack.c.b16 %v1108, %v1104
  %v1465 = vpack.c.b16 %v1109, %v1105
  %v1466 = vpack.c.b16 %v1110, %v1106
  %v1467 = vpack.c.b16 %v1115, %v1111
  %v1468 = vpack.c.b16 %v1116, %v1112
  %v1469 = vpack.c.b16 %v1117, %v1113
  %v1470 = vpack.c.b16 %v1118, %v1114
  %v1471 = vpack.c.b16 %v1123, %v1119
  %v1472 = vpack.c.b16 %v1124, %v1120
  %v1473 = vpack.c.b16 %v1125, %v1121
  %v1474 = vpack.c.b16 %v1126, %v1122
  %v1475 = vpack.c.b16 %v1131, %v1127
  %v1476 = vpack.c.b16 %v1132, %v1128
  %v1477 = vpack.c.b16 %v1133, %v1129
  %v1478 = vpack.c.b16 %v1134, %v1130
  %v1479 = vpack.c.b16 %v1139, %v1135
  %v1480 = vpack.c.b16 %v1140, %v1136
  %v1481 = vpack.c.b16 %v1141, %v1137
  %v1482 = vpack.c.b16 %v1142, %v1138
  %v1483 = vpack.c.b16 %v1147, %v1143
  %v1484 = vpack.c.b16 %v1148, %v1144
  %v1485 = vpack.c.b16 %v1149, %v1145
  %v1486 = vpack.c.b16 %v1150, %v1146
  %v1487 = vpack.c.b16 %v1155, %v1151
  %v1488 = vpack.c.b16 %v1156, %v1152
  %v1489 = vpack.c.b16 %v1157, %v1153
  %v1490 = vpack.c.b16 %v1158, %v1154
  %v1491 = vpack.c.b16 %v1163, %v1159
  %v1492 = vpack.c.b16 %v1164, %v1160
  %v1493 = vpack.c.b16 %v1165, %v1161
  %v1494 = vpack.c.b16 %v1166, %v1162
  %v1495 = vpack.c.b16 %v1171, %v1167
  %v1496 = vpack.c.b16 %v1172, %v1168
  %v1497 = vpack.c.b16 %v1173, %v1169
  %v1498 = vpack.c.b16 %v1174, %v1170
  %v1499 = vpack.c.b16 %v1179, %v1175
  %v1500 = vpack.c.b16 %v1180, %v1176
  %v1501 = vpack.c.b16 %v1181, %v1177
  %v1502 = vpack.c.b16 %v1182, %v1178
  %v1503 = vpack.c.b16 %v1187, %v1183
  %v1504 = vpack.c.b16 %v1188, %v1184
  %v1505 = vpack.c.b16 %v1189, %v1185
  %v1506 = vpack.c.b16 %v1190, %v1186
  %v1507 = vpack.c.b16 %v1195, %v1191
  %v1508 = vpack.c.b16 %v1196, %v1192
  %v1509 = vpack.c.b16 %v1197, %v1193
  %v1510 = vpack.c.b16 %v1198, %v1194
  %v1511 = vpack.c.b16 %v1203, %v1199
  %v1512 = vpack.c.b16 %v1204, %v1200
  %v1513 = vpack.c.b16 %v1205, %v1201
  %v1514 = vpack.c.b16 %v1206, %v1202
  %v1515 = vpack.c.b16 %v1211, %v1207
  %v1516 = vpack.c.b16 %v1212, %v1208
  %v1517 = vpack.c.b16 %v1213, %v1209
  %v1518 = vpack.c.b16 %v1214, %v1210
  %v1519 = vpack.c.b16 %v1219, %v1215
  %v1520 = vpack.c.b16 %v1220, %v1216
  %v1521 = vpack.c.b16 %v1221, %v1217
  %v1522 = vpack.c.b16 %v1222, %v1218
  %v1523 = vpack.c.b16 %v1227, %v1223
  %v1524 = vpack.c.b16 %v1228, %v1224
  %v1525 = vpack.c.b16 %v1229, %v1225
  %v1526 = vpack.c.b16 %v1230, %v1226
  %v1527 = vpack.c.b16 %v1235, %v1231
  %v1528 = vpack.c.b16 %v1236, %v1232
  %v1529 = vpack.c.b16 %v1237, %v1233
  %v1530 = vpack.c.b16 %v1238, %v1234
  %v1531 = vpack.c.b16 %v1243, %v1239
  %v1532 = vpack.c.b16 %v1244, %v1240
  %v1533 = vpack.c.b16 %v1245, %v1241
  %v1534 = vpack.c.b16 %v1246, %v1242
  %v1535 = vpack.c.b16 %v1251, %v1247
  %v1536 = vpack.c.b16 %v1252, %v1248
  %v1537 = vpack.c.b16 %v1253, %v1249
  %v1538 = vpack.c.b16 %v1254, %v1250
  %v1539 = vpack.c.b16 %v1259, %v1255
  %v1540 = vpack.c.b16 %v1260, %v1256
  %v1541 = vpack.c.b16 %v1261, %v1257
  %v1542 = vpack.c.b16 %v1262, %v1258
  %v1543 = vpack.c.b16 %v1267, %v1263
  %v1544 = vpack.c.b16 %v1268, %v1264
  %v1545 = vpack.c.b16 %v1269, %v1265
  %v1546 = vpack.c.b16 %v1270, %v1266
  %v1547 = vpack.c.b16 %v1275, %v1271
  %v1548 = vpack.c.b16 %v1276, %v1272
  %v1549 = vpack.c.b16 %v1277, %v1273
  %v1550 = vpack.c.b16 %v1278, %v1274
  %v1551 = vpack.c.b16 %v1283, %v1279
  %v1552 = vpack.c.b16 %v1284, %v1280
  %v1553 = vpack.c.b16 %v1285, %v1281
  %v1554 = vpack.c.b16 %v1286, %v1282
  %v1555 = vpack.c.b16 %v1291, %v1287
  %v1556 = vpack.c.b16 %v1292, %v1288
  %v1557 = vpack.c.b16 %v1293, %v1289
  %v1558 = vpack.c.b16 %v1294, %v1290
  %v1559 = vpack.c.b16 %v1299, %v1295
  %v1560 = vpack.c.b16 %v1300, %v1296
  %v1561 = vpack.c.b16 %v1301, %v1297
  %v1562 = vpack.c.b16 %v1302, %v1298
  %v1563 = vpack.c.b16 %v1307, %v1303
  %v1564 = vpack.c.b16 %v1308, %v1304
  %v1565 = vpack.c.b16 %v1309, %v1305
  %v1566 = vpack.c.b16 %v1310, %v1306
  %1823 = vmatpush.bf16.msra.mxu0 %v1339
  %1824 = vmatpush.bf16.msra.mxu0 %v1335
  %1825 = vmatpush.bf16.msra.mxu0 %v1331
  %1826 = vmatpush.bf16.msra.mxu0 %v1327
  %1827 = vmatpush.bf16.msra.mxu0 %v1323
  %1828 = vmatpush.bf16.msra.mxu0 %v1319
  %1829 = vmatpush.bf16.msra.mxu0 %v1315
  %1830 = vmatpush.bf16.msra.mxu0 %v1311
  %1831 = vmatmul.bf16.gmra.mxu0 %v269
  %v1832 = vpop.f32.mrf.mxu0
  %v1833 = vadd.f32 %v535, %v1832
  %v1834 = vpop.f32.mrf.mxu0
  %v1835 = vadd.f32 %v535, %v1834
  %1836 = vdwg.mxu0
  %1837 = vmatpush.bf16.msra.mxu0 %v1371
  %1838 = vmatpush.bf16.msra.mxu0 %v1367
  %1839 = vmatpush.bf16.msra.mxu0 %v1363
  %1840 = vmatpush.bf16.msra.mxu0 %v1359
  %1841 = vmatpush.bf16.msra.mxu0 %v1355
  %1842 = vmatpush.bf16.msra.mxu0 %v1351
  %1843 = vmatpush.bf16.msra.mxu0 %v1347
  %1844 = vmatpush.bf16.msra.mxu0 %v1343
  %1845 = vmatmul.bf16.gmra.mxu0 %v270
  %v1846 = vpop.f32.mrf.mxu0
  %v1847 = vadd.f32 %v1833, %v1846
  %v1848 = vpop.f32.mrf.mxu0
  %v1849 = vadd.f32 %v1835, %v1848
  %1850 = vdwg.mxu0
  %1851 = vmatpush.bf16.msra.mxu0 %v1403
  %1852 = vmatpush.bf16.msra.mxu0 %v1399
  %1853 = vmatpush.bf16.msra.mxu0 %v1395
  %1854 = vmatpush.bf16.msra.mxu0 %v1391
  %1855 = vmatpush.bf16.msra.mxu0 %v1387
  %1856 = vmatpush.bf16.msra.mxu0 %v1383
  %1857 = vmatpush.bf16.msra.mxu0 %v1379
  %1858 = vmatpush.bf16.msra.mxu0 %v1375
  %1859 = vmatmul.bf16.gmra.mxu0 %v271
  %v1860 = vpop.f32.mrf.mxu0
  %v1861 = vadd.f32 %v1847, %v1860
  %v1862 = vpop.f32.mrf.mxu0
  %v1863 = vadd.f32 %v1849, %v1862
  %1864 = vdwg.mxu0
  %1865 = vmatpush.bf16.msra.mxu0 %v1435
  %1866 = vmatpush.bf16.msra.mxu0 %v1431
  %1867 = vmatpush.bf16.msra.mxu0 %v1427
  %1868 = vmatpush.bf16.msra.mxu0 %v1423
  %1869 = vmatpush.bf16.msra.mxu0 %v1419
  %1870 = vmatpush.bf16.msra.mxu0 %v1415
  %1871 = vmatpush.bf16.msra.mxu0 %v1411
  %1872 = vmatpush.bf16.msra.mxu0 %v1407
  %1873 = vmatmul.bf16.gmra.mxu0 %v272
  %v1874 = vpop.f32.mrf.mxu0
  %v1875 = vadd.f32 %v1861, %v1874
  %v1876 = vpop.f32.mrf.mxu0
  %v1877 = vadd.f32 %v1863, %v1876
  %1878 = vdwg.mxu0
  %1879 = vmatpush.bf16.msra.mxu0 %v1467
  %1880 = vmatpush.bf16.msra.mxu0 %v1463
  %1881 = vmatpush.bf16.msra.mxu0 %v1459
  %1882 = vmatpush.bf16.msra.mxu0 %v1455
  %1883 = vmatpush.bf16.msra.mxu0 %v1451
  %1884 = vmatpush.bf16.msra.mxu0 %v1447
  %1885 = vmatpush.bf16.msra.mxu0 %v1443
  %1886 = vmatpush.bf16.msra.mxu0 %v1439
  %1887 = vmatmul.bf16.gmra.mxu0 %v273
  %v1888 = vpop.f32.mrf.mxu0
  %v1889 = vadd.f32 %v1875, %v1888
  %v1890 = vpop.f32.mrf.mxu0
  %v1891 = vadd.f32 %v1877, %v1890
  %1892 = vdwg.mxu0
  %1893 = vmatpush.bf16.msra.mxu0 %v1499
  %1894 = vmatpush.bf16.msra.mxu0 %v1495
  %1895 = vmatpush.bf16.msra.mxu0 %v1491
  %1896 = vmatpush.bf16.msra.mxu0 %v1487
  %1897 = vmatpush.bf16.msra.mxu0 %v1483
  %1898 = vmatpush.bf16.msra.mxu0 %v1479
  %1899 = vmatpush.bf16.msra.mxu0 %v1475
  %1900 = vmatpush.bf16.msra.mxu0 %v1471
  %1901 = vmatmul.bf16.gmra.mxu0 %v274
  %v1902 = vpop.f32.mrf.mxu0
  %v1903 = vadd.f32 %v1889, %v1902
  %v1904 = vpop.f32.mrf.mxu0
  %v1905 = vadd.f32 %v1891, %v1904
  %1906 = vdwg.mxu0
  %1907 = vmatpush.bf16.msra.mxu0 %v1531
  %1908 = vmatpush.bf16.msra.mxu0 %v1527
  %1909 = vmatpush.bf16.msra.mxu0 %v1523
  %1910 = vmatpush.bf16.msra.mxu0 %v1519
  %1911 = vmatpush.bf16.msra.mxu0 %v1515
  %1912 = vmatpush.bf16.msra.mxu0 %v1511
  %1913 = vmatpush.bf16.msra.mxu0 %v1507
  %1914 = vmatpush.bf16.msra.mxu0 %v1503
  %1915 = vmatmul.bf16.gmra.mxu0 %v275
  %v1916 = vpop.f32.mrf.mxu0
  %v1917 = vadd.f32 %v1903, %v1916
  %v1918 = vpop.f32.mrf.mxu0
  %v1919 = vadd.f32 %v1905, %v1918
  %1920 = vdwg.mxu0
  %1921 = vmatpush.bf16.msra.mxu0 %v1563
  %1922 = vmatpush.bf16.msra.mxu0 %v1559
  %1923 = vmatpush.bf16.msra.mxu0 %v1555
  %1924 = vmatpush.bf16.msra.mxu0 %v1551
  %1925 = vmatpush.bf16.msra.mxu0 %v1547
  %1926 = vmatpush.bf16.msra.mxu0 %v1543
  %1927 = vmatpush.bf16.msra.mxu0 %v1539
  %1928 = vmatpush.bf16.msra.mxu0 %v1535
  %1929 = vmatmul.bf16.gmra.mxu0 %v276
  %v1930 = vpop.f32.mrf.mxu0
  %v1931 = vadd.f32 %v1917, %v1930
  %v1932 = vpop.f32.mrf.mxu0
  %v1933 = vadd.f32 %v1919, %v1932
  %1934 = vdwg.mxu0
  %1935 = vmatpush.bf16.msra.mxu0 %v1340
  %1936 = vmatpush.bf16.msra.mxu0 %v1336
  %1937 = vmatpush.bf16.msra.mxu0 %v1332
  %1938 = vmatpush.bf16.msra.mxu0 %v1328
  %1939 = vmatpush.bf16.msra.mxu0 %v1324
  %1940 = vmatpush.bf16.msra.mxu0 %v1320
  %1941 = vmatpush.bf16.msra.mxu0 %v1316
  %1942 = vmatpush.bf16.msra.mxu0 %v1312
  %1943 = vmatmul.bf16.gmra.mxu0 %v269
  %v1944 = vpop.f32.mrf.mxu0
  %v1945 = vadd.f32 %v536, %v1944
  %v1946 = vpop.f32.mrf.mxu0
  %v1947 = vadd.f32 %v536, %v1946
  %1948 = vdwg.mxu0
  %1949 = vmatpush.bf16.msra.mxu0 %v1372
  %1950 = vmatpush.bf16.msra.mxu0 %v1368
  %1951 = vmatpush.bf16.msra.mxu0 %v1364
  %1952 = vmatpush.bf16.msra.mxu0 %v1360
  %1953 = vmatpush.bf16.msra.mxu0 %v1356
  %1954 = vmatpush.bf16.msra.mxu0 %v1352
  %1955 = vmatpush.bf16.msra.mxu0 %v1348
  %1956 = vmatpush.bf16.msra.mxu0 %v1344
  %1957 = vmatmul.bf16.gmra.mxu0 %v270
  %v1958 = vpop.f32.mrf.mxu0
  %v1959 = vadd.f32 %v1945, %v1958
  %v1960 = vpop.f32.mrf.mxu0
  %v1961 = vadd.f32 %v1947, %v1960
  %1962 = vdwg.mxu0
  %1963 = vmatpush.bf16.msra.mxu0 %v1404
  %1964 = vmatpush.bf16.msra.mxu0 %v1400
  %1965 = vmatpush.bf16.msra.mxu0 %v1396
  %1966 = vmatpush.bf16.msra.mxu0 %v1392
  %1967 = vmatpush.bf16.msra.mxu0 %v1388
  %1968 = vmatpush.bf16.msra.mxu0 %v1384
  %1969 = vmatpush.bf16.msra.mxu0 %v1380
  %1970 = vmatpush.bf16.msra.mxu0 %v1376
  %1971 = vmatmul.bf16.gmra.mxu0 %v271
  %v1972 = vpop.f32.mrf.mxu0
  %v1973 = vadd.f32 %v1959, %v1972
  %v1974 = vpop.f32.mrf.mxu0
  %v1975 = vadd.f32 %v1961, %v1974
  %1976 = vdwg.mxu0
  %1977 = vmatpush.bf16.msra.mxu0 %v1436
  %1978 = vmatpush.bf16.msra.mxu0 %v1432
  %1979 = vmatpush.bf16.msra.mxu0 %v1428
  %1980 = vmatpush.bf16.msra.mxu0 %v1424
  %1981 = vmatpush.bf16.msra.mxu0 %v1420
  %1982 = vmatpush.bf16.msra.mxu0 %v1416
  %1983 = vmatpush.bf16.msra.mxu0 %v1412
  %1984 = vmatpush.bf16.msra.mxu0 %v1408
  %1985 = vmatmul.bf16.gmra.mxu0 %v272
  %v1986 = vpop.f32.mrf.mxu0
  %v1987 = vadd.f32 %v1973, %v1986
  %v1988 = vpop.f32.mrf.mxu0
  %v1989 = vadd.f32 %v1975, %v1988
  %1990 = vdwg.mxu0
  %1991 = vmatpush.bf16.msra.mxu0 %v1468
  %1992 = vmatpush.bf16.msra.mxu0 %v1464
  %1993 = vmatpush.bf16.msra.mxu0 %v1460
  %1994 = vmatpush.bf16.msra.mxu0 %v1456
  %1995 = vmatpush.bf16.msra.mxu0 %v1452
  %1996 = vmatpush.bf16.msra.mxu0 %v1448
  %1997 = vmatpush.bf16.msra.mxu0 %v1444
  %1998 = vmatpush.bf16.msra.mxu0 %v1440
  %1999 = vmatmul.bf16.gmra.mxu0 %v273
  %v2000 = vpop.f32.mrf.mxu0
  %v2001 = vadd.f32 %v1987, %v2000
  %v2002 = vpop.f32.mrf.mxu0
  %v2003 = vadd.f32 %v1989, %v2002
  %2004 = vdwg.mxu0
  %2005 = vmatpush.bf16.msra.mxu0 %v1500
  %2006 = vmatpush.bf16.msra.mxu0 %v1496
  %2007 = vmatpush.bf16.msra.mxu0 %v1492
  %2008 = vmatpush.bf16.msra.mxu0 %v1488
  %2009 = vmatpush.bf16.msra.mxu0 %v1484
  %2010 = vmatpush.bf16.msra.mxu0 %v1480
  %2011 = vmatpush.bf16.msra.mxu0 %v1476
  %2012 = vmatpush.bf16.msra.mxu0 %v1472
  %2013 = vmatmul.bf16.gmra.mxu0 %v274
  %v2014 = vpop.f32.mrf.mxu0
  %v2015 = vadd.f32 %v2001, %v2014
  %v2016 = vpop.f32.mrf.mxu0
  %v2017 = vadd.f32 %v2003, %v2016
  %2018 = vdwg.mxu0
  %2019 = vmatpush.bf16.msra.mxu0 %v1532
  %2020 = vmatpush.bf16.msra.mxu0 %v1528
  %2021 = vmatpush.bf16.msra.mxu0 %v1524
  %2022 = vmatpush.bf16.msra.mxu0 %v1520
  %2023 = vmatpush.bf16.msra.mxu0 %v1516
  %2024 = vmatpush.bf16.msra.mxu0 %v1512
  %2025 = vmatpush.bf16.msra.mxu0 %v1508
  %2026 = vmatpush.bf16.msra.mxu0 %v1504
  %2027 = vmatmul.bf16.gmra.mxu0 %v275
  %v2028 = vpop.f32.mrf.mxu0
  %v2029 = vadd.f32 %v2015, %v2028
  %v2030 = vpop.f32.mrf.mxu0
  %v2031 = vadd.f32 %v2017, %v2030
  %2032 = vdwg.mxu0
  %2033 = vmatpush.bf16.msra.mxu0 %v1564
  %2034 = vmatpush.bf16.msra.mxu0 %v1560
  %2035 = vmatpush.bf16.msra.mxu0 %v1556
  %2036 = vmatpush.bf16.msra.mxu0 %v1552
  %2037 = vmatpush.bf16.msra.mxu0 %v1548
  %2038 = vmatpush.bf16.msra.mxu0 %v1544
  %2039 = vmatpush.bf16.msra.mxu0 %v1540
  %2040 = vmatpush.bf16.msra.mxu0 %v1536
  %2041 = vmatmul.bf16.gmra.mxu0 %v276
  %v2042 = vpop.f32.mrf.mxu0
  %v2043 = vadd.f32 %v2029, %v2042
  %v2044 = vpop.f32.mrf.mxu0
  %v2045 = vadd.f32 %v2031, %v2044
  %2046 = vdwg.mxu0
  %2047 = vmatpush.bf16.msra.mxu0 %v1341
  %2048 = vmatpush.bf16.msra.mxu0 %v1337
  %2049 = vmatpush.bf16.msra.mxu0 %v1333
  %2050 = vmatpush.bf16.msra.mxu0 %v1329
  %2051 = vmatpush.bf16.msra.mxu0 %v1325
  %2052 = vmatpush.bf16.msra.mxu0 %v1321
  %2053 = vmatpush.bf16.msra.mxu0 %v1317
  %2054 = vmatpush.bf16.msra.mxu0 %v1313
  %2055 = vmatmul.bf16.gmra.mxu0 %v269
  %v2056 = vpop.f32.mrf.mxu0
  %v2057 = vadd.f32 %v537, %v2056
  %v2058 = vpop.f32.mrf.mxu0
  %v2059 = vadd.f32 %v537, %v2058
  %2060 = vdwg.mxu0
  %2061 = vmatpush.bf16.msra.mxu0 %v1373
  %2062 = vmatpush.bf16.msra.mxu0 %v1369
  %2063 = vmatpush.bf16.msra.mxu0 %v1365
  %2064 = vmatpush.bf16.msra.mxu0 %v1361
  %2065 = vmatpush.bf16.msra.mxu0 %v1357
  %2066 = vmatpush.bf16.msra.mxu0 %v1353
  %2067 = vmatpush.bf16.msra.mxu0 %v1349
  %2068 = vmatpush.bf16.msra.mxu0 %v1345
  %2069 = vmatmul.bf16.gmra.mxu0 %v270
  %v2070 = vpop.f32.mrf.mxu0
  %v2071 = vadd.f32 %v2057, %v2070
  %v2072 = vpop.f32.mrf.mxu0
  %v2073 = vadd.f32 %v2059, %v2072
  %2074 = vdwg.mxu0
  %2075 = vmatpush.bf16.msra.mxu0 %v1405
  %2076 = vmatpush.bf16.msra.mxu0 %v1401
  %2077 = vmatpush.bf16.msra.mxu0 %v1397
  %2078 = vmatpush.bf16.msra.mxu0 %v1393
  %2079 = vmatpush.bf16.msra.mxu0 %v1389
  %2080 = vmatpush.bf16.msra.mxu0 %v1385
  %2081 = vmatpush.bf16.msra.mxu0 %v1381
  %2082 = vmatpush.bf16.msra.mxu0 %v1377
  %2083 = vmatmul.bf16.gmra.mxu0 %v271
  %v2084 = vpop.f32.mrf.mxu0
  %v2085 = vadd.f32 %v2071, %v2084
  %v2086 = vpop.f32.mrf.mxu0
  %v2087 = vadd.f32 %v2073, %v2086
  %2088 = vdwg.mxu0
  %2089 = vmatpush.bf16.msra.mxu0 %v1437
  %2090 = vmatpush.bf16.msra.mxu0 %v1433
  %2091 = vmatpush.bf16.msra.mxu0 %v1429
  %2092 = vmatpush.bf16.msra.mxu0 %v1425
  %2093 = vmatpush.bf16.msra.mxu0 %v1421
  %2094 = vmatpush.bf16.msra.mxu0 %v1417
  %2095 = vmatpush.bf16.msra.mxu0 %v1413
  %2096 = vmatpush.bf16.msra.mxu0 %v1409
  %2097 = vmatmul.bf16.gmra.mxu0 %v272
  %v2098 = vpop.f32.mrf.mxu0
  %v2099 = vadd.f32 %v2085, %v2098
  %v2100 = vpop.f32.mrf.mxu0
  %v2101 = vadd.f32 %v2087, %v2100
  %2102 = vdwg.mxu0
  %2103 = vmatpush.bf16.msra.mxu0 %v1469
  %2104 = vmatpush.bf16.msra.mxu0 %v1465
  %2105 = vmatpush.bf16.msra.mxu0 %v1461
  %2106 = vmatpush.bf16.msra.mxu0 %v1457
  %2107 = vmatpush.bf16.msra.mxu0 %v1453
  %2108 = vmatpush.bf16.msra.mxu0 %v1449
  %2109 = vmatpush.bf16.msra.mxu0 %v1445
  %2110 = vmatpush.bf16.msra.mxu0 %v1441
  %2111 = vmatmul.bf16.gmra.mxu0 %v273
  %v2112 = vpop.f32.mrf.mxu0
  %v2113 = vadd.f32 %v2099, %v2112
  %v2114 = vpop.f32.mrf.mxu0
  %v2115 = vadd.f32 %v2101, %v2114
  %2116 = vdwg.mxu0
  %2117 = vmatpush.bf16.msra.mxu0 %v1501
  %2118 = vmatpush.bf16.msra.mxu0 %v1497
  %2119 = vmatpush.bf16.msra.mxu0 %v1493
  %2120 = vmatpush.bf16.msra.mxu0 %v1489
  %2121 = vmatpush.bf16.msra.mxu0 %v1485
  %2122 = vmatpush.bf16.msra.mxu0 %v1481
  %2123 = vmatpush.bf16.msra.mxu0 %v1477
  %2124 = vmatpush.bf16.msra.mxu0 %v1473
  %2125 = vmatmul.bf16.gmra.mxu0 %v274
  %v2126 = vpop.f32.mrf.mxu0
  %v2127 = vadd.f32 %v2113, %v2126
  %v2128 = vpop.f32.mrf.mxu0
  %v2129 = vadd.f32 %v2115, %v2128
  %2130 = vdwg.mxu0
  %2131 = vmatpush.bf16.msra.mxu0 %v1533
  %2132 = vmatpush.bf16.msra.mxu0 %v1529
  %2133 = vmatpush.bf16.msra.mxu0 %v1525
  %2134 = vmatpush.bf16.msra.mxu0 %v1521
  %2135 = vmatpush.bf16.msra.mxu0 %v1517
  %2136 = vmatpush.bf16.msra.mxu0 %v1513
  %2137 = vmatpush.bf16.msra.mxu0 %v1509
  %2138 = vmatpush.bf16.msra.mxu0 %v1505
  %2139 = vmatmul.bf16.gmra.mxu0 %v275
  %v2140 = vpop.f32.mrf.mxu0
  %v2141 = vadd.f32 %v2127, %v2140
  %v2142 = vpop.f32.mrf.mxu0
  %v2143 = vadd.f32 %v2129, %v2142
  %2144 = vdwg.mxu0
  %2145 = vmatpush.bf16.msra.mxu0 %v1565
  %2146 = vmatpush.bf16.msra.mxu0 %v1561
  %2147 = vmatpush.bf16.msra.mxu0 %v1557
  %2148 = vmatpush.bf16.msra.mxu0 %v1553
  %2149 = vmatpush.bf16.msra.mxu0 %v1549
  %2150 = vmatpush.bf16.msra.mxu0 %v1545
  %2151 = vmatpush.bf16.msra.mxu0 %v1541
  %2152 = vmatpush.bf16.msra.mxu0 %v1537
  %2153 = vmatmul.bf16.gmra.mxu0 %v276
  %v2154 = vpop.f32.mrf.mxu0
  %v2155 = vadd.f32 %v2141, %v2154
  %v2156 = vpop.f32.mrf.mxu0
  %v2157 = vadd.f32 %v2143, %v2156
  %2158 = vdwg.mxu0
  %2159 = vmatpush.bf16.msra.mxu0 %v1342
  %2160 = vmatpush.bf16.msra.mxu0 %v1338
  %2161 = vmatpush.bf16.msra.mxu0 %v1334
  %2162 = vmatpush.bf16.msra.mxu0 %v1330
  %2163 = vmatpush.bf16.msra.mxu0 %v1326
  %2164 = vmatpush.bf16.msra.mxu0 %v1322
  %2165 = vmatpush.bf16.msra.mxu0 %v1318
  %2166 = vmatpush.bf16.msra.mxu0 %v1314
  %2167 = vmatmul.bf16.gmra.mxu0 %v269
  %v2168 = vpop.f32.mrf.mxu0
  %v2169 = vadd.f32 %v538, %v2168
  %v2170 = vpop.f32.mrf.mxu0
  %v2171 = vadd.f32 %v538, %v2170
  %2172 = vdwg.mxu0
  %2173 = vmatpush.bf16.msra.mxu0 %v1374
  %2174 = vmatpush.bf16.msra.mxu0 %v1370
  %2175 = vmatpush.bf16.msra.mxu0 %v1366
  %2176 = vmatpush.bf16.msra.mxu0 %v1362
  %2177 = vmatpush.bf16.msra.mxu0 %v1358
  %2178 = vmatpush.bf16.msra.mxu0 %v1354
  %2179 = vmatpush.bf16.msra.mxu0 %v1350
  %2180 = vmatpush.bf16.msra.mxu0 %v1346
  %2181 = vmatmul.bf16.gmra.mxu0 %v270
  %v2182 = vpop.f32.mrf.mxu0
  %v2183 = vadd.f32 %v2169, %v2182
  %v2184 = vpop.f32.mrf.mxu0
  %v2185 = vadd.f32 %v2171, %v2184
  %2186 = vdwg.mxu0
  %2187 = vmatpush.bf16.msra.mxu0 %v1406
  %2188 = vmatpush.bf16.msra.mxu0 %v1402
  %2189 = vmatpush.bf16.msra.mxu0 %v1398
  %2190 = vmatpush.bf16.msra.mxu0 %v1394
  %2191 = vmatpush.bf16.msra.mxu0 %v1390
  %2192 = vmatpush.bf16.msra.mxu0 %v1386
  %2193 = vmatpush.bf16.msra.mxu0 %v1382
  %2194 = vmatpush.bf16.msra.mxu0 %v1378
  %2195 = vmatmul.bf16.gmra.mxu0 %v271
  %v2196 = vpop.f32.mrf.mxu0
  %v2197 = vadd.f32 %v2183, %v2196
  %v2198 = vpop.f32.mrf.mxu0
  %v2199 = vadd.f32 %v2185, %v2198
  %2200 = vdwg.mxu0
  %2201 = vmatpush.bf16.msra.mxu0 %v1438
  %2202 = vmatpush.bf16.msra.mxu0 %v1434
  %2203 = vmatpush.bf16.msra.mxu0 %v1430
  %2204 = vmatpush.bf16.msra.mxu0 %v1426
  %2205 = vmatpush.bf16.msra.mxu0 %v1422
  %2206 = vmatpush.bf16.msra.mxu0 %v1418
  %2207 = vmatpush.bf16.msra.mxu0 %v1414
  %2208 = vmatpush.bf16.msra.mxu0 %v1410
  %2209 = vmatmul.bf16.gmra.mxu0 %v272
  %v2210 = vpop.f32.mrf.mxu0
  %v2211 = vadd.f32 %v2197, %v2210
  %v2212 = vpop.f32.mrf.mxu0
  %v2213 = vadd.f32 %v2199, %v2212
  %2214 = vdwg.mxu0
  %2215 = vmatpush.bf16.msra.mxu0 %v1470
  %2216 = vmatpush.bf16.msra.mxu0 %v1466
  %2217 = vmatpush.bf16.msra.mxu0 %v1462
  %2218 = vmatpush.bf16.msra.mxu0 %v1458
  %2219 = vmatpush.bf16.msra.mxu0 %v1454
  %2220 = vmatpush.bf16.msra.mxu0 %v1450
  %2221 = vmatpush.bf16.msra.mxu0 %v1446
  %2222 = vmatpush.bf16.msra.mxu0 %v1442
  %2223 = vmatmul.bf16.gmra.mxu0 %v273
  %v2224 = vpop.f32.mrf.mxu0
  %v2225 = vadd.f32 %v2211, %v2224
  %v2226 = vpop.f32.mrf.mxu0
  %v2227 = vadd.f32 %v2213, %v2226
  %2228 = vdwg.mxu0
  %2229 = vmatpush.bf16.msra.mxu0 %v1502
  %2230 = vmatpush.bf16.msra.mxu0 %v1498
  %2231 = vmatpush.bf16.msra.mxu0 %v1494
  %2232 = vmatpush.bf16.msra.mxu0 %v1490
  %2233 = vmatpush.bf16.msra.mxu0 %v1486
  %2234 = vmatpush.bf16.msra.mxu0 %v1482
  %2235 = vmatpush.bf16.msra.mxu0 %v1478
  %2236 = vmatpush.bf16.msra.mxu0 %v1474
  %2237 = vmatmul.bf16.gmra.mxu0 %v274
  %v2238 = vpop.f32.mrf.mxu0
  %v2239 = vadd.f32 %v2225, %v2238
  %v2240 = vpop.f32.mrf.mxu0
  %v2241 = vadd.f32 %v2227, %v2240
  %2242 = vdwg.mxu0
  %2243 = vmatpush.bf16.msra.mxu0 %v1534
  %2244 = vmatpush.bf16.msra.mxu0 %v1530
  %2245 = vmatpush.bf16.msra.mxu0 %v1526
  %2246 = vmatpush.bf16.msra.mxu0 %v1522
  %2247 = vmatpush.bf16.msra.mxu0 %v1518
  %2248 = vmatpush.bf16.msra.mxu0 %v1514
  %2249 = vmatpush.bf16.msra.mxu0 %v1510
  %2250 = vmatpush.bf16.msra.mxu0 %v1506
  %2251 = vmatmul.bf16.gmra.mxu0 %v275
  %v2252 = vpop.f32.mrf.mxu0
  %v2253 = vadd.f32 %v2239, %v2252
  %v2254 = vpop.f32.mrf.mxu0
  %v2255 = vadd.f32 %v2241, %v2254
  %2256 = vdwg.mxu0
  %2257 = vmatpush.bf16.msra.mxu0 %v1566
  %2258 = vmatpush.bf16.msra.mxu0 %v1562
  %2259 = vmatpush.bf16.msra.mxu0 %v1558
  %2260 = vmatpush.bf16.msra.mxu0 %v1554
  %2261 = vmatpush.bf16.msra.mxu0 %v1550
  %2262 = vmatpush.bf16.msra.mxu0 %v1546
  %2263 = vmatpush.bf16.msra.mxu0 %v1542
  %2264 = vmatpush.bf16.msra.mxu0 %v1538
  %2265 = vmatmul.bf16.gmra.mxu0 %v276
  %v2266 = vpop.f32.mrf.mxu0
  %v2267 = vadd.f32 %v2253, %v2266
  %v2268 = vpop.f32.mrf.mxu0
  %v2269 = vadd.f32 %v2255, %v2268
  %2270 = vdwg.mxu0
  %v2271 = vpack.c.bf16 %v2043, %v1931
  %v2272 = vpack.c.bf16 %v2267, %v2155
  %v2273 = vpack.c.bf16 %v2045, %v1933
  %v2274 = vpack.c.bf16 %v2269, %v2157
  %v2275 = vunpack.c.l.bf16 %v2271
  %v2276 = vunpack.c.h.bf16 %v2271
  %v2277 = vunpack.c.l.bf16 %v2272
  %v2278 = vunpack.c.h.bf16 %v2272
  %v2279 = vunpack.c.l.bf16 %v2273
  %v2280 = vunpack.c.h.bf16 %v2273
  %v2281 = vunpack.c.l.bf16 %v2274
  %v2282 = vunpack.c.h.bf16 %v2274
  %v2283 = vmax.f32 %v2275, 0.0
  %v2284 = vmax.f32 %v2276, 0.0
  %v2285 = vmax.f32 %v2277, 0.0
  %v2286 = vmax.f32 %v2278, 0.0
  %v2287 = vmax.f32 %v2279, 0.0
  %v2288 = vmax.f32 %v2280, 0.0
  %v2289 = vmax.f32 %v2281, 0.0
  %v2290 = vmax.f32 %v2282, 0.0
  %v2291 = vpack.c.bf16 %v2287, %v2283
  %v2292 = vpack.c.bf16 %v2288, %v2284
  %v2293 = vpack.c.bf16 %v2289, %v2285
  %v2294 = vpack.c.bf16 %v2290, %v2286
  %v2295 = vld [vmem:[%s7] sm:$0xf]
  %v2296 = vld [vmem:[%s7 + $0x4] sm:$0xf]
  %v2297 = vld [vmem:[%s7 + $0x8] sm:$0xf]
  %v2298 = vld [vmem:[%s7 + $0xc] sm:$0xf]
  %v2299 = vld [vmem:[%s7 + $0x10] sm:$0xf]
  %v2300 = vld [vmem:[%s7 + $0x14] sm:$0xf]
  %v2301 = vld [vmem:[%s7 + $0x18] sm:$0xf]
  %v2302 = vld [vmem:[%s7 + $0x1c] sm:$0xf]
  %v2303 = vld [vmem:[%s7 + $0x20] sm:$0xf]
  %v2304 = vld [vmem:[%s7 + $0x24] sm:$0xf]
  %v2305 = vld [vmem:[%s7 + $0x28] sm:$0xf]
  %v2306 = vld [vmem:[%s7 + $0x2c] sm:$0xf]
  %v2307 = vld [vmem:[%s7 + $0x30] sm:$0xf]
  %v2308 = vld [vmem:[%s7 + $0x34] sm:$0xf]
  %v2309 = vld [vmem:[%s7 + $0x38] sm:$0xf]
  %v2310 = vld [vmem:[%s7 + $0x3c] sm:$0xf]
  %v2311 = vld [vmem:[%s7 + $0x40] sm:$0xf]
  %v2312 = vld [vmem:[%s7 + $0x44] sm:$0xf]
  %v2313 = vld [vmem:[%s7 + $0x48] sm:$0xf]
  %v2314 = vld [vmem:[%s7 + $0x4c] sm:$0xf]
  %v2315 = vld [vmem:[%s7 + $0x50] sm:$0xf]
  %v2316 = vld [vmem:[%s7 + $0x54] sm:$0xf]
  %v2317 = vld [vmem:[%s7 + $0x58] sm:$0xf]
  %v2318 = vld [vmem:[%s7 + $0x5c] sm:$0xf]
  %v2319 = vld [vmem:[%s7 + $0x60] sm:$0xf]
  %v2320 = vld [vmem:[%s7 + $0x64] sm:$0xf]
  %v2321 = vld [vmem:[%s7 + $0x68] sm:$0xf]
  %v2322 = vld [vmem:[%s7 + $0x6c] sm:$0xf]
  %v2323 = vld [vmem:[%s7 + $0x70] sm:$0xf]
  %v2324 = vld [vmem:[%s7 + $0x74] sm:$0xf]
  %v2325 = vld [vmem:[%s7 + $0x78] sm:$0xf]
  %v2326 = vld [vmem:[%s7 + $0x7c] sm:$0xf]
  %v2327 = vld [vmem:[%s7 + $0x80] sm:$0xf]
  %v2328 = vld [vmem:[%s7 + $0x84] sm:$0xf]
  %v2329 = vld [vmem:[%s7 + $0x88] sm:$0xf]
  %v2330 = vld [vmem:[%s7 + $0x8c] sm:$0xf]
  %v2331 = vld [vmem:[%s7 + $0x90] sm:$0xf]
  %v2332 = vld [vmem:[%s7 + $0x94] sm:$0xf]
  %v2333 = vld [vmem:[%s7 + $0x98] sm:$0xf]
  %v2334 = vld [vmem:[%s7 + $0x9c] sm:$0xf]
  %v2335 = vld [vmem:[%s7 + $0xa0] sm:$0xf]
  %v2336 = vld [vmem:[%s7 + $0xa4] sm:$0xf]
  %v2337 = vld [vmem:[%s7 + $0xa8] sm:$0xf]
  %v2338 = vld [vmem:[%s7 + $0xac] sm:$0xf]
  %v2339 = vld [vmem:[%s7 + $0xb0] sm:$0xf]
  %v2340 = vld [vmem:[%s7 + $0xb4] sm:$0xf]
  %v2341 = vld [vmem:[%s7 + $0xb8] sm:$0xf]
  %v2342 = vld [vmem:[%s7 + $0xbc] sm:$0xf]
  %v2343 = vld [vmem:[%s7 + $0xc0] sm:$0xf]
  %v2344 = vld [vmem:[%s7 + $0xc4] sm:$0xf]
  %v2345 = vld [vmem:[%s7 + $0xc8] sm:$0xf]
  %v2346 = vld [vmem:[%s7 + $0xcc] sm:$0xf]
  %v2347 = vld [vmem:[%s7 + $0xd0] sm:$0xf]
  %v2348 = vld [vmem:[%s7 + $0xd4] sm:$0xf]
  %v2349 = vld [vmem:[%s7 + $0xd8] sm:$0xf]
  %v2350 = vld [vmem:[%s7 + $0xdc] sm:$0xf]
  %v2351 = vld [vmem:[%s7 + $0xe0] sm:$0xf]
  %v2352 = vld [vmem:[%s7 + $0xe4] sm:$0xf]
  %v2353 = vld [vmem:[%s7 + $0xe8] sm:$0xf]
  %v2354 = vld [vmem:[%s7 + $0xec] sm:$0xf]
  %v2355 = vld [vmem:[%s7 + $0xf0] sm:$0xf]
  %v2356 = vld [vmem:[%s7 + $0xf4] sm:$0xf]
  %v2357 = vld [vmem:[%s7 + $0xf8] sm:$0xf]
  %v2358 = vld [vmem:[%s7 + $0xfc] sm:$0xf]
  %v2359 = vld [vmem:[%s8] sm:$0x1]
  %v2361 = vperm.slane %v2359, 0
  %v2427 = vunpack.c.l.b16 %v2295
  %v2428 = vunpack.c.l.b16 %v2296
  %v2429 = vunpack.c.l.b16 %v2297
  %v2430 = vunpack.c.l.b16 %v2298
  %v2431 = vunpack.c.l.b16 %v2299
  %v2432 = vunpack.c.l.b16 %v2300
  %v2433 = vunpack.c.l.b16 %v2301
  %v2434 = vunpack.c.l.b16 %v2302
  %v2435 = vunpack.c.l.b16 %v2303
  %v2436 = vunpack.c.l.b16 %v2304
  %v2437 = vunpack.c.l.b16 %v2305
  %v2438 = vunpack.c.l.b16 %v2306
  %v2439 = vunpack.c.l.b16 %v2307
  %v2440 = vunpack.c.l.b16 %v2308
  %v2441 = vunpack.c.l.b16 %v2309
  %v2442 = vunpack.c.l.b16 %v2310
  %v2443 = vunpack.c.l.b16 %v2311
  %v2444 = vunpack.c.l.b16 %v2312
  %v2445 = vunpack.c.l.b16 %v2313
  %v2446 = vunpack.c.l.b16 %v2314
  %v2447 = vunpack.c.l.b16 %v2315
  %v2448 = vunpack.c.l.b16 %v2316
  %v2449 = vunpack.c.l.b16 %v2317
  %v2450 = vunpack.c.l.b16 %v2318
  %v2451 = vunpack.c.l.b16 %v2319
  %v2452 = vunpack.c.l.b16 %v2320
  %v2453 = vunpack.c.l.b16 %v2321
  %v2454 = vunpack.c.l.b16 %v2322
  %v2455 = vunpack.c.l.b16 %v2323
  %v2456 = vunpack.c.l.b16 %v2324
  %v2457 = vunpack.c.l.b16 %v2325
  %v2458 = vunpack.c.l.b16 %v2326
  %v2459 = vunpack.c.l.b16 %v2327
  %v2460 = vunpack.c.l.b16 %v2328
  %v2461 = vunpack.c.l.b16 %v2329
  %v2462 = vunpack.c.l.b16 %v2330
  %v2463 = vunpack.c.l.b16 %v2331
  %v2464 = vunpack.c.l.b16 %v2332
  %v2465 = vunpack.c.l.b16 %v2333
  %v2466 = vunpack.c.l.b16 %v2334
  %v2467 = vunpack.c.l.b16 %v2335
  %v2468 = vunpack.c.l.b16 %v2336
  %v2469 = vunpack.c.l.b16 %v2337
  %v2470 = vunpack.c.l.b16 %v2338
  %v2471 = vunpack.c.l.b16 %v2339
  %v2472 = vunpack.c.l.b16 %v2340
  %v2473 = vunpack.c.l.b16 %v2341
  %v2474 = vunpack.c.l.b16 %v2342
  %v2475 = vunpack.c.l.b16 %v2343
  %v2476 = vunpack.c.l.b16 %v2344
  %v2477 = vunpack.c.l.b16 %v2345
  %v2478 = vunpack.c.l.b16 %v2346
  %v2479 = vunpack.c.l.b16 %v2347
  %v2480 = vunpack.c.l.b16 %v2348
  %v2481 = vunpack.c.l.b16 %v2349
  %v2482 = vunpack.c.l.b16 %v2350
  %v2483 = vunpack.c.l.b16 %v2351
  %v2484 = vunpack.c.l.b16 %v2352
  %v2485 = vunpack.c.l.b16 %v2353
  %v2486 = vunpack.c.l.b16 %v2354
  %v2487 = vunpack.c.l.b16 %v2355
  %v2488 = vunpack.c.l.b16 %v2356
  %v2489 = vunpack.c.l.b16 %v2357
  %v2490 = vunpack.c.l.b16 %v2358
  %v2491 = vpack.c.b16 %v2428, %v2427
  %v2492 = vpack.c.b16 %v2430, %v2429
  %v2493 = vpack.c.b16 %v2432, %v2431
  %v2494 = vpack.c.b16 %v2434, %v2433
  %v2495 = vpack.c.b16 %v2436, %v2435
  %v2496 = vpack.c.b16 %v2438, %v2437
  %v2497 = vpack.c.b16 %v2440, %v2439
  %v2498 = vpack.c.b16 %v2442, %v2441
  %v2499 = vpack.c.b16 %v2444, %v2443
  %v2500 = vpack.c.b16 %v2446, %v2445
  %v2501 = vpack.c.b16 %v2448, %v2447
  %v2502 = vpack.c.b16 %v2450, %v2449
  %v2503 = vpack.c.b16 %v2452, %v2451
  %v2504 = vpack.c.b16 %v2454, %v2453
  %v2505 = vpack.c.b16 %v2456, %v2455
  %v2506 = vpack.c.b16 %v2458, %v2457
  %v2507 = vpack.c.b16 %v2460, %v2459
  %v2508 = vpack.c.b16 %v2462, %v2461
  %v2509 = vpack.c.b16 %v2464, %v2463
  %v2510 = vpack.c.b16 %v2466, %v2465
  %v2511 = vpack.c.b16 %v2468, %v2467
  %v2512 = vpack.c.b16 %v2470, %v2469
  %v2513 = vpack.c.b16 %v2472, %v2471
  %v2514 = vpack.c.b16 %v2474, %v2473
  %v2515 = vpack.c.b16 %v2476, %v2475
  %v2516 = vpack.c.b16 %v2478, %v2477
  %v2517 = vpack.c.b16 %v2480, %v2479
  %v2518 = vpack.c.b16 %v2482, %v2481
  %v2519 = vpack.c.b16 %v2484, %v2483
  %v2520 = vpack.c.b16 %v2486, %v2485
  %v2521 = vpack.c.b16 %v2488, %v2487
  %v2522 = vpack.c.b16 %v2490, %v2489
  %2555 = vmatpush.bf16.msra.mxu0 %v2498
  %2556 = vmatpush.bf16.msra.mxu0 %v2497
  %2557 = vmatpush.bf16.msra.mxu0 %v2496
  %2558 = vmatpush.bf16.msra.mxu0 %v2495
  %2559 = vmatpush.bf16.msra.mxu0 %v2494
  %2560 = vmatpush.bf16.msra.mxu0 %v2493
  %2561 = vmatpush.bf16.msra.mxu0 %v2492
  %2562 = vmatpush.bf16.msra.mxu0 %v2491
  %2563 = vmatmul.bf16.gmra.mxu0 %v2291
  %v2564 = vpop.f32.mrf.mxu0
  %v2565 = vadd.f32 %v2361, %v2564
  %v2566 = vpop.f32.mrf.mxu0
  %v2567 = vadd.f32 %v2361, %v2566
  %2568 = vdwg.mxu0
  %2569 = vmatpush.bf16.msra.mxu0 %v2506
  %2570 = vmatpush.bf16.msra.mxu0 %v2505
  %2571 = vmatpush.bf16.msra.mxu0 %v2504
  %2572 = vmatpush.bf16.msra.mxu0 %v2503
  %2573 = vmatpush.bf16.msra.mxu0 %v2502
  %2574 = vmatpush.bf16.msra.mxu0 %v2501
  %2575 = vmatpush.bf16.msra.mxu0 %v2500
  %2576 = vmatpush.bf16.msra.mxu0 %v2499
  %2577 = vmatmul.bf16.gmra.mxu0 %v2292
  %v2578 = vpop.f32.mrf.mxu0
  %v2579 = vadd.f32 %v2565, %v2578
  %v2580 = vpop.f32.mrf.mxu0
  %v2581 = vadd.f32 %v2567, %v2580
  %2582 = vdwg.mxu0
  %2583 = vmatpush.bf16.msra.mxu0 %v2514
  %2584 = vmatpush.bf16.msra.mxu0 %v2513
  %2585 = vmatpush.bf16.msra.mxu0 %v2512
  %2586 = vmatpush.bf16.msra.mxu0 %v2511
  %2587 = vmatpush.bf16.msra.mxu0 %v2510
  %2588 = vmatpush.bf16.msra.mxu0 %v2509
  %2589 = vmatpush.bf16.msra.mxu0 %v2508
  %2590 = vmatpush.bf16.msra.mxu0 %v2507
  %2591 = vmatmul.bf16.gmra.mxu0 %v2293
  %v2592 = vpop.f32.mrf.mxu0
  %v2593 = vadd.f32 %v2579, %v2592
  %v2594 = vpop.f32.mrf.mxu0
  %v2595 = vadd.f32 %v2581, %v2594
  %2596 = vdwg.mxu0
  %2597 = vmatpush.bf16.msra.mxu0 %v2522
  %2598 = vmatpush.bf16.msra.mxu0 %v2521
  %2599 = vmatpush.bf16.msra.mxu0 %v2520
  %2600 = vmatpush.bf16.msra.mxu0 %v2519
  %2601 = vmatpush.bf16.msra.mxu0 %v2518
  %2602 = vmatpush.bf16.msra.mxu0 %v2517
  %2603 = vmatpush.bf16.msra.mxu0 %v2516
  %2604 = vmatpush.bf16.msra.mxu0 %v2515
  %2605 = vmatmul.bf16.gmra.mxu0 %v2294
  %v2606 = vpop.f32.mrf.mxu0
  %v2607 = vadd.f32 %v2593, %v2606
  %v2608 = vpop.f32.mrf.mxu0
  %v2609 = vadd.f32 %v2595, %v2608
  %2610 = vdwg.mxu0
  %v2611 = vpack.c.bf16 %v2607, %v2607
  %v2612 = vpack.c.bf16 %v2609, %v2609
  %v2613 = vunpack.c.l.bf16 %v2611
  %v2614 = vunpack.c.l.bf16 %v2612
  %v2615 = vmax.f32 %v2613, 0.0
  %v2616 = vmax.f32 %v2614, 0.0
  %v2617 = vpack.c.bf16 %v2616, %v2615
  %v2618 = vld [vmem:[%s9] sm:$0xf]
  %v2619 = vld [vmem:[%s9 + $0x4] sm:$0xf]
  %v2620 = vld [vmem:[%s9 + $0x8] sm:$0xf]
  %v2621 = vld [vmem:[%s9 + $0xc] sm:$0xf]
  %v2622 = vld [vmem:[%s9 + $0x10] sm:$0xf]
  %v2623 = vld [vmem:[%s9 + $0x14] sm:$0xf]
  %v2624 = vld [vmem:[%s9 + $0x18] sm:$0xf]
  %v2625 = vld [vmem:[%s9 + $0x1c] sm:$0xf]
  %v2626 = vld [vmem:[%s9 + $0x20] sm:$0xf]
  %v2627 = vld [vmem:[%s9 + $0x24] sm:$0xf]
  %v2628 = vld [vmem:[%s9 + $0x28] sm:$0xf]
  %v2629 = vld [vmem:[%s9 + $0x2c] sm:$0xf]
  %v2630 = vld [vmem:[%s9 + $0x30] sm:$0xf]
  %v2631 = vld [vmem:[%s9 + $0x34] sm:$0xf]
  %v2632 = vld [vmem:[%s9 + $0x38] sm:$0xf]
  %v2633 = vld [vmem:[%s9 + $0x3c] sm:$0xf]
  %v2634 = vld [vmem:[%s10] sm:$0x1]
  %v2636 = vperm.slane %v2634, 0
  %v2654 = vunpack.c.l.b16 %v2618
  %v2655 = vunpack.c.l.b16 %v2619
  %v2656 = vunpack.c.l.b16 %v2620
  %v2657 = vunpack.c.l.b16 %v2621
  %v2658 = vunpack.c.l.b16 %v2622
  %v2659 = vunpack.c.l.b16 %v2623
  %v2660 = vunpack.c.l.b16 %v2624
  %v2661 = vunpack.c.l.b16 %v2625
  %v2662 = vunpack.c.l.b16 %v2626
  %v2663 = vunpack.c.l.b16 %v2627
  %v2664 = vunpack.c.l.b16 %v2628
  %v2665 = vunpack.c.l.b16 %v2629
  %v2666 = vunpack.c.l.b16 %v2630
  %v2667 = vunpack.c.l.b16 %v2631
  %v2668 = vunpack.c.l.b16 %v2632
  %v2669 = vunpack.c.l.b16 %v2633
  %v2670 = vpack.c.b16 %v2655, %v2654
  %v2671 = vpack.c.b16 %v2657, %v2656
  %v2672 = vpack.c.b16 %v2659, %v2658
  %v2673 = vpack.c.b16 %v2661, %v2660
  %v2674 = vpack.c.b16 %v2663, %v2662
  %v2675 = vpack.c.b16 %v2665, %v2664
  %v2676 = vpack.c.b16 %v2667, %v2666
  %v2677 = vpack.c.b16 %v2669, %v2668
  %2686 = vmatpush.bf16.msra.mxu0 %v2677
  %2687 = vmatpush.bf16.msra.mxu0 %v2676
  %2688 = vmatpush.bf16.msra.mxu0 %v2675
  %2689 = vmatpush.bf16.msra.mxu0 %v2674
  %2690 = vmatpush.bf16.msra.mxu0 %v2673
  %2691 = vmatpush.bf16.msra.mxu0 %v2672
  %2692 = vmatpush.bf16.msra.mxu0 %v2671
  %2693 = vmatpush.bf16.msra.mxu0 %v2670
  %2694 = vmatmul.bf16.gmra.mxu0 %v2617
  %v2695 = vpop.f32.mrf.mxu0
  %v2696 = vadd.f32 %v2636, %v2695
  %v2697 = vpop.f32.mrf.mxu0
  %v2698 = vadd.f32 %v2636, %v2697
  %2699 = vdwg.mxu0
  %2700 = vst [vmem:[%s11] sm:$0xff] %v2696
  %2701 = vst [vmem:[%s11 + $0x8] sm:$0xff] %v2698
  // Predicated region
  $region42: #{clasnet_forward.3} parent=0 // pred_check
    _
  $region43: #{clasnet_forward.3} parent=0 // pred_check_branch
    %2703 = sbr.rel (0) target = $region45
  $region44: #{clasnet_forward.3} parent=0 // pred_region
    _
  $region45: #{clasnet_forward.3} parent=0 // pred_fallthru
    _
  // Predicated region
  $region46: #{clasnet_forward.3} parent=0 // pred_check
    _
  $region47: #{clasnet_forward.3} parent=0 // pred_check_branch
    %2705 = sbr.rel (0) target = $region49
  $region48: #{clasnet_forward.3} parent=0 // pred_region
    _
  $region49: #{clasnet_forward.3} parent=0 // pred_fallthru
    _

// kernel: clasnet_forward.2
$region0: #{clasnet_forward.2}
  #allocation0 [shape = 'u32[]', space=smem, size = 0x4, offset = 0x4, fixed_abs, tag = 'smem constant byte address 0x4 - core index']
  #allocation1 [shape = 'u32[72,128]{1,0:T(1,128)}', space=vmem, size = 0x9000, scoped, tag = 'internal scratch']
  #allocation2 [shape = 's32[1]{0}', space=sflag, size = 0x4, scoped, tag = 'scoped memory for clasnet_forward.2']
  #allocation3 [shape = 's32[1]{0:T(128)S(6)}', space=smem, size = 0x200, scoped, tag = 'prefetched SMEM operand 0']
  %s0 = inlined_call_operand.<no memory space> [shape: s32[1], index: 0, kind: input, shape index: {}]
  %s1 = inlined_call_operand.vmem [shape: bf16[16,896], index: 1, kind: input, shape index: {}]
  %s2 = inlined_call_operand.hbm [shape: bf16[896,1024], index: 2, kind: input, shape index: {}]
  %s3 = inlined_call_operand.hbm [shape: f32[1,1024], index: 3, kind: input, shape index: {}]
  %s4 = inlined_call_operand.vmem [shape: f32[16,1024], index: 4, kind: output, shape index: {0}]
  %s5 = inlined_call_operand.vmem [shape: f32[2,1024], index: 5, kind: output, shape index: {1}]
  %6 = xla_tuple %s4, %s5
  %s7 = sld [smem:[#allocation0]]
  $region42: #{clasnet_forward.2} parent=0
    _
  %s9 = ssub.s32 1, %s7
  %s10 = scalar_select 0, %s9, %s7
  %11 = sst [smem:[#allocation3]] %s0
  $region1: #{clasnet_forward.2} parent=0
    #allocation4 [shape = 'u8[1835008]{0}', space=vmem, size = 0x1c0000, scoped, tag = 'input window, operand 2, single buffered']
    #allocation5 [shape = 's32[1]{0}', space=sflag, size = 0x4, scoped, tag = 'scoped memory for clasnet_forward.2']
    #allocation6 [shape = 'u8[4096]{0}', space=vmem, size = 0x1000, scoped, tag = 'input window, operand 3, single buffered']
    #allocation7 [shape = 's32[1]{0}', space=sflag, size = 0x4, scoped, tag = 'scoped memory for clasnet_forward.2']
    %12 = vsyncpa [#allocation5], 0
    %13 = vsyncpa [#allocation7], 0
    // Predicated region
    $region2: #{clasnet_forward.2} parent=1 // pred_check
      _
    $region3: #{clasnet_forward.2} parent=1 // pred_check_branch
      %15 = sbr.rel (0) target = $region5
    $region4: #{clasnet_forward.2} parent=1 // pred_region
      _
    $region5: #{clasnet_forward.2} parent=1 // pred_fallthru
      _
    // Predicated region
    $region6: #{clasnet_forward.2} parent=1 // pred_check
      _
    $region7: #{clasnet_forward.2} parent=1 // pred_check_branch
      %17 = sbr.rel (0) target = $region9
    $region8: #{clasnet_forward.2} parent=1 // pred_region
      %19 = vsyncadd [#allocation5], 0
      %s20 = sshll.u32 %s2, 4
      %s21 = int_to_ptr.hbm [resolvable:$true] %s20
      %s22 = sshll.u32 [#allocation4], 4
      %s23 = int_to_ptr.vmem [resolvable:$true] %s22
      %28 = dma.hbm_to_vmem [thread:$0]  %s21, 57344, %s23, [#allocation5], 512, 512, 32
    $region9: #{clasnet_forward.2} parent=1 // pred_fallthru
      _
    // Predicated region
    $region10: #{clasnet_forward.2} parent=1 // pred_check
      _
    $region11: #{clasnet_forward.2} parent=1 // pred_check_branch
      %30 = sbr.rel (0) target = $region13
    $region12: #{clasnet_forward.2} parent=1 // pred_region
      %32 = vsyncadd [#allocation7], 0
      %s34 = sshll.u32 %s3, 4
      %s35 = int_to_ptr.hbm [resolvable:$true] %s34
      %s36 = sshll.u32 [#allocation6], 4
      %s37 = int_to_ptr.vmem [resolvable:$true] %s36
      %39 = dma.hbm_to_vmem [thread:$0]  %s35, 128, %s37, [#allocation7]
    $region13: #{clasnet_forward.2} parent=1 // pred_fallthru
      _
    // Predicated region
    $region14: #{clasnet_forward.2} parent=1 // pred_check
      _
    $region15: #{clasnet_forward.2} parent=1 // pred_check_branch
      %41 = sbr.rel (0) target = $region17
    $region16: #{clasnet_forward.2} parent=1 // pred_region
      %43 = dma.done [#allocation5], 57344
    $region17: #{clasnet_forward.2} parent=1 // pred_fallthru
      _
    // Predicated region
    $region18: #{clasnet_forward.2} parent=1 // pred_check
      _
    $region19: #{clasnet_forward.2} parent=1 // pred_check_branch
      %45 = sbr.rel (0) target = $region21
    $region20: #{clasnet_forward.2} parent=1 // pred_region
      %47 = dma.done [#allocation7], 128
    $region21: #{clasnet_forward.2} parent=1 // pred_fallthru
      _
    %v48 = vld [vmem:[%s1] sm:$0xff]
    %v49 = vld [vmem:[%s1 + $0x8] sm:$0xff]
    %v50 = vld [vmem:[%s1 + $0x10] sm:$0xff]
    %v51 = vld [vmem:[%s1 + $0x18] sm:$0xf]
    %v52 = vld [vmem:[%s1 + $0x1c] sm:$0xff]
    %v53 = vld [vmem:[%s1 + $0x24] sm:$0xff]
    %v54 = vld [vmem:[%s1 + $0x2c] sm:$0xff]
    %v55 = vld [vmem:[%s1 + $0x34] sm:$0xf]
    %v56 = vld [vmem:[#allocation4] sm:$0xff]
    %v57 = vld [vmem:[#allocation4 + $0x8] sm:$0xff]
    %v58 = vld [vmem:[#allocation4 + $0x10] sm:$0xff]
    %v59 = vld [vmem:[#allocation4 + $0x18] sm:$0xff]
    %v60 = vld [vmem:[#allocation4 + $0x20] sm:$0xff]
    %v61 = vld [vmem:[#allocation4 + $0x28] sm:$0xff]
    %v62 = vld [vmem:[#allocation4 + $0x30] sm:$0xff]
    %v63 = vld [vmem:[#allocation4 + $0x38] sm:$0xff]
    %v64 = vld [vmem:[#allocation4 + $0x40] sm:$0xff]
    %v65 = vld [vmem:[#allocation4 + $0x48] sm:$0xff]
    %v66 = vld [vmem:[#allocation4 + $0x50] sm:$0xff]
    %v67 = vld [vmem:[#allocation4 + $0x58] sm:$0xff]
    %v68 = vld [vmem:[#allocation4 + $0x60] sm:$0xff]
    %v69 = vld [vmem:[#allocation4 + $0x68] sm:$0xff]
    %v70 = vld [vmem:[#allocation4 + $0x70] sm:$0xff]
    %v71 = vld [vmem:[#allocation4 + $0x78] sm:$0xff]
    %v72 = vld [vmem:[#allocation4 + $0x80] sm:$0xff]
    %v73 = vld [vmem:[#allocation4 + $0x88] sm:$0xff]
    %v74 = vld [vmem:[#allocation4 + $0x90] sm:$0xff]
    %v75 = vld [vmem:[#allocation4 + $0x98] sm:$0xff]
    %v76 = vld [vmem:[#allocation4 + $0xa0] sm:$0xff]
    %v77 = vld [vmem:[#allocation4 + $0xa8] sm:$0xff]
    %v78 = vld [vmem:[#allocation4 + $0xb0] sm:$0xff]
    %v79 = vld [vmem:[#allocation4 + $0xb8] sm:$0xff]
    %v80 = vld [vmem:[#allocation4 + $0xc0] sm:$0xff]
    %v81 = vld [vmem:[#allocation4 + $0xc8] sm:$0xff]
    %v82 = vld [vmem:[#allocation4 + $0xd0] sm:$0xff]
    %v83 = vld [vmem:[#allocation4 + $0xd8] sm:$0xff]
    %v84 = vld [vmem:[#allocation4 + $0xe0] sm:$0xff]
    %v85 = vld [vmem:[#allocation4 + $0xe8] sm:$0xff]
    %v86 = vld [vmem:[#allocation4 + $0xf0] sm:$0xff]
    %v87 = vld [vmem:[#allocation4 + $0xf8] sm:$0xff]
    %v88 = vld [vmem:[#allocation4 + $0x100] sm:$0xff]
    %v89 = vld [vmem:[#allocation4 + $0x108] sm:$0xff]
    %v90 = vld [vmem:[#allocation4 + $0x110] sm:$0xff]
    %v91 = vld [vmem:[#allocation4 + $0x118] sm:$0xff]
    %v92 = vld [vmem:[#allocation4 + $0x120] sm:$0xff]
    %v93 = vld [vmem:[#allocation4 + $0x128] sm:$0xff]
    %v94 = vld [vmem:[#allocation4 + $0x130] sm:$0xff]
    %v95 = vld [vmem:[#allocation4 + $0x138] sm:$0xff]
    %v96 = vld [vmem:[#allocation4 + $0x140] sm:$0xff]
    %v97 = vld [vmem:[#allocation4 + $0x148] sm:$0xff]
    %v98 = vld [vmem:[#allocation4 + $0x150] sm:$0xff]
    %v99 = vld [vmem:[#allocation4 + $0x158] sm:$0xff]
    %v100 = vld [vmem:[#allocation4 + $0x160] sm:$0xff]
    %v101 = vld [vmem:[#allocation4 + $0x168] sm:$0xff]
    %v102 = vld [vmem:[#allocation4 + $0x170] sm:$0xff]
    %v103 = vld [vmem:[#allocation4 + $0x178] sm:$0xff]
    %v104 = vld [vmem:[#allocation4 + $0x180] sm:$0xff]
    %v105 = vld [vmem:[#allocation4 + $0x188] sm:$0xff]
    %v106 = vld [vmem:[#allocation4 + $0x190] sm:$0xff]
    %v107 = vld [vmem:[#allocation4 + $0x198] sm:$0xff]
    %v108 = vld [vmem:[#allocation4 + $0x1a0] sm:$0xff]
    %v109 = vld [vmem:[#allocation4 + $0x1a8] sm:$0xff]
    %v110 = vld [vmem:[#allocation4 + $0x1b0] sm:$0xff]
    %v111 = vld [vmem:[#allocation4 + $0x1b8] sm:$0xff]
    %v112 = vld [vmem:[#allocation4 + $0x1c0] sm:$0xff]
    %v113 = vld [vmem:[#allocation4 + $0x1c8] sm:$0xff]
    %v114 = vld [vmem:[#allocation4 + $0x1d0] sm:$0xff]
    %v115 = vld [vmem:[#allocation4 + $0x1d8] sm:$0xff]
    %v116 = vld [vmem:[#allocation4 + $0x1e0] sm:$0xff]
    %v117 = vld [vmem:[#allocation4 + $0x1e8] sm:$0xff]
    %v118 = vld [vmem:[#allocation4 + $0x1f0] sm:$0xff]
    %v119 = vld [vmem:[#allocation4 + $0x1f8] sm:$0xff]
    %v120 = vld [vmem:[#allocation4 + $0x200] sm:$0xff]
    %v121 = vld [vmem:[#allocation4 + $0x208] sm:$0xff]
    %v122 = vld [vmem:[#allocation4 + $0x210] sm:$0xff]
    %v123 = vld [vmem:[#allocation4 + $0x218] sm:$0xff]
    %v124 = vld [vmem:[#allocation4 + $0x220] sm:$0xff]
    %v125 = vld [vmem:[#allocation4 + $0x228] sm:$0xff]
    %v126 = vld [vmem:[#allocation4 + $0x230] sm:$0xff]
    %v127 = vld [vmem:[#allocation4 + $0x238] sm:$0xff]
    %v128 = vld [vmem:[#allocation4 + $0x240] sm:$0xff]
    %v129 = vld [vmem:[#allocation4 + $0x248] sm:$0xff]
    %v130 = vld [vmem:[#allocation4 + $0x250] sm:$0xff]
    %v131 = vld [vmem:[#allocation4 + $0x258] sm:$0xff]
    %v132 = vld [vmem:[#allocation4 + $0x260] sm:$0xff]
    %v133 = vld [vmem:[#allocation4 + $0x268] sm:$0xff]
    %v134 = vld [vmem:[#allocation4 + $0x270] sm:$0xff]
    %v135 = vld [vmem:[#allocation4 + $0x278] sm:$0xff]
    %v136 = vld [vmem:[#allocation4 + $0x280] sm:$0xff]
    %v137 = vld [vmem:[#allocation4 + $0x288] sm:$0xff]
    %v138 = vld [vmem:[#allocation4 + $0x290] sm:$0xff]
    %v139 = vld [vmem:[#allocation4 + $0x298] sm:$0xff]
    %v140 = vld [vmem:[#allocation4 + $0x2a0] sm:$0xff]
    %v141 = vld [vmem:[#allocation4 + $0x2a8] sm:$0xff]
    %v142 = vld [vmem:[#allocation4 + $0x2b0] sm:$0xff]
    %v143 = vld [vmem:[#allocation4 + $0x2b8] sm:$0xff]
    %v144 = vld [vmem:[#allocation4 + $0x2c0] sm:$0xff]
    %v145 = vld [vmem:[#allocation4 + $0x2c8] sm:$0xff]
    %v146 = vld [vmem:[#allocation4 + $0x2d0] sm:$0xff]
    %v147 = vld [vmem:[#allocation4 + $0x2d8] sm:$0xff]
    %v148 = vld [vmem:[#allocation4 + $0x2e0] sm:$0xff]
    %v149 = vld [vmem:[#allocation4 + $0x2e8] sm:$0xff]
    %v150 = vld [vmem:[#allocation4 + $0x2f0] sm:$0xff]
    %v151 = vld [vmem:[#allocation4 + $0x2f8] sm:$0xff]
    %v152 = vld [vmem:[#allocation4 + $0x300] sm:$0xff]
    %v153 = vld [vmem:[#allocation4 + $0x308] sm:$0xff]
    %v154 = vld [vmem:[#allocation4 + $0x310] sm:$0xff]
    %v155 = vld [vmem:[#allocation4 + $0x318] sm:$0xff]
    %v156 = vld [vmem:[#allocation4 + $0x320] sm:$0xff]
    %v157 = vld [vmem:[#allocation4 + $0x328] sm:$0xff]
    %v158 = vld [vmem:[#allocation4 + $0x330] sm:$0xff]
    %v159 = vld [vmem:[#allocation4 + $0x338] sm:$0xff]
    %v160 = vld [vmem:[#allocation4 + $0x340] sm:$0xff]
    %v161 = vld [vmem:[#allocation4 + $0x348] sm:$0xff]
    %v162 = vld [vmem:[#allocation4 + $0x350] sm:$0xff]
    %v163 = vld [vmem:[#allocation4 + $0x358] sm:$0xff]
    %v164 = vld [vmem:[#allocation4 + $0x360] sm:$0xff]
    %v165 = vld [vmem:[#allocation4 + $0x368] sm:$0xff]
    %v166 = vld [vmem:[#allocation4 + $0x370] sm:$0xff]
    %v167 = vld [vmem:[#allocation4 + $0x378] sm:$0xff]
    %v168 = vld [vmem:[#allocation4 + $0x380] sm:$0xff]
    %v169 = vld [vmem:[#allocation4 + $0x388] sm:$0xff]
    %v170 = vld [vmem:[#allocation4 + $0x390] sm:$0xff]
    %v171 = vld [vmem:[#allocation4 + $0x398] sm:$0xff]
    %v172 = vld [vmem:[#allocation4 + $0x3a0] sm:$0xff]
    %v173 = vld [vmem:[#allocation4 + $0x3a8] sm:$0xff]
    %v174 = vld [vmem:[#allocation4 + $0x3b0] sm:$0xff]
    %v175 = vld [vmem:[#allocation4 + $0x3b8] sm:$0xff]
    %v176 = vld [vmem:[#allocation4 + $0x3c0] sm:$0xff]
    %v177 = vld [vmem:[#allocation4 + $0x3c8] sm:$0xff]
    %v178 = vld [vmem:[#allocation4 + $0x3d0] sm:$0xff]
    %v179 = vld [vmem:[#allocation4 + $0x3d8] sm:$0xff]
    %v180 = vld [vmem:[#allocation4 + $0x3e0] sm:$0xff]
    %v181 = vld [vmem:[#allocation4 + $0x3e8] sm:$0xff]
    %v182 = vld [vmem:[#allocation4 + $0x3f0] sm:$0xff]
    %v183 = vld [vmem:[#allocation4 + $0x3f8] sm:$0xff]
    %v184 = vld [vmem:[#allocation4 + $0x400] sm:$0xff]
    %v185 = vld [vmem:[#allocation4 + $0x408] sm:$0xff]
    %v186 = vld [vmem:[#allocation4 + $0x410] sm:$0xff]
    %v187 = vld [vmem:[#allocation4 + $0x418] sm:$0xff]
    %v188 = vld [vmem:[#allocation4 + $0x420] sm:$0xff]
    %v189 = vld [vmem:[#allocation4 + $0x428] sm:$0xff]
    %v190 = vld [vmem:[#allocation4 + $0x430] sm:$0xff]
    %v191 = vld [vmem:[#allocation4 + $0x438] sm:$0xff]
    %v192 = vld [vmem:[#allocation4 + $0x440] sm:$0xff]
    %v193 = vld [vmem:[#allocation4 + $0x448] sm:$0xff]
    %v194 = vld [vmem:[#allocation4 + $0x450] sm:$0xff]
    %v195 = vld [vmem:[#allocation4 + $0x458] sm:$0xff]
    %v196 = vld [vmem:[#allocation4 + $0x460] sm:$0xff]
    %v197 = vld [vmem:[#allocation4 + $0x468] sm:$0xff]
    %v198 = vld [vmem:[#allocation4 + $0x470] sm:$0xff]
    %v199 = vld [vmem:[#allocation4 + $0x478] sm:$0xff]
    %v200 = vld [vmem:[#allocation4 + $0x480] sm:$0xff]
    %v201 = vld [vmem:[#allocation4 + $0x488] sm:$0xff]
    %v202 = vld [vmem:[#allocation4 + $0x490] sm:$0xff]
    %v203 = vld [vmem:[#allocation4 + $0x498] sm:$0xff]
    %v204 = vld [vmem:[#allocation4 + $0x4a0] sm:$0xff]
    %v205 = vld [vmem:[#allocation4 + $0x4a8] sm:$0xff]
    %v206 = vld [vmem:[#allocation4 + $0x4b0] sm:$0xff]
    %v207 = vld [vmem:[#allocation4 + $0x4b8] sm:$0xff]
    %v208 = vld [vmem:[#allocation4 + $0x4c0] sm:$0xff]
    %v209 = vld [vmem:[#allocation4 + $0x4c8] sm:$0xff]
    %v210 = vld [vmem:[#allocation4 + $0x4d0] sm:$0xff]
    %v211 = vld [vmem:[#allocation4 + $0x4d8] sm:$0xff]
    %v212 = vld [vmem:[#allocation4 + $0x4e0] sm:$0xff]
    %v213 = vld [vmem:[#allocation4 + $0x4e8] sm:$0xff]
    %v214 = vld [vmem:[#allocation4 + $0x4f0] sm:$0xff]
    %v215 = vld [vmem:[#allocation4 + $0x4f8] sm:$0xff]
    %v216 = vld [vmem:[#allocation4 + $0x500] sm:$0xff]
    %v217 = vld [vmem:[#allocation4 + $0x508] sm:$0xff]
    %v218 = vld [vmem:[#allocation4 + $0x510] sm:$0xff]
    %v219 = vld [vmem:[#allocation4 + $0x518] sm:$0xff]
    %v220 = vld [vmem:[#allocation4 + $0x520] sm:$0xff]
    %v221 = vld [vmem:[#allocation4 + $0x528] sm:$0xff]
    %v222 = vld [vmem:[#allocation4 + $0x530] sm:$0xff]
    %v223 = vld [vmem:[#allocation4 + $0x538] sm:$0xff]
    %v224 = vld [vmem:[#allocation4 + $0x540] sm:$0xff]
    %v225 = vld [vmem:[#allocation4 + $0x548] sm:$0xff]
    %v226 = vld [vmem:[#allocation4 + $0x550] sm:$0xff]
    %v227 = vld [vmem:[#allocation4 + $0x558] sm:$0xff]
    %v228 = vld [vmem:[#allocation4 + $0x560] sm:$0xff]
    %v229 = vld [vmem:[#allocation4 + $0x568] sm:$0xff]
    %v230 = vld [vmem:[#allocation4 + $0x570] sm:$0xff]
    %v231 = vld [vmem:[#allocation4 + $0x578] sm:$0xff]
    %v232 = vld [vmem:[#allocation4 + $0x580] sm:$0xff]
    %v233 = vld [vmem:[#allocation4 + $0x588] sm:$0xff]
    %v234 = vld [vmem:[#allocation4 + $0x590] sm:$0xff]
    %v235 = vld [vmem:[#allocation4 + $0x598] sm:$0xff]
    %v236 = vld [vmem:[#allocation4 + $0x5a0] sm:$0xff]
    %v237 = vld [vmem:[#allocation4 + $0x5a8] sm:$0xff]
    %v238 = vld [vmem:[#allocation4 + $0x5b0] sm:$0xff]
    %v239 = vld [vmem:[#allocation4 + $0x5b8] sm:$0xff]
    %v240 = vld [vmem:[#allocation4 + $0x5c0] sm:$0xff]
    %v241 = vld [vmem:[#allocation4 + $0x5c8] sm:$0xff]
    %v242 = vld [vmem:[#allocation4 + $0x5d0] sm:$0xff]
    %v243 = vld [vmem:[#allocation4 + $0x5d8] sm:$0xff]
    %v244 = vld [vmem:[#allocation4 + $0x5e0] sm:$0xff]
    %v245 = vld [vmem:[#allocation4 + $0x5e8] sm:$0xff]
    %v246 = vld [vmem:[#allocation4 + $0x5f0] sm:$0xff]
    %v247 = vld [vmem:[#allocation4 + $0x5f8] sm:$0xff]
    %v248 = vld [vmem:[#allocation4 + $0x600] sm:$0xff]
    %v249 = vld [vmem:[#allocation4 + $0x608] sm:$0xff]
    %v250 = vld [vmem:[#allocation4 + $0x610] sm:$0xff]
    %v251 = vld [vmem:[#allocation4 + $0x618] sm:$0xff]
    %v252 = vld [vmem:[#allocation4 + $0x620] sm:$0xff]
    %v253 = vld [vmem:[#allocation4 + $0x628] sm:$0xff]
    %v254 = vld [vmem:[#allocation4 + $0x630] sm:$0xff]
    %v255 = vld [vmem:[#allocation4 + $0x638] sm:$0xff]
    %v256 = vld [vmem:[#allocation4 + $0x640] sm:$0xff]
    %v257 = vld [vmem:[#allocation4 + $0x648] sm:$0xff]
    %v258 = vld [vmem:[#allocation4 + $0x650] sm:$0xff]
    %v259 = vld [vmem:[#allocation4 + $0x658] sm:$0xff]
    %v260 = vld [vmem:[#allocation4 + $0x660] sm:$0xff]
    %v261 = vld [vmem:[#allocation4 + $0x668] sm:$0xff]
    %v262 = vld [vmem:[#allocation4 + $0x670] sm:$0xff]
    %v263 = vld [vmem:[#allocation4 + $0x678] sm:$0xff]
    %v264 = vld [vmem:[#allocation4 + $0x680] sm:$0xff]
    %v265 = vld [vmem:[#allocation4 + $0x688] sm:$0xff]
    %v266 = vld [vmem:[#allocation4 + $0x690] sm:$0xff]
    %v267 = vld [vmem:[#allocation4 + $0x698] sm:$0xff]
    %v268 = vld [vmem:[#allocation4 + $0x6a0] sm:$0xff]
    %v269 = vld [vmem:[#allocation4 + $0x6a8] sm:$0xff]
    %v270 = vld [vmem:[#allocation4 + $0x6b0] sm:$0xff]
    %v271 = vld [vmem:[#allocation4 + $0x6b8] sm:$0xff]
    %v272 = vld [vmem:[#allocation4 + $0x6c0] sm:$0xff]
    %v273 = vld [vmem:[#allocation4 + $0x6c8] sm:$0xff]
    %v274 = vld [vmem:[#allocation4 + $0x6d0] sm:$0xff]
    %v275 = vld [vmem:[#allocation4 + $0x6d8] sm:$0xff]
    %v276 = vld [vmem:[#allocation4 + $0x6e0] sm:$0xff]
    %v277 = vld [vmem:[#allocation4 + $0x6e8] sm:$0xff]
    %v278 = vld [vmem:[#allocation4 + $0x6f0] sm:$0xff]
    %v279 = vld [vmem:[#allocation4 + $0x6f8] sm:$0xff]
    %v280 = vld [vmem:[#allocation4 + $0x700] sm:$0xff]
    %v281 = vld [vmem:[#allocation4 + $0x708] sm:$0xff]
    %v282 = vld [vmem:[#allocation4 + $0x710] sm:$0xff]
    %v283 = vld [vmem:[#allocation4 + $0x718] sm:$0xff]
    %v284 = vld [vmem:[#allocation4 + $0x720] sm:$0xff]
    %v285 = vld [vmem:[#allocation4 + $0x728] sm:$0xff]
    %v286 = vld [vmem:[#allocation4 + $0x730] sm:$0xff]
    %v287 = vld [vmem:[#allocation4 + $0x738] sm:$0xff]
    %v288 = vld [vmem:[#allocation4 + $0x740] sm:$0xff]
    %v289 = vld [vmem:[#allocation4 + $0x748] sm:$0xff]
    %v290 = vld [vmem:[#allocation4 + $0x750] sm:$0xff]
    %v291 = vld [vmem:[#allocation4 + $0x758] sm:$0xff]
    %v292 = vld [vmem:[#allocation4 + $0x760] sm:$0xff]
    %v293 = vld [vmem:[#allocation4 + $0x768] sm:$0xff]
    %v294 = vld [vmem:[#allocation4 + $0x770] sm:$0xff]
    %v295 = vld [vmem:[#allocation4 + $0x778] sm:$0xff]
    %v296 = vld [vmem:[#allocation4 + $0x780] sm:$0xff]
    %v297 = vld [vmem:[#allocation4 + $0x788] sm:$0xff]
    %v298 = vld [vmem:[#allocation4 + $0x790] sm:$0xff]
    %v299 = vld [vmem:[#allocation4 + $0x798] sm:$0xff]
    %v300 = vld [vmem:[#allocation4 + $0x7a0] sm:$0xff]
    %v301 = vld [vmem:[#allocation4 + $0x7a8] sm:$0xff]
    %v302 = vld [vmem:[#allocation4 + $0x7b0] sm:$0xff]
    %v303 = vld [vmem:[#allocation4 + $0x7b8] sm:$0xff]
    %v304 = vld [vmem:[#allocation4 + $0x7c0] sm:$0xff]
    %v305 = vld [vmem:[#allocation4 + $0x7c8] sm:$0xff]
    %v306 = vld [vmem:[#allocation4 + $0x7d0] sm:$0xff]
    %v307 = vld [vmem:[#allocation4 + $0x7d8] sm:$0xff]
    %v308 = vld [vmem:[#allocation4 + $0x7e0] sm:$0xff]
    %v309 = vld [vmem:[#allocation4 + $0x7e8] sm:$0xff]
    %v310 = vld [vmem:[#allocation4 + $0x7f0] sm:$0xff]
    %v311 = vld [vmem:[#allocation4 + $0x7f8] sm:$0xff]
    %v312 = vld [vmem:[#allocation4 + $0x800] sm:$0xff]
    %v313 = vld [vmem:[#allocation4 + $0x808] sm:$0xff]
    %v314 = vld [vmem:[#allocation4 + $0x810] sm:$0xff]
    %v315 = vld [vmem:[#allocation4 + $0x818] sm:$0xff]
    %v316 = vld [vmem:[#allocation4 + $0x820] sm:$0xff]
    %v317 = vld [vmem:[#allocation4 + $0x828] sm:$0xff]
    %v318 = vld [vmem:[#allocation4 + $0x830] sm:$0xff]
    %v319 = vld [vmem:[#allocation4 + $0x838] sm:$0xff]
    %v320 = vld [vmem:[#allocation4 + $0x840] sm:$0xff]
    %v321 = vld [vmem:[#allocation4 + $0x848] sm:$0xff]
    %v322 = vld [vmem:[#allocation4 + $0x850] sm:$0xff]
    %v323 = vld [vmem:[#allocation4 + $0x858] sm:$0xff]
    %v324 = vld [vmem:[#allocation4 + $0x860] sm:$0xff]
    %v325 = vld [vmem:[#allocation4 + $0x868] sm:$0xff]
    %v326 = vld [vmem:[#allocation4 + $0x870] sm:$0xff]
    %v327 = vld [vmem:[#allocation4 + $0x878] sm:$0xff]
    %v328 = vld [vmem:[#allocation4 + $0x880] sm:$0xff]
    %v329 = vld [vmem:[#allocation4 + $0x888] sm:$0xff]
    %v330 = vld [vmem:[#allocation4 + $0x890] sm:$0xff]
    %v331 = vld [vmem:[#allocation4 + $0x898] sm:$0xff]
    %v332 = vld [vmem:[#allocation4 + $0x8a0] sm:$0xff]
    %v333 = vld [vmem:[#allocation4 + $0x8a8] sm:$0xff]
    %v334 = vld [vmem:[#allocation4 + $0x8b0] sm:$0xff]
    %v335 = vld [vmem:[#allocation4 + $0x8b8] sm:$0xff]
    %v336 = vld [vmem:[#allocation4 + $0x8c0] sm:$0xff]
    %v337 = vld [vmem:[#allocation4 + $0x8c8] sm:$0xff]
    %v338 = vld [vmem:[#allocation4 + $0x8d0] sm:$0xff]
    %v339 = vld [vmem:[#allocation4 + $0x8d8] sm:$0xff]
    %v340 = vld [vmem:[#allocation4 + $0x8e0] sm:$0xff]
    %v341 = vld [vmem:[#allocation4 + $0x8e8] sm:$0xff]
    %v342 = vld [vmem:[#allocation4 + $0x8f0] sm:$0xff]
    %v343 = vld [vmem:[#allocation4 + $0x8f8] sm:$0xff]
    %v344 = vld [vmem:[#allocation4 + $0x900] sm:$0xff]
    %v345 = vld [vmem:[#allocation4 + $0x908] sm:$0xff]
    %v346 = vld [vmem:[#allocation4 + $0x910] sm:$0xff]
    %v347 = vld [vmem:[#allocation4 + $0x918] sm:$0xff]
    %v348 = vld [vmem:[#allocation4 + $0x920] sm:$0xff]
    %v349 = vld [vmem:[#allocation4 + $0x928] sm:$0xff]
    %v350 = vld [vmem:[#allocation4 + $0x930] sm:$0xff]
    %v351 = vld [vmem:[#allocation4 + $0x938] sm:$0xff]
    %v352 = vld [vmem:[#allocation4 + $0x940] sm:$0xff]
    %v353 = vld [vmem:[#allocation4 + $0x948] sm:$0xff]
    %v354 = vld [vmem:[#allocation4 + $0x950] sm:$0xff]
    %v355 = vld [vmem:[#allocation4 + $0x958] sm:$0xff]
    %v356 = vld [vmem:[#allocation4 + $0x960] sm:$0xff]
    %v357 = vld [vmem:[#allocation4 + $0x968] sm:$0xff]
    %v358 = vld [vmem:[#allocation4 + $0x970] sm:$0xff]
    %v359 = vld [vmem:[#allocation4 + $0x978] sm:$0xff]
    %v360 = vld [vmem:[#allocation4 + $0x980] sm:$0xff]
    %v361 = vld [vmem:[#allocation4 + $0x988] sm:$0xff]
    %v362 = vld [vmem:[#allocation4 + $0x990] sm:$0xff]
    %v363 = vld [vmem:[#allocation4 + $0x998] sm:$0xff]
    %v364 = vld [vmem:[#allocation4 + $0x9a0] sm:$0xff]
    %v365 = vld [vmem:[#allocation4 + $0x9a8] sm:$0xff]
    %v366 = vld [vmem:[#allocation4 + $0x9b0] sm:$0xff]
    %v367 = vld [vmem:[#allocation4 + $0x9b8] sm:$0xff]
    %v368 = vld [vmem:[#allocation4 + $0x9c0] sm:$0xff]
    %v369 = vld [vmem:[#allocation4 + $0x9c8] sm:$0xff]
    %v370 = vld [vmem:[#allocation4 + $0x9d0] sm:$0xff]
    %v371 = vld [vmem:[#allocation4 + $0x9d8] sm:$0xff]
    %v372 = vld [vmem:[#allocation4 + $0x9e0] sm:$0xff]
    %v373 = vld [vmem:[#allocation4 + $0x9e8] sm:$0xff]
    %v374 = vld [vmem:[#allocation4 + $0x9f0] sm:$0xff]
    %v375 = vld [vmem:[#allocation4 + $0x9f8] sm:$0xff]
    %v376 = vld [vmem:[#allocation4 + $0xa00] sm:$0xff]
    %v377 = vld [vmem:[#allocation4 + $0xa08] sm:$0xff]
    %v378 = vld [vmem:[#allocation4 + $0xa10] sm:$0xff]
    %v379 = vld [vmem:[#allocation4 + $0xa18] sm:$0xff]
    %v380 = vld [vmem:[#allocation4 + $0xa20] sm:$0xff]
    %v381 = vld [vmem:[#allocation4 + $0xa28] sm:$0xff]
    %v382 = vld [vmem:[#allocation4 + $0xa30] sm:$0xff]
    %v383 = vld [vmem:[#allocation4 + $0xa38] sm:$0xff]
    %v384 = vld [vmem:[#allocation4 + $0xa40] sm:$0xff]
    %v385 = vld [vmem:[#allocation4 + $0xa48] sm:$0xff]
    %v386 = vld [vmem:[#allocation4 + $0xa50] sm:$0xff]
    %v387 = vld [vmem:[#allocation4 + $0xa58] sm:$0xff]
    %v388 = vld [vmem:[#allocation4 + $0xa60] sm:$0xff]
    %v389 = vld [vmem:[#allocation4 + $0xa68] sm:$0xff]
    %v390 = vld [vmem:[#allocation4 + $0xa70] sm:$0xff]
    %v391 = vld [vmem:[#allocation4 + $0xa78] sm:$0xff]
    %v392 = vld [vmem:[#allocation4 + $0xa80] sm:$0xff]
    %v393 = vld [vmem:[#allocation4 + $0xa88] sm:$0xff]
    %v394 = vld [vmem:[#allocation4 + $0xa90] sm:$0xff]
    %v395 = vld [vmem:[#allocation4 + $0xa98] sm:$0xff]
    %v396 = vld [vmem:[#allocation4 + $0xaa0] sm:$0xff]
    %v397 = vld [vmem:[#allocation4 + $0xaa8] sm:$0xff]
    %v398 = vld [vmem:[#allocation4 + $0xab0] sm:$0xff]
    %v399 = vld [vmem:[#allocation4 + $0xab8] sm:$0xff]
    %v400 = vld [vmem:[#allocation4 + $0xac0] sm:$0xff]
    %v401 = vld [vmem:[#allocation4 + $0xac8] sm:$0xff]
    %v402 = vld [vmem:[#allocation4 + $0xad0] sm:$0xff]
    %v403 = vld [vmem:[#allocation4 + $0xad8] sm:$0xff]
    %v404 = vld [vmem:[#allocation4 + $0xae0] sm:$0xff]
    %v405 = vld [vmem:[#allocation4 + $0xae8] sm:$0xff]
    %v406 = vld [vmem:[#allocation4 + $0xaf0] sm:$0xff]
    %v407 = vld [vmem:[#allocation4 + $0xaf8] sm:$0xff]
    %v408 = vld [vmem:[#allocation4 + $0xb00] sm:$0xff]
    %v409 = vld [vmem:[#allocation4 + $0xb08] sm:$0xff]
    %v410 = vld [vmem:[#allocation4 + $0xb10] sm:$0xff]
    %v411 = vld [vmem:[#allocation4 + $0xb18] sm:$0xff]
    %v412 = vld [vmem:[#allocation4 + $0xb20] sm:$0xff]
    %v413 = vld [vmem:[#allocation4 + $0xb28] sm:$0xff]
    %v414 = vld [vmem:[#allocation4 + $0xb30] sm:$0xff]
    %v415 = vld [vmem:[#allocation4 + $0xb38] sm:$0xff]
    %v416 = vld [vmem:[#allocation4 + $0xb40] sm:$0xff]
    %v417 = vld [vmem:[#allocation4 + $0xb48] sm:$0xff]
    %v418 = vld [vmem:[#allocation4 + $0xb50] sm:$0xff]
    %v419 = vld [vmem:[#allocation4 + $0xb58] sm:$0xff]
    %v420 = vld [vmem:[#allocation4 + $0xb60] sm:$0xff]
    %v421 = vld [vmem:[#allocation4 + $0xb68] sm:$0xff]
    %v422 = vld [vmem:[#allocation4 + $0xb70] sm:$0xff]
    %v423 = vld [vmem:[#allocation4 + $0xb78] sm:$0xff]
    %v424 = vld [vmem:[#allocation4 + $0xb80] sm:$0xff]
    %v425 = vld [vmem:[#allocation4 + $0xb88] sm:$0xff]
    %v426 = vld [vmem:[#allocation4 + $0xb90] sm:$0xff]
    %v427 = vld [vmem:[#allocation4 + $0xb98] sm:$0xff]
    %v428 = vld [vmem:[#allocation4 + $0xba0] sm:$0xff]
    %v429 = vld [vmem:[#allocation4 + $0xba8] sm:$0xff]
    %v430 = vld [vmem:[#allocation4 + $0xbb0] sm:$0xff]
    %v431 = vld [vmem:[#allocation4 + $0xbb8] sm:$0xff]
    %v432 = vld [vmem:[#allocation4 + $0xbc0] sm:$0xff]
    %v433 = vld [vmem:[#allocation4 + $0xbc8] sm:$0xff]
    %v434 = vld [vmem:[#allocation4 + $0xbd0] sm:$0xff]
    %v435 = vld [vmem:[#allocation4 + $0xbd8] sm:$0xff]
    %v436 = vld [vmem:[#allocation4 + $0xbe0] sm:$0xff]
    %v437 = vld [vmem:[#allocation4 + $0xbe8] sm:$0xff]
    %v438 = vld [vmem:[#allocation4 + $0xbf0] sm:$0xff]
    %v439 = vld [vmem:[#allocation4 + $0xbf8] sm:$0xff]
    %v440 = vld [vmem:[#allocation4 + $0xc00] sm:$0xff]
    %v441 = vld [vmem:[#allocation4 + $0xc08] sm:$0xff]
    %v442 = vld [vmem:[#allocation4 + $0xc10] sm:$0xff]
    %v443 = vld [vmem:[#allocation4 + $0xc18] sm:$0xff]
    %v444 = vld [vmem:[#allocation4 + $0xc20] sm:$0xff]
    %v445 = vld [vmem:[#allocation4 + $0xc28] sm:$0xff]
    %v446 = vld [vmem:[#allocation4 + $0xc30] sm:$0xff]
    %v447 = vld [vmem:[#allocation4 + $0xc38] sm:$0xff]
    %v448 = vld [vmem:[#allocation4 + $0xc40] sm:$0xff]
    %v449 = vld [vmem:[#allocation4 + $0xc48] sm:$0xff]
    %v450 = vld [vmem:[#allocation4 + $0xc50] sm:$0xff]
    %v451 = vld [vmem:[#allocation4 + $0xc58] sm:$0xff]
    %v452 = vld [vmem:[#allocation4 + $0xc60] sm:$0xff]
    %v453 = vld [vmem:[#allocation4 + $0xc68] sm:$0xff]
    %v454 = vld [vmem:[#allocation4 + $0xc70] sm:$0xff]
    %v455 = vld [vmem:[#allocation4 + $0xc78] sm:$0xff]
    %v456 = vld [vmem:[#allocation4 + $0xc80] sm:$0xff]
    %v457 = vld [vmem:[#allocation4 + $0xc88] sm:$0xff]
    %v458 = vld [vmem:[#allocation4 + $0xc90] sm:$0xff]
    %v459 = vld [vmem:[#allocation4 + $0xc98] sm:$0xff]
    %v460 = vld [vmem:[#allocation4 + $0xca0] sm:$0xff]
    %v461 = vld [vmem:[#allocation4 + $0xca8] sm:$0xff]
    %v462 = vld [vmem:[#allocation4 + $0xcb0] sm:$0xff]
    %v463 = vld [vmem:[#allocation4 + $0xcb8] sm:$0xff]
    %v464 = vld [vmem:[#allocation4 + $0xcc0] sm:$0xff]
    %v465 = vld [vmem:[#allocation4 + $0xcc8] sm:$0xff]
    %v466 = vld [vmem:[#allocation4 + $0xcd0] sm:$0xff]
    %v467 = vld [vmem:[#allocation4 + $0xcd8] sm:$0xff]
    %v468 = vld [vmem:[#allocation4 + $0xce0] sm:$0xff]
    %v469 = vld [vmem:[#allocation4 + $0xce8] sm:$0xff]
    %v470 = vld [vmem:[#allocation4 + $0xcf0] sm:$0xff]
    %v471 = vld [vmem:[#allocation4 + $0xcf8] sm:$0xff]
    %v472 = vld [vmem:[#allocation4 + $0xd00] sm:$0xff]
    %v473 = vld [vmem:[#allocation4 + $0xd08] sm:$0xff]
    %v474 = vld [vmem:[#allocation4 + $0xd10] sm:$0xff]
    %v475 = vld [vmem:[#allocation4 + $0xd18] sm:$0xff]
    %v476 = vld [vmem:[#allocation4 + $0xd20] sm:$0xff]
    %v477 = vld [vmem:[#allocation4 + $0xd28] sm:$0xff]
    %v478 = vld [vmem:[#allocation4 + $0xd30] sm:$0xff]
    %v479 = vld [vmem:[#allocation4 + $0xd38] sm:$0xff]
    %v480 = vld [vmem:[#allocation4 + $0xd40] sm:$0xff]
    %v481 = vld [vmem:[#allocation4 + $0xd48] sm:$0xff]
    %v482 = vld [vmem:[#allocation4 + $0xd50] sm:$0xff]
    %v483 = vld [vmem:[#allocation4 + $0xd58] sm:$0xff]
    %v484 = vld [vmem:[#allocation4 + $0xd60] sm:$0xff]
    %v485 = vld [vmem:[#allocation4 + $0xd68] sm:$0xff]
    %v486 = vld [vmem:[#allocation4 + $0xd70] sm:$0xff]
    %v487 = vld [vmem:[#allocation4 + $0xd78] sm:$0xff]
    %v488 = vld [vmem:[#allocation4 + $0xd80] sm:$0xff]
    %v489 = vld [vmem:[#allocation4 + $0xd88] sm:$0xff]
    %v490 = vld [vmem:[#allocation4 + $0xd90] sm:$0xff]
    %v491 = vld [vmem:[#allocation4 + $0xd98] sm:$0xff]
    %v492 = vld [vmem:[#allocation4 + $0xda0] sm:$0xff]
    %v493 = vld [vmem:[#allocation4 + $0xda8] sm:$0xff]
    %v494 = vld [vmem:[#allocation4 + $0xdb0] sm:$0xff]
    %v495 = vld [vmem:[#allocation4 + $0xdb8] sm:$0xff]
    %v496 = vld [vmem:[#allocation4 + $0xdc0] sm:$0xff]
    %v497 = vld [vmem:[#allocation4 + $0xdc8] sm:$0xff]
    %v498 = vld [vmem:[#allocation4 + $0xdd0] sm:$0xff]
    %v499 = vld [vmem:[#allocation4 + $0xdd8] sm:$0xff]
    %v500 = vld [vmem:[#allocation4 + $0xde0] sm:$0xff]
    %v501 = vld [vmem:[#allocation4 + $0xde8] sm:$0xff]
    %v502 = vld [vmem:[#allocation4 + $0xdf0] sm:$0xff]
    %v503 = vld [vmem:[#allocation4 + $0xdf8] sm:$0xff]
    %v504 = vld [vmem:[#allocation6] sm:$0xff]
    %v506 = vperm.slane %v504, 0
    %v507 = vperm.slane %v504, 1
    %v508 = vperm.slane %v504, 2
    %v509 = vperm.slane %v504, 3
    %v510 = vperm.slane %v504, 4
    %v511 = vperm.slane %v504, 5
    %v512 = vperm.slane %v504, 6
    %v513 = vperm.slane %v504, 7
    %v530 = vunpack.c.l.b16 %v48
    %v531 = vunpack.c.h.b16 %v48
    %v532 = vunpack.c.l.b16 %v49
    %v533 = vunpack.c.h.b16 %v49
    %v534 = vunpack.c.l.b16 %v50
    %v535 = vunpack.c.h.b16 %v50
    %v536 = vunpack.c.l.b16 %v51
    %v537 = vunpack.c.l.b16 %v52
    %v538 = vunpack.c.h.b16 %v52
    %v539 = vunpack.c.l.b16 %v53
    %v540 = vunpack.c.h.b16 %v53
    %v541 = vunpack.c.l.b16 %v54
    %v542 = vunpack.c.h.b16 %v54
    %v543 = vunpack.c.l.b16 %v55
    %v544 = vpack.c.b16 %v537, %v530
    %v545 = vpack.c.b16 %v538, %v531
    %v546 = vpack.c.b16 %v539, %v532
    %v547 = vpack.c.b16 %v540, %v533
    %v548 = vpack.c.b16 %v541, %v534
    %v549 = vpack.c.b16 %v542, %v535
    %v550 = vpack.c.b16 %v543, %v536
    %v1006 = vunpack.c.l.b16 %v56
    %v1007 = vunpack.c.h.b16 %v56
    %v1008 = vunpack.c.l.b16 %v57
    %v1009 = vunpack.c.h.b16 %v57
    %v1010 = vunpack.c.l.b16 %v58
    %v1011 = vunpack.c.h.b16 %v58
    %v1012 = vunpack.c.l.b16 %v59
    %v1013 = vunpack.c.h.b16 %v59
    %v1014 = vunpack.c.l.b16 %v60
    %v1015 = vunpack.c.h.b16 %v60
    %v1016 = vunpack.c.l.b16 %v61
    %v1017 = vunpack.c.h.b16 %v61
    %v1018 = vunpack.c.l.b16 %v62
    %v1019 = vunpack.c.h.b16 %v62
    %v1020 = vunpack.c.l.b16 %v63
    %v1021 = vunpack.c.h.b16 %v63
    %v1022 = vunpack.c.l.b16 %v64
    %v1023 = vunpack.c.h.b16 %v64
    %v1024 = vunpack.c.l.b16 %v65
    %v1025 = vunpack.c.h.b16 %v65
    %v1026 = vunpack.c.l.b16 %v66
    %v1027 = vunpack.c.h.b16 %v66
    %v1028 = vunpack.c.l.b16 %v67
    %v1029 = vunpack.c.h.b16 %v67
    %v1030 = vunpack.c.l.b16 %v68
    %v1031 = vunpack.c.h.b16 %v68
    %v1032 = vunpack.c.l.b16 %v69
    %v1033 = vunpack.c.h.b16 %v69
    %v1034 = vunpack.c.l.b16 %v70
    %v1035 = vunpack.c.h.b16 %v70
    %v1036 = vunpack.c.l.b16 %v71
    %v1037 = vunpack.c.h.b16 %v71
    %v1038 = vunpack.c.l.b16 %v72
    %v1039 = vunpack.c.h.b16 %v72
    %v1040 = vunpack.c.l.b16 %v73
    %v1041 = vunpack.c.h.b16 %v73
    %v1042 = vunpack.c.l.b16 %v74
    %v1043 = vunpack.c.h.b16 %v74
    %v1044 = vunpack.c.l.b16 %v75
    %v1045 = vunpack.c.h.b16 %v75
    %v1046 = vunpack.c.l.b16 %v76
    %v1047 = vunpack.c.h.b16 %v76
    %v1048 = vunpack.c.l.b16 %v77
    %v1049 = vunpack.c.h.b16 %v77
    %v1050 = vunpack.c.l.b16 %v78
    %v1051 = vunpack.c.h.b16 %v78
    %v1052 = vunpack.c.l.b16 %v79
    %v1053 = vunpack.c.h.b16 %v79
    %v1054 = vunpack.c.l.b16 %v80
    %v1055 = vunpack.c.h.b16 %v80
    %v1056 = vunpack.c.l.b16 %v81
    %v1057 = vunpack.c.h.b16 %v81
    %v1058 = vunpack.c.l.b16 %v82
    %v1059 = vunpack.c.h.b16 %v82
    %v1060 = vunpack.c.l.b16 %v83
    %v1061 = vunpack.c.h.b16 %v83
    %v1062 = vunpack.c.l.b16 %v84
    %v1063 = vunpack.c.h.b16 %v84
    %v1064 = vunpack.c.l.b16 %v85
    %v1065 = vunpack.c.h.b16 %v85
    %v1066 = vunpack.c.l.b16 %v86
    %v1067 = vunpack.c.h.b16 %v86
    %v1068 = vunpack.c.l.b16 %v87
    %v1069 = vunpack.c.h.b16 %v87
    %v1070 = vunpack.c.l.b16 %v88
    %v1071 = vunpack.c.h.b16 %v88
    %v1072 = vunpack.c.l.b16 %v89
    %v1073 = vunpack.c.h.b16 %v89
    %v1074 = vunpack.c.l.b16 %v90
    %v1075 = vunpack.c.h.b16 %v90
    %v1076 = vunpack.c.l.b16 %v91
    %v1077 = vunpack.c.h.b16 %v91
    %v1078 = vunpack.c.l.b16 %v92
    %v1079 = vunpack.c.h.b16 %v92
    %v1080 = vunpack.c.l.b16 %v93
    %v1081 = vunpack.c.h.b16 %v93
    %v1082 = vunpack.c.l.b16 %v94
    %v1083 = vunpack.c.h.b16 %v94
    %v1084 = vunpack.c.l.b16 %v95
    %v1085 = vunpack.c.h.b16 %v95
    %v1086 = vunpack.c.l.b16 %v96
    %v1087 = vunpack.c.h.b16 %v96
    %v1088 = vunpack.c.l.b16 %v97
    %v1089 = vunpack.c.h.b16 %v97
    %v1090 = vunpack.c.l.b16 %v98
    %v1091 = vunpack.c.h.b16 %v98
    %v1092 = vunpack.c.l.b16 %v99
    %v1093 = vunpack.c.h.b16 %v99
    %v1094 = vunpack.c.l.b16 %v100
    %v1095 = vunpack.c.h.b16 %v100
    %v1096 = vunpack.c.l.b16 %v101
    %v1097 = vunpack.c.h.b16 %v101
    %v1098 = vunpack.c.l.b16 %v102
    %v1099 = vunpack.c.h.b16 %v102
    %v1100 = vunpack.c.l.b16 %v103
    %v1101 = vunpack.c.h.b16 %v103
    %v1102 = vunpack.c.l.b16 %v104
    %v1103 = vunpack.c.h.b16 %v104
    %v1104 = vunpack.c.l.b16 %v105
    %v1105 = vunpack.c.h.b16 %v105
    %v1106 = vunpack.c.l.b16 %v106
    %v1107 = vunpack.c.h.b16 %v106
    %v1108 = vunpack.c.l.b16 %v107
    %v1109 = vunpack.c.h.b16 %v107
    %v1110 = vunpack.c.l.b16 %v108
    %v1111 = vunpack.c.h.b16 %v108
    %v1112 = vunpack.c.l.b16 %v109
    %v1113 = vunpack.c.h.b16 %v109
    %v1114 = vunpack.c.l.b16 %v110
    %v1115 = vunpack.c.h.b16 %v110
    %v1116 = vunpack.c.l.b16 %v111
    %v1117 = vunpack.c.h.b16 %v111
    %v1118 = vunpack.c.l.b16 %v112
    %v1119 = vunpack.c.h.b16 %v112
    %v1120 = vunpack.c.l.b16 %v113
    %v1121 = vunpack.c.h.b16 %v113
    %v1122 = vunpack.c.l.b16 %v114
    %v1123 = vunpack.c.h.b16 %v114
    %v1124 = vunpack.c.l.b16 %v115
    %v1125 = vunpack.c.h.b16 %v115
    %v1126 = vunpack.c.l.b16 %v116
    %v1127 = vunpack.c.h.b16 %v116
    %v1128 = vunpack.c.l.b16 %v117
    %v1129 = vunpack.c.h.b16 %v117
    %v1130 = vunpack.c.l.b16 %v118
    %v1131 = vunpack.c.h.b16 %v118
    %v1132 = vunpack.c.l.b16 %v119
    %v1133 = vunpack.c.h.b16 %v119
    %v1134 = vunpack.c.l.b16 %v120
    %v1135 = vunpack.c.h.b16 %v120
    %v1136 = vunpack.c.l.b16 %v121
    %v1137 = vunpack.c.h.b16 %v121
    %v1138 = vunpack.c.l.b16 %v122
    %v1139 = vunpack.c.h.b16 %v122
    %v1140 = vunpack.c.l.b16 %v123
    %v1141 = vunpack.c.h.b16 %v123
    %v1142 = vunpack.c.l.b16 %v124
    %v1143 = vunpack.c.h.b16 %v124
    %v1144 = vunpack.c.l.b16 %v125
    %v1145 = vunpack.c.h.b16 %v125
    %v1146 = vunpack.c.l.b16 %v126
    %v1147 = vunpack.c.h.b16 %v126
    %v1148 = vunpack.c.l.b16 %v127
    %v1149 = vunpack.c.h.b16 %v127
    %v1150 = vunpack.c.l.b16 %v128
    %v1151 = vunpack.c.h.b16 %v128
    %v1152 = vunpack.c.l.b16 %v129
    %v1153 = vunpack.c.h.b16 %v129
    %v1154 = vunpack.c.l.b16 %v130
    %v1155 = vunpack.c.h.b16 %v130
    %v1156 = vunpack.c.l.b16 %v131
    %v1157 = vunpack.c.h.b16 %v131
    %v1158 = vunpack.c.l.b16 %v132
    %v1159 = vunpack.c.h.b16 %v132
    %v1160 = vunpack.c.l.b16 %v133
    %v1161 = vunpack.c.h.b16 %v133
    %v1162 = vunpack.c.l.b16 %v134
    %v1163 = vunpack.c.h.b16 %v134
    %v1164 = vunpack.c.l.b16 %v135
    %v1165 = vunpack.c.h.b16 %v135
    %v1166 = vunpack.c.l.b16 %v136
    %v1167 = vunpack.c.h.b16 %v136
    %v1168 = vunpack.c.l.b16 %v137
    %v1169 = vunpack.c.h.b16 %v137
    %v1170 = vunpack.c.l.b16 %v138
    %v1171 = vunpack.c.h.b16 %v138
    %v1172 = vunpack.c.l.b16 %v139
    %v1173 = vunpack.c.h.b16 %v139
    %v1174 = vunpack.c.l.b16 %v140
    %v1175 = vunpack.c.h.b16 %v140
    %v1176 = vunpack.c.l.b16 %v141
    %v1177 = vunpack.c.h.b16 %v141
    %v1178 = vunpack.c.l.b16 %v142
    %v1179 = vunpack.c.h.b16 %v142
    %v1180 = vunpack.c.l.b16 %v143
    %v1181 = vunpack.c.h.b16 %v143
    %v1182 = vunpack.c.l.b16 %v144
    %v1183 = vunpack.c.h.b16 %v144
    %v1184 = vunpack.c.l.b16 %v145
    %v1185 = vunpack.c.h.b16 %v145
    %v1186 = vunpack.c.l.b16 %v146
    %v1187 = vunpack.c.h.b16 %v146
    %v1188 = vunpack.c.l.b16 %v147
    %v1189 = vunpack.c.h.b16 %v147
    %v1190 = vunpack.c.l.b16 %v148
    %v1191 = vunpack.c.h.b16 %v148
    %v1192 = vunpack.c.l.b16 %v149
    %v1193 = vunpack.c.h.b16 %v149
    %v1194 = vunpack.c.l.b16 %v150
    %v1195 = vunpack.c.h.b16 %v150
    %v1196 = vunpack.c.l.b16 %v151
    %v1197 = vunpack.c.h.b16 %v151
    %v1198 = vunpack.c.l.b16 %v152
    %v1199 = vunpack.c.h.b16 %v152
    %v1200 = vunpack.c.l.b16 %v153
    %v1201 = vunpack.c.h.b16 %v153
    %v1202 = vunpack.c.l.b16 %v154
    %v1203 = vunpack.c.h.b16 %v154
    %v1204 = vunpack.c.l.b16 %v155
    %v1205 = vunpack.c.h.b16 %v155
    %v1206 = vunpack.c.l.b16 %v156
    %v1207 = vunpack.c.h.b16 %v156
    %v1208 = vunpack.c.l.b16 %v157
    %v1209 = vunpack.c.h.b16 %v157
    %v1210 = vunpack.c.l.b16 %v158
    %v1211 = vunpack.c.h.b16 %v158
    %v1212 = vunpack.c.l.b16 %v159
    %v1213 = vunpack.c.h.b16 %v159
    %v1214 = vunpack.c.l.b16 %v160
    %v1215 = vunpack.c.h.b16 %v160
    %v1216 = vunpack.c.l.b16 %v161
    %v1217 = vunpack.c.h.b16 %v161
    %v1218 = vunpack.c.l.b16 %v162
    %v1219 = vunpack.c.h.b16 %v162
    %v1220 = vunpack.c.l.b16 %v163
    %v1221 = vunpack.c.h.b16 %v163
    %v1222 = vunpack.c.l.b16 %v164
    %v1223 = vunpack.c.h.b16 %v164
    %v1224 = vunpack.c.l.b16 %v165
    %v1225 = vunpack.c.h.b16 %v165
    %v1226 = vunpack.c.l.b16 %v166
    %v1227 = vunpack.c.h.b16 %v166
    %v1228 = vunpack.c.l.b16 %v167
    %v1229 = vunpack.c.h.b16 %v167
    %v1230 = vunpack.c.l.b16 %v168
    %v1231 = vunpack.c.h.b16 %v168
    %v1232 = vunpack.c.l.b16 %v169
    %v1233 = vunpack.c.h.b16 %v169
    %v1234 = vunpack.c.l.b16 %v170
    %v1235 = vunpack.c.h.b16 %v170
    %v1236 = vunpack.c.l.b16 %v171
    %v1237 = vunpack.c.h.b16 %v171
    %v1238 = vunpack.c.l.b16 %v172
    %v1239 = vunpack.c.h.b16 %v172
    %v1240 = vunpack.c.l.b16 %v173
    %v1241 = vunpack.c.h.b16 %v173
    %v1242 = vunpack.c.l.b16 %v174
    %v1243 = vunpack.c.h.b16 %v174
    %v1244 = vunpack.c.l.b16 %v175
    %v1245 = vunpack.c.h.b16 %v175
    %v1246 = vunpack.c.l.b16 %v176
    %v1247 = vunpack.c.h.b16 %v176
    %v1248 = vunpack.c.l.b16 %v177
    %v1249 = vunpack.c.h.b16 %v177
    %v1250 = vunpack.c.l.b16 %v178
    %v1251 = vunpack.c.h.b16 %v178
    %v1252 = vunpack.c.l.b16 %v179
    %v1253 = vunpack.c.h.b16 %v179
    %v1254 = vunpack.c.l.b16 %v180
    %v1255 = vunpack.c.h.b16 %v180
    %v1256 = vunpack.c.l.b16 %v181
    %v1257 = vunpack.c.h.b16 %v181
    %v1258 = vunpack.c.l.b16 %v182
    %v1259 = vunpack.c.h.b16 %v182
    %v1260 = vunpack.c.l.b16 %v183
    %v1261 = vunpack.c.h.b16 %v183
    %v1262 = vunpack.c.l.b16 %v184
    %v1263 = vunpack.c.h.b16 %v184
    %v1264 = vunpack.c.l.b16 %v185
    %v1265 = vunpack.c.h.b16 %v185
    %v1266 = vunpack.c.l.b16 %v186
    %v1267 = vunpack.c.h.b16 %v186
    %v1268 = vunpack.c.l.b16 %v187
    %v1269 = vunpack.c.h.b16 %v187
    %v1270 = vunpack.c.l.b16 %v188
    %v1271 = vunpack.c.h.b16 %v188
    %v1272 = vunpack.c.l.b16 %v189
    %v1273 = vunpack.c.h.b16 %v189
    %v1274 = vunpack.c.l.b16 %v190
    %v1275 = vunpack.c.h.b16 %v190
    %v1276 = vunpack.c.l.b16 %v191
    %v1277 = vunpack.c.h.b16 %v191
    %v1278 = vunpack.c.l.b16 %v192
    %v1279 = vunpack.c.h.b16 %v192
    %v1280 = vunpack.c.l.b16 %v193
    %v1281 = vunpack.c.h.b16 %v193
    %v1282 = vunpack.c.l.b16 %v194
    %v1283 = vunpack.c.h.b16 %v194
    %v1284 = vunpack.c.l.b16 %v195
    %v1285 = vunpack.c.h.b16 %v195
    %v1286 = vunpack.c.l.b16 %v196
    %v1287 = vunpack.c.h.b16 %v196
    %v1288 = vunpack.c.l.b16 %v197
    %v1289 = vunpack.c.h.b16 %v197
    %v1290 = vunpack.c.l.b16 %v198
    %v1291 = vunpack.c.h.b16 %v198
    %v1292 = vunpack.c.l.b16 %v199
    %v1293 = vunpack.c.h.b16 %v199
    %v1294 = vunpack.c.l.b16 %v200
    %v1295 = vunpack.c.h.b16 %v200
    %v1296 = vunpack.c.l.b16 %v201
    %v1297 = vunpack.c.h.b16 %v201
    %v1298 = vunpack.c.l.b16 %v202
    %v1299 = vunpack.c.h.b16 %v202
    %v1300 = vunpack.c.l.b16 %v203
    %v1301 = vunpack.c.h.b16 %v203
    %v1302 = vunpack.c.l.b16 %v204
    %v1303 = vunpack.c.h.b16 %v204
    %v1304 = vunpack.c.l.b16 %v205
    %v1305 = vunpack.c.h.b16 %v205
    %v1306 = vunpack.c.l.b16 %v206
    %v1307 = vunpack.c.h.b16 %v206
    %v1308 = vunpack.c.l.b16 %v207
    %v1309 = vunpack.c.h.b16 %v207
    %v1310 = vunpack.c.l.b16 %v208
    %v1311 = vunpack.c.h.b16 %v208
    %v1312 = vunpack.c.l.b16 %v209
    %v1313 = vunpack.c.h.b16 %v209
    %v1314 = vunpack.c.l.b16 %v210
    %v1315 = vunpack.c.h.b16 %v210
    %v1316 = vunpack.c.l.b16 %v211
    %v1317 = vunpack.c.h.b16 %v211
    %v1318 = vunpack.c.l.b16 %v212
    %v1319 = vunpack.c.h.b16 %v212
    %v1320 = vunpack.c.l.b16 %v213
    %v1321 = vunpack.c.h.b16 %v213
    %v1322 = vunpack.c.l.b16 %v214
    %v1323 = vunpack.c.h.b16 %v214
    %v1324 = vunpack.c.l.b16 %v215
    %v1325 = vunpack.c.h.b16 %v215
    %v1326 = vunpack.c.l.b16 %v216
    %v1327 = vunpack.c.h.b16 %v216
    %v1328 = vunpack.c.l.b16 %v217
    %v1329 = vunpack.c.h.b16 %v217
    %v1330 = vunpack.c.l.b16 %v218
    %v1331 = vunpack.c.h.b16 %v218
    %v1332 = vunpack.c.l.b16 %v219
    %v1333 = vunpack.c.h.b16 %v219
    %v1334 = vunpack.c.l.b16 %v220
    %v1335 = vunpack.c.h.b16 %v220
    %v1336 = vunpack.c.l.b16 %v221
    %v1337 = vunpack.c.h.b16 %v221
    %v1338 = vunpack.c.l.b16 %v222
    %v1339 = vunpack.c.h.b16 %v222
    %v1340 = vunpack.c.l.b16 %v223
    %v1341 = vunpack.c.h.b16 %v223
    %v1342 = vunpack.c.l.b16 %v224
    %v1343 = vunpack.c.h.b16 %v224
    %v1344 = vunpack.c.l.b16 %v225
    %v1345 = vunpack.c.h.b16 %v225
    %v1346 = vunpack.c.l.b16 %v226
    %v1347 = vunpack.c.h.b16 %v226
    %v1348 = vunpack.c.l.b16 %v227
    %v1349 = vunpack.c.h.b16 %v227
    %v1350 = vunpack.c.l.b16 %v228
    %v1351 = vunpack.c.h.b16 %v228
    %v1352 = vunpack.c.l.b16 %v229
    %v1353 = vunpack.c.h.b16 %v229
    %v1354 = vunpack.c.l.b16 %v230
    %v1355 = vunpack.c.h.b16 %v230
    %v1356 = vunpack.c.l.b16 %v231
    %v1357 = vunpack.c.h.b16 %v231
    %v1358 = vunpack.c.l.b16 %v232
    %v1359 = vunpack.c.h.b16 %v232
    %v1360 = vunpack.c.l.b16 %v233
    %v1361 = vunpack.c.h.b16 %v233
    %v1362 = vunpack.c.l.b16 %v234
    %v1363 = vunpack.c.h.b16 %v234
    %v1364 = vunpack.c.l.b16 %v235
    %v1365 = vunpack.c.h.b16 %v235
    %v1366 = vunpack.c.l.b16 %v236
    %v1367 = vunpack.c.h.b16 %v236
    %v1368 = vunpack.c.l.b16 %v237
    %v1369 = vunpack.c.h.b16 %v237
    %v1370 = vunpack.c.l.b16 %v238
    %v1371 = vunpack.c.h.b16 %v238
    %v1372 = vunpack.c.l.b16 %v239
    %v1373 = vunpack.c.h.b16 %v239
    %v1374 = vunpack.c.l.b16 %v240
    %v1375 = vunpack.c.h.b16 %v240
    %v1376 = vunpack.c.l.b16 %v241
    %v1377 = vunpack.c.h.b16 %v241
    %v1378 = vunpack.c.l.b16 %v242
    %v1379 = vunpack.c.h.b16 %v242
    %v1380 = vunpack.c.l.b16 %v243
    %v1381 = vunpack.c.h.b16 %v243
    %v1382 = vunpack.c.l.b16 %v244
    %v1383 = vunpack.c.h.b16 %v244
    %v1384 = vunpack.c.l.b16 %v245
    %v1385 = vunpack.c.h.b16 %v245
    %v1386 = vunpack.c.l.b16 %v246
    %v1387 = vunpack.c.h.b16 %v246
    %v1388 = vunpack.c.l.b16 %v247
    %v1389 = vunpack.c.h.b16 %v247
    %v1390 = vunpack.c.l.b16 %v248
    %v1391 = vunpack.c.h.b16 %v248
    %v1392 = vunpack.c.l.b16 %v249
    %v1393 = vunpack.c.h.b16 %v249
    %v1394 = vunpack.c.l.b16 %v250
    %v1395 = vunpack.c.h.b16 %v250
    %v1396 = vunpack.c.l.b16 %v251
    %v1397 = vunpack.c.h.b16 %v251
    %v1398 = vunpack.c.l.b16 %v252
    %v1399 = vunpack.c.h.b16 %v252
    %v1400 = vunpack.c.l.b16 %v253
    %v1401 = vunpack.c.h.b16 %v253
    %v1402 = vunpack.c.l.b16 %v254
    %v1403 = vunpack.c.h.b16 %v254
    %v1404 = vunpack.c.l.b16 %v255
    %v1405 = vunpack.c.h.b16 %v255
    %v1406 = vunpack.c.l.b16 %v256
    %v1407 = vunpack.c.h.b16 %v256
    %v1408 = vunpack.c.l.b16 %v257
    %v1409 = vunpack.c.h.b16 %v257
    %v1410 = vunpack.c.l.b16 %v258
    %v1411 = vunpack.c.h.b16 %v258
    %v1412 = vunpack.c.l.b16 %v259
    %v1413 = vunpack.c.h.b16 %v259
    %v1414 = vunpack.c.l.b16 %v260
    %v1415 = vunpack.c.h.b16 %v260
    %v1416 = vunpack.c.l.b16 %v261
    %v1417 = vunpack.c.h.b16 %v261
    %v1418 = vunpack.c.l.b16 %v262
    %v1419 = vunpack.c.h.b16 %v262
    %v1420 = vunpack.c.l.b16 %v263
    %v1421 = vunpack.c.h.b16 %v263
    %v1422 = vunpack.c.l.b16 %v264
    %v1423 = vunpack.c.h.b16 %v264
    %v1424 = vunpack.c.l.b16 %v265
    %v1425 = vunpack.c.h.b16 %v265
    %v1426 = vunpack.c.l.b16 %v266
    %v1427 = vunpack.c.h.b16 %v266
    %v1428 = vunpack.c.l.b16 %v267
    %v1429 = vunpack.c.h.b16 %v267
    %v1430 = vunpack.c.l.b16 %v268
    %v1431 = vunpack.c.h.b16 %v268
    %v1432 = vunpack.c.l.b16 %v269
    %v1433 = vunpack.c.h.b16 %v269
    %v1434 = vunpack.c.l.b16 %v270
    %v1435 = vunpack.c.h.b16 %v270
    %v1436 = vunpack.c.l.b16 %v271
    %v1437 = vunpack.c.h.b16 %v271
    %v1438 = vunpack.c.l.b16 %v272
    %v1439 = vunpack.c.h.b16 %v272
    %v1440 = vunpack.c.l.b16 %v273
    %v1441 = vunpack.c.h.b16 %v273
    %v1442 = vunpack.c.l.b16 %v274
    %v1443 = vunpack.c.h.b16 %v274
    %v1444 = vunpack.c.l.b16 %v275
    %v1445 = vunpack.c.h.b16 %v275
    %v1446 = vunpack.c.l.b16 %v276
    %v1447 = vunpack.c.h.b16 %v276
    %v1448 = vunpack.c.l.b16 %v277
    %v1449 = vunpack.c.h.b16 %v277
    %v1450 = vunpack.c.l.b16 %v278
    %v1451 = vunpack.c.h.b16 %v278
    %v1452 = vunpack.c.l.b16 %v279
    %v1453 = vunpack.c.h.b16 %v279
    %v1454 = vunpack.c.l.b16 %v280
    %v1455 = vunpack.c.h.b16 %v280
    %v1456 = vunpack.c.l.b16 %v281
    %v1457 = vunpack.c.h.b16 %v281
    %v1458 = vunpack.c.l.b16 %v282
    %v1459 = vunpack.c.h.b16 %v282
    %v1460 = vunpack.c.l.b16 %v283
    %v1461 = vunpack.c.h.b16 %v283
    %v1462 = vunpack.c.l.b16 %v284
    %v1463 = vunpack.c.h.b16 %v284
    %v1464 = vunpack.c.l.b16 %v285
    %v1465 = vunpack.c.h.b16 %v285
    %v1466 = vunpack.c.l.b16 %v286
    %v1467 = vunpack.c.h.b16 %v286
    %v1468 = vunpack.c.l.b16 %v287
    %v1469 = vunpack.c.h.b16 %v287
    %v1470 = vunpack.c.l.b16 %v288
    %v1471 = vunpack.c.h.b16 %v288
    %v1472 = vunpack.c.l.b16 %v289
    %v1473 = vunpack.c.h.b16 %v289
    %v1474 = vunpack.c.l.b16 %v290
    %v1475 = vunpack.c.h.b16 %v290
    %v1476 = vunpack.c.l.b16 %v291
    %v1477 = vunpack.c.h.b16 %v291
    %v1478 = vunpack.c.l.b16 %v292
    %v1479 = vunpack.c.h.b16 %v292
    %v1480 = vunpack.c.l.b16 %v293
    %v1481 = vunpack.c.h.b16 %v293
    %v1482 = vunpack.c.l.b16 %v294
    %v1483 = vunpack.c.h.b16 %v294
    %v1484 = vunpack.c.l.b16 %v295
    %v1485 = vunpack.c.h.b16 %v295
    %v1486 = vunpack.c.l.b16 %v296
    %v1487 = vunpack.c.h.b16 %v296
    %v1488 = vunpack.c.l.b16 %v297
    %v1489 = vunpack.c.h.b16 %v297
    %v1490 = vunpack.c.l.b16 %v298
    %v1491 = vunpack.c.h.b16 %v298
    %v1492 = vunpack.c.l.b16 %v299
    %v1493 = vunpack.c.h.b16 %v299
    %v1494 = vunpack.c.l.b16 %v300
    %v1495 = vunpack.c.h.b16 %v300
    %v1496 = vunpack.c.l.b16 %v301
    %v1497 = vunpack.c.h.b16 %v301
    %v1498 = vunpack.c.l.b16 %v302
    %v1499 = vunpack.c.h.b16 %v302
    %v1500 = vunpack.c.l.b16 %v303
    %v1501 = vunpack.c.h.b16 %v303
    %v1502 = vunpack.c.l.b16 %v304
    %v1503 = vunpack.c.h.b16 %v304
    %v1504 = vunpack.c.l.b16 %v305
    %v1505 = vunpack.c.h.b16 %v305
    %v1506 = vunpack.c.l.b16 %v306
    %v1507 = vunpack.c.h.b16 %v306
    %v1508 = vunpack.c.l.b16 %v307
    %v1509 = vunpack.c.h.b16 %v307
    %v1510 = vunpack.c.l.b16 %v308
    %v1511 = vunpack.c.h.b16 %v308
    %v1512 = vunpack.c.l.b16 %v309
    %v1513 = vunpack.c.h.b16 %v309
    %v1514 = vunpack.c.l.b16 %v310
    %v1515 = vunpack.c.h.b16 %v310
    %v1516 = vunpack.c.l.b16 %v311
    %v1517 = vunpack.c.h.b16 %v311
    %v1518 = vunpack.c.l.b16 %v312
    %v1519 = vunpack.c.h.b16 %v312
    %v1520 = vunpack.c.l.b16 %v313
    %v1521 = vunpack.c.h.b16 %v313
    %v1522 = vunpack.c.l.b16 %v314
    %v1523 = vunpack.c.h.b16 %v314
    %v1524 = vunpack.c.l.b16 %v315
    %v1525 = vunpack.c.h.b16 %v315
    %v1526 = vunpack.c.l.b16 %v316
    %v1527 = vunpack.c.h.b16 %v316
    %v1528 = vunpack.c.l.b16 %v317
    %v1529 = vunpack.c.h.b16 %v317
    %v1530 = vunpack.c.l.b16 %v318
    %v1531 = vunpack.c.h.b16 %v318
    %v1532 = vunpack.c.l.b16 %v319
    %v1533 = vunpack.c.h.b16 %v319
    %v1534 = vunpack.c.l.b16 %v320
    %v1535 = vunpack.c.h.b16 %v320
    %v1536 = vunpack.c.l.b16 %v321
    %v1537 = vunpack.c.h.b16 %v321
    %v1538 = vunpack.c.l.b16 %v322
    %v1539 = vunpack.c.h.b16 %v322
    %v1540 = vunpack.c.l.b16 %v323
    %v1541 = vunpack.c.h.b16 %v323
    %v1542 = vunpack.c.l.b16 %v324
    %v1543 = vunpack.c.h.b16 %v324
    %v1544 = vunpack.c.l.b16 %v325
    %v1545 = vunpack.c.h.b16 %v325
    %v1546 = vunpack.c.l.b16 %v326
    %v1547 = vunpack.c.h.b16 %v326
    %v1548 = vunpack.c.l.b16 %v327
    %v1549 = vunpack.c.h.b16 %v327
    %v1550 = vunpack.c.l.b16 %v328
    %v1551 = vunpack.c.h.b16 %v328
    %v1552 = vunpack.c.l.b16 %v329
    %v1553 = vunpack.c.h.b16 %v329
    %v1554 = vunpack.c.l.b16 %v330
    %v1555 = vunpack.c.h.b16 %v330
    %v1556 = vunpack.c.l.b16 %v331
    %v1557 = vunpack.c.h.b16 %v331
    %v1558 = vunpack.c.l.b16 %v332
    %v1559 = vunpack.c.h.b16 %v332
    %v1560 = vunpack.c.l.b16 %v333
    %v1561 = vunpack.c.h.b16 %v333
    %v1562 = vunpack.c.l.b16 %v334
    %v1563 = vunpack.c.h.b16 %v334
    %v1564 = vunpack.c.l.b16 %v335
    %v1565 = vunpack.c.h.b16 %v335
    %v1566 = vunpack.c.l.b16 %v336
    %v1567 = vunpack.c.h.b16 %v336
    %v1568 = vunpack.c.l.b16 %v337
    %v1569 = vunpack.c.h.b16 %v337
    %v1570 = vunpack.c.l.b16 %v338
    %v1571 = vunpack.c.h.b16 %v338
    %v1572 = vunpack.c.l.b16 %v339
    %v1573 = vunpack.c.h.b16 %v339
    %v1574 = vunpack.c.l.b16 %v340
    %v1575 = vunpack.c.h.b16 %v340
    %v1576 = vunpack.c.l.b16 %v341
    %v1577 = vunpack.c.h.b16 %v341
    %v1578 = vunpack.c.l.b16 %v342
    %v1579 = vunpack.c.h.b16 %v342
    %v1580 = vunpack.c.l.b16 %v343
    %v1581 = vunpack.c.h.b16 %v343
    %v1582 = vunpack.c.l.b16 %v344
    %v1583 = vunpack.c.h.b16 %v344
    %v1584 = vunpack.c.l.b16 %v345
    %v1585 = vunpack.c.h.b16 %v345
    %v1586 = vunpack.c.l.b16 %v346
    %v1587 = vunpack.c.h.b16 %v346
    %v1588 = vunpack.c.l.b16 %v347
    %v1589 = vunpack.c.h.b16 %v347
    %v1590 = vunpack.c.l.b16 %v348
    %v1591 = vunpack.c.h.b16 %v348
    %v1592 = vunpack.c.l.b16 %v349
    %v1593 = vunpack.c.h.b16 %v349
    %v1594 = vunpack.c.l.b16 %v350
    %v1595 = vunpack.c.h.b16 %v350
    %v1596 = vunpack.c.l.b16 %v351
    %v1597 = vunpack.c.h.b16 %v351
    %v1598 = vunpack.c.l.b16 %v352
    %v1599 = vunpack.c.h.b16 %v352
    %v1600 = vunpack.c.l.b16 %v353
    %v1601 = vunpack.c.h.b16 %v353
    %v1602 = vunpack.c.l.b16 %v354
    %v1603 = vunpack.c.h.b16 %v354
    %v1604 = vunpack.c.l.b16 %v355
    %v1605 = vunpack.c.h.b16 %v355
    %v1606 = vunpack.c.l.b16 %v356
    %v1607 = vunpack.c.h.b16 %v356
    %v1608 = vunpack.c.l.b16 %v357
    %v1609 = vunpack.c.h.b16 %v357
    %v1610 = vunpack.c.l.b16 %v358
    %v1611 = vunpack.c.h.b16 %v358
    %v1612 = vunpack.c.l.b16 %v359
    %v1613 = vunpack.c.h.b16 %v359
    %v1614 = vunpack.c.l.b16 %v360
    %v1615 = vunpack.c.h.b16 %v360
    %v1616 = vunpack.c.l.b16 %v361
    %v1617 = vunpack.c.h.b16 %v361
    %v1618 = vunpack.c.l.b16 %v362
    %v1619 = vunpack.c.h.b16 %v362
    %v1620 = vunpack.c.l.b16 %v363
    %v1621 = vunpack.c.h.b16 %v363
    %v1622 = vunpack.c.l.b16 %v364
    %v1623 = vunpack.c.h.b16 %v364
    %v1624 = vunpack.c.l.b16 %v365
    %v1625 = vunpack.c.h.b16 %v365
    %v1626 = vunpack.c.l.b16 %v366
    %v1627 = vunpack.c.h.b16 %v366
    %v1628 = vunpack.c.l.b16 %v367
    %v1629 = vunpack.c.h.b16 %v367
    %v1630 = vunpack.c.l.b16 %v368
    %v1631 = vunpack.c.h.b16 %v368
    %v1632 = vunpack.c.l.b16 %v369
    %v1633 = vunpack.c.h.b16 %v369
    %v1634 = vunpack.c.l.b16 %v370
    %v1635 = vunpack.c.h.b16 %v370
    %v1636 = vunpack.c.l.b16 %v371
    %v1637 = vunpack.c.h.b16 %v371
    %v1638 = vunpack.c.l.b16 %v372
    %v1639 = vunpack.c.h.b16 %v372
    %v1640 = vunpack.c.l.b16 %v373
    %v1641 = vunpack.c.h.b16 %v373
    %v1642 = vunpack.c.l.b16 %v374
    %v1643 = vunpack.c.h.b16 %v374
    %v1644 = vunpack.c.l.b16 %v375
    %v1645 = vunpack.c.h.b16 %v375
    %v1646 = vunpack.c.l.b16 %v376
    %v1647 = vunpack.c.h.b16 %v376
    %v1648 = vunpack.c.l.b16 %v377
    %v1649 = vunpack.c.h.b16 %v377
    %v1650 = vunpack.c.l.b16 %v378
    %v1651 = vunpack.c.h.b16 %v378
    %v1652 = vunpack.c.l.b16 %v379
    %v1653 = vunpack.c.h.b16 %v379
    %v1654 = vunpack.c.l.b16 %v380
    %v1655 = vunpack.c.h.b16 %v380
    %v1656 = vunpack.c.l.b16 %v381
    %v1657 = vunpack.c.h.b16 %v381
    %v1658 = vunpack.c.l.b16 %v382
    %v1659 = vunpack.c.h.b16 %v382
    %v1660 = vunpack.c.l.b16 %v383
    %v1661 = vunpack.c.h.b16 %v383
    %v1662 = vunpack.c.l.b16 %v384
    %v1663 = vunpack.c.h.b16 %v384
    %v1664 = vunpack.c.l.b16 %v385
    %v1665 = vunpack.c.h.b16 %v385
    %v1666 = vunpack.c.l.b16 %v386
    %v1667 = vunpack.c.h.b16 %v386
    %v1668 = vunpack.c.l.b16 %v387
    %v1669 = vunpack.c.h.b16 %v387
    %v1670 = vunpack.c.l.b16 %v388
    %v1671 = vunpack.c.h.b16 %v388
    %v1672 = vunpack.c.l.b16 %v389
    %v1673 = vunpack.c.h.b16 %v389
    %v1674 = vunpack.c.l.b16 %v390
    %v1675 = vunpack.c.h.b16 %v390
    %v1676 = vunpack.c.l.b16 %v391
    %v1677 = vunpack.c.h.b16 %v391
    %v1678 = vunpack.c.l.b16 %v392
    %v1679 = vunpack.c.h.b16 %v392
    %v1680 = vunpack.c.l.b16 %v393
    %v1681 = vunpack.c.h.b16 %v393
    %v1682 = vunpack.c.l.b16 %v394
    %v1683 = vunpack.c.h.b16 %v394
    %v1684 = vunpack.c.l.b16 %v395
    %v1685 = vunpack.c.h.b16 %v395
    %v1686 = vunpack.c.l.b16 %v396
    %v1687 = vunpack.c.h.b16 %v396
    %v1688 = vunpack.c.l.b16 %v397
    %v1689 = vunpack.c.h.b16 %v397
    %v1690 = vunpack.c.l.b16 %v398
    %v1691 = vunpack.c.h.b16 %v398
    %v1692 = vunpack.c.l.b16 %v399
    %v1693 = vunpack.c.h.b16 %v399
    %v1694 = vunpack.c.l.b16 %v400
    %v1695 = vunpack.c.h.b16 %v400
    %v1696 = vunpack.c.l.b16 %v401
    %v1697 = vunpack.c.h.b16 %v401
    %v1698 = vunpack.c.l.b16 %v402
    %v1699 = vunpack.c.h.b16 %v402
    %v1700 = vunpack.c.l.b16 %v403
    %v1701 = vunpack.c.h.b16 %v403
    %v1702 = vunpack.c.l.b16 %v404
    %v1703 = vunpack.c.h.b16 %v404
    %v1704 = vunpack.c.l.b16 %v405
    %v1705 = vunpack.c.h.b16 %v405
    %v1706 = vunpack.c.l.b16 %v406
    %v1707 = vunpack.c.h.b16 %v406
    %v1708 = vunpack.c.l.b16 %v407
    %v1709 = vunpack.c.h.b16 %v407
    %v1710 = vunpack.c.l.b16 %v408
    %v1711 = vunpack.c.h.b16 %v408
    %v1712 = vunpack.c.l.b16 %v409
    %v1713 = vunpack.c.h.b16 %v409
    %v1714 = vunpack.c.l.b16 %v410
    %v1715 = vunpack.c.h.b16 %v410
    %v1716 = vunpack.c.l.b16 %v411
    %v1717 = vunpack.c.h.b16 %v411
    %v1718 = vunpack.c.l.b16 %v412
    %v1719 = vunpack.c.h.b16 %v412
    %v1720 = vunpack.c.l.b16 %v413
    %v1721 = vunpack.c.h.b16 %v413
    %v1722 = vunpack.c.l.b16 %v414
    %v1723 = vunpack.c.h.b16 %v414
    %v1724 = vunpack.c.l.b16 %v415
    %v1725 = vunpack.c.h.b16 %v415
    %v1726 = vunpack.c.l.b16 %v416
    %v1727 = vunpack.c.h.b16 %v416
    %v1728 = vunpack.c.l.b16 %v417
    %v1729 = vunpack.c.h.b16 %v417
    %v1730 = vunpack.c.l.b16 %v418
    %v1731 = vunpack.c.h.b16 %v418
    %v1732 = vunpack.c.l.b16 %v419
    %v1733 = vunpack.c.h.b16 %v419
    %v1734 = vunpack.c.l.b16 %v420
    %v1735 = vunpack.c.h.b16 %v420
    %v1736 = vunpack.c.l.b16 %v421
    %v1737 = vunpack.c.h.b16 %v421
    %v1738 = vunpack.c.l.b16 %v422
    %v1739 = vunpack.c.h.b16 %v422
    %v1740 = vunpack.c.l.b16 %v423
    %v1741 = vunpack.c.h.b16 %v423
    %v1742 = vunpack.c.l.b16 %v424
    %v1743 = vunpack.c.h.b16 %v424
    %v1744 = vunpack.c.l.b16 %v425
    %v1745 = vunpack.c.h.b16 %v425
    %v1746 = vunpack.c.l.b16 %v426
    %v1747 = vunpack.c.h.b16 %v426
    %v1748 = vunpack.c.l.b16 %v427
    %v1749 = vunpack.c.h.b16 %v427
    %v1750 = vunpack.c.l.b16 %v428
    %v1751 = vunpack.c.h.b16 %v428
    %v1752 = vunpack.c.l.b16 %v429
    %v1753 = vunpack.c.h.b16 %v429
    %v1754 = vunpack.c.l.b16 %v430
    %v1755 = vunpack.c.h.b16 %v430
    %v1756 = vunpack.c.l.b16 %v431
    %v1757 = vunpack.c.h.b16 %v431
    %v1758 = vunpack.c.l.b16 %v432
    %v1759 = vunpack.c.h.b16 %v432
    %v1760 = vunpack.c.l.b16 %v433
    %v1761 = vunpack.c.h.b16 %v433
    %v1762 = vunpack.c.l.b16 %v434
    %v1763 = vunpack.c.h.b16 %v434
    %v1764 = vunpack.c.l.b16 %v435
    %v1765 = vunpack.c.h.b16 %v435
    %v1766 = vunpack.c.l.b16 %v436
    %v1767 = vunpack.c.h.b16 %v436
    %v1768 = vunpack.c.l.b16 %v437
    %v1769 = vunpack.c.h.b16 %v437
    %v1770 = vunpack.c.l.b16 %v438
    %v1771 = vunpack.c.h.b16 %v438
    %v1772 = vunpack.c.l.b16 %v439
    %v1773 = vunpack.c.h.b16 %v439
    %v1774 = vunpack.c.l.b16 %v440
    %v1775 = vunpack.c.h.b16 %v440
    %v1776 = vunpack.c.l.b16 %v441
    %v1777 = vunpack.c.h.b16 %v441
    %v1778 = vunpack.c.l.b16 %v442
    %v1779 = vunpack.c.h.b16 %v442
    %v1780 = vunpack.c.l.b16 %v443
    %v1781 = vunpack.c.h.b16 %v443
    %v1782 = vunpack.c.l.b16 %v444
    %v1783 = vunpack.c.h.b16 %v444
    %v1784 = vunpack.c.l.b16 %v445
    %v1785 = vunpack.c.h.b16 %v445
    %v1786 = vunpack.c.l.b16 %v446
    %v1787 = vunpack.c.h.b16 %v446
    %v1788 = vunpack.c.l.b16 %v447
    %v1789 = vunpack.c.h.b16 %v447
    %v1790 = vunpack.c.l.b16 %v448
    %v1791 = vunpack.c.h.b16 %v448
    %v1792 = vunpack.c.l.b16 %v449
    %v1793 = vunpack.c.h.b16 %v449
    %v1794 = vunpack.c.l.b16 %v450
    %v1795 = vunpack.c.h.b16 %v450
    %v1796 = vunpack.c.l.b16 %v451
    %v1797 = vunpack.c.h.b16 %v451
    %v1798 = vunpack.c.l.b16 %v452
    %v1799 = vunpack.c.h.b16 %v452
    %v1800 = vunpack.c.l.b16 %v453
    %v1801 = vunpack.c.h.b16 %v453
    %v1802 = vunpack.c.l.b16 %v454
    %v1803 = vunpack.c.h.b16 %v454
    %v1804 = vunpack.c.l.b16 %v455
    %v1805 = vunpack.c.h.b16 %v455
    %v1806 = vunpack.c.l.b16 %v456
    %v1807 = vunpack.c.h.b16 %v456
    %v1808 = vunpack.c.l.b16 %v457
    %v1809 = vunpack.c.h.b16 %v457
    %v1810 = vunpack.c.l.b16 %v458
    %v1811 = vunpack.c.h.b16 %v458
    %v1812 = vunpack.c.l.b16 %v459
    %v1813 = vunpack.c.h.b16 %v459
    %v1814 = vunpack.c.l.b16 %v460
    %v1815 = vunpack.c.h.b16 %v460
    %v1816 = vunpack.c.l.b16 %v461
    %v1817 = vunpack.c.h.b16 %v461
    %v1818 = vunpack.c.l.b16 %v462
    %v1819 = vunpack.c.h.b16 %v462
    %v1820 = vunpack.c.l.b16 %v463
    %v1821 = vunpack.c.h.b16 %v463
    %v1822 = vunpack.c.l.b16 %v464
    %v1823 = vunpack.c.h.b16 %v464
    %v1824 = vunpack.c.l.b16 %v465
    %v1825 = vunpack.c.h.b16 %v465
    %v1826 = vunpack.c.l.b16 %v466
    %v1827 = vunpack.c.h.b16 %v466
    %v1828 = vunpack.c.l.b16 %v467
    %v1829 = vunpack.c.h.b16 %v467
    %v1830 = vunpack.c.l.b16 %v468
    %v1831 = vunpack.c.h.b16 %v468
    %v1832 = vunpack.c.l.b16 %v469
    %v1833 = vunpack.c.h.b16 %v469
    %v1834 = vunpack.c.l.b16 %v470
    %v1835 = vunpack.c.h.b16 %v470
    %v1836 = vunpack.c.l.b16 %v471
    %v1837 = vunpack.c.h.b16 %v471
    %v1838 = vunpack.c.l.b16 %v472
    %v1839 = vunpack.c.h.b16 %v472
    %v1840 = vunpack.c.l.b16 %v473
    %v1841 = vunpack.c.h.b16 %v473
    %v1842 = vunpack.c.l.b16 %v474
    %v1843 = vunpack.c.h.b16 %v474
    %v1844 = vunpack.c.l.b16 %v475
    %v1845 = vunpack.c.h.b16 %v475
    %v1846 = vunpack.c.l.b16 %v476
    %v1847 = vunpack.c.h.b16 %v476
    %v1848 = vunpack.c.l.b16 %v477
    %v1849 = vunpack.c.h.b16 %v477
    %v1850 = vunpack.c.l.b16 %v478
    %v1851 = vunpack.c.h.b16 %v478
    %v1852 = vunpack.c.l.b16 %v479
    %v1853 = vunpack.c.h.b16 %v479
    %v1854 = vunpack.c.l.b16 %v480
    %v1855 = vunpack.c.h.b16 %v480
    %v1856 = vunpack.c.l.b16 %v481
    %v1857 = vunpack.c.h.b16 %v481
    %v1858 = vunpack.c.l.b16 %v482
    %v1859 = vunpack.c.h.b16 %v482
    %v1860 = vunpack.c.l.b16 %v483
    %v1861 = vunpack.c.h.b16 %v483
    %v1862 = vunpack.c.l.b16 %v484
    %v1863 = vunpack.c.h.b16 %v484
    %v1864 = vunpack.c.l.b16 %v485
    %v1865 = vunpack.c.h.b16 %v485
    %v1866 = vunpack.c.l.b16 %v486
    %v1867 = vunpack.c.h.b16 %v486
    %v1868 = vunpack.c.l.b16 %v487
    %v1869 = vunpack.c.h.b16 %v487
    %v1870 = vunpack.c.l.b16 %v488
    %v1871 = vunpack.c.h.b16 %v488
    %v1872 = vunpack.c.l.b16 %v489
    %v1873 = vunpack.c.h.b16 %v489
    %v1874 = vunpack.c.l.b16 %v490
    %v1875 = vunpack.c.h.b16 %v490
    %v1876 = vunpack.c.l.b16 %v491
    %v1877 = vunpack.c.h.b16 %v491
    %v1878 = vunpack.c.l.b16 %v492
    %v1879 = vunpack.c.h.b16 %v492
    %v1880 = vunpack.c.l.b16 %v493
    %v1881 = vunpack.c.h.b16 %v493
    %v1882 = vunpack.c.l.b16 %v494
    %v1883 = vunpack.c.h.b16 %v494
    %v1884 = vunpack.c.l.b16 %v495
    %v1885 = vunpack.c.h.b16 %v495
    %v1886 = vunpack.c.l.b16 %v496
    %v1887 = vunpack.c.h.b16 %v496
    %v1888 = vunpack.c.l.b16 %v497
    %v1889 = vunpack.c.h.b16 %v497
    %v1890 = vunpack.c.l.b16 %v498
    %v1891 = vunpack.c.h.b16 %v498
    %v1892 = vunpack.c.l.b16 %v499
    %v1893 = vunpack.c.h.b16 %v499
    %v1894 = vunpack.c.l.b16 %v500
    %v1895 = vunpack.c.h.b16 %v500
    %v1896 = vunpack.c.l.b16 %v501
    %v1897 = vunpack.c.h.b16 %v501
    %v1898 = vunpack.c.l.b16 %v502
    %v1899 = vunpack.c.h.b16 %v502
    %v1900 = vunpack.c.l.b16 %v503
    %v1901 = vunpack.c.h.b16 %v503
    %v1902 = vpack.c.b16 %v1014, %v1006
    %v1903 = vpack.c.b16 %v1015, %v1007
    %v1904 = vpack.c.b16 %v1016, %v1008
    %v1905 = vpack.c.b16 %v1017, %v1009
    %v1906 = vpack.c.b16 %v1018, %v1010
    %v1907 = vpack.c.b16 %v1019, %v1011
    %v1908 = vpack.c.b16 %v1020, %v1012
    %v1909 = vpack.c.b16 %v1021, %v1013
    %v1910 = vpack.c.b16 %v1030, %v1022
    %v1911 = vpack.c.b16 %v1031, %v1023
    %v1912 = vpack.c.b16 %v1032, %v1024
    %v1913 = vpack.c.b16 %v1033, %v1025
    %v1914 = vpack.c.b16 %v1034, %v1026
    %v1915 = vpack.c.b16 %v1035, %v1027
    %v1916 = vpack.c.b16 %v1036, %v1028
    %v1917 = vpack.c.b16 %v1037, %v1029
    %v1918 = vpack.c.b16 %v1046, %v1038
    %v1919 = vpack.c.b16 %v1047, %v1039
    %v1920 = vpack.c.b16 %v1048, %v1040
    %v1921 = vpack.c.b16 %v1049, %v1041
    %v1922 = vpack.c.b16 %v1050, %v1042
    %v1923 = vpack.c.b16 %v1051, %v1043
    %v1924 = vpack.c.b16 %v1052, %v1044
    %v1925 = vpack.c.b16 %v1053, %v1045
    %v1926 = vpack.c.b16 %v1062, %v1054
    %v1927 = vpack.c.b16 %v1063, %v1055
    %v1928 = vpack.c.b16 %v1064, %v1056
    %v1929 = vpack.c.b16 %v1065, %v1057
    %v1930 = vpack.c.b16 %v1066, %v1058
    %v1931 = vpack.c.b16 %v1067, %v1059
    %v1932 = vpack.c.b16 %v1068, %v1060
    %v1933 = vpack.c.b16 %v1069, %v1061
    %v1934 = vpack.c.b16 %v1078, %v1070
    %v1935 = vpack.c.b16 %v1079, %v1071
    %v1936 = vpack.c.b16 %v1080, %v1072
    %v1937 = vpack.c.b16 %v1081, %v1073
    %v1938 = vpack.c.b16 %v1082, %v1074
    %v1939 = vpack.c.b16 %v1083, %v1075
    %v1940 = vpack.c.b16 %v1084, %v1076
    %v1941 = vpack.c.b16 %v1085, %v1077
    %v1942 = vpack.c.b16 %v1094, %v1086
    %v1943 = vpack.c.b16 %v1095, %v1087
    %v1944 = vpack.c.b16 %v1096, %v1088
    %v1945 = vpack.c.b16 %v1097, %v1089
    %v1946 = vpack.c.b16 %v1098, %v1090
    %v1947 = vpack.c.b16 %v1099, %v1091
    %v1948 = vpack.c.b16 %v1100, %v1092
    %v1949 = vpack.c.b16 %v1101, %v1093
    %v1950 = vpack.c.b16 %v1110, %v1102
    %v1951 = vpack.c.b16 %v1111, %v1103
    %v1952 = vpack.c.b16 %v1112, %v1104
    %v1953 = vpack.c.b16 %v1113, %v1105
    %v1954 = vpack.c.b16 %v1114, %v1106
    %v1955 = vpack.c.b16 %v1115, %v1107
    %v1956 = vpack.c.b16 %v1116, %v1108
    %v1957 = vpack.c.b16 %v1117, %v1109
    %v1958 = vpack.c.b16 %v1126, %v1118
    %v1959 = vpack.c.b16 %v1127, %v1119
    %v1960 = vpack.c.b16 %v1128, %v1120
    %v1961 = vpack.c.b16 %v1129, %v1121
    %v1962 = vpack.c.b16 %v1130, %v1122
    %v1963 = vpack.c.b16 %v1131, %v1123
    %v1964 = vpack.c.b16 %v1132, %v1124
    %v1965 = vpack.c.b16 %v1133, %v1125
    %v1966 = vpack.c.b16 %v1142, %v1134
    %v1967 = vpack.c.b16 %v1143, %v1135
    %v1968 = vpack.c.b16 %v1144, %v1136
    %v1969 = vpack.c.b16 %v1145, %v1137
    %v1970 = vpack.c.b16 %v1146, %v1138
    %v1971 = vpack.c.b16 %v1147, %v1139
    %v1972 = vpack.c.b16 %v1148, %v1140
    %v1973 = vpack.c.b16 %v1149, %v1141
    %v1974 = vpack.c.b16 %v1158, %v1150
    %v1975 = vpack.c.b16 %v1159, %v1151
    %v1976 = vpack.c.b16 %v1160, %v1152
    %v1977 = vpack.c.b16 %v1161, %v1153
    %v1978 = vpack.c.b16 %v1162, %v1154
    %v1979 = vpack.c.b16 %v1163, %v1155
    %v1980 = vpack.c.b16 %v1164, %v1156
    %v1981 = vpack.c.b16 %v1165, %v1157
    %v1982 = vpack.c.b16 %v1174, %v1166
    %v1983 = vpack.c.b16 %v1175, %v1167
    %v1984 = vpack.c.b16 %v1176, %v1168
    %v1985 = vpack.c.b16 %v1177, %v1169
    %v1986 = vpack.c.b16 %v1178, %v1170
    %v1987 = vpack.c.b16 %v1179, %v1171
    %v1988 = vpack.c.b16 %v1180, %v1172
    %v1989 = vpack.c.b16 %v1181, %v1173
    %v1990 = vpack.c.b16 %v1190, %v1182
    %v1991 = vpack.c.b16 %v1191, %v1183
    %v1992 = vpack.c.b16 %v1192, %v1184
    %v1993 = vpack.c.b16 %v1193, %v1185
    %v1994 = vpack.c.b16 %v1194, %v1186
    %v1995 = vpack.c.b16 %v1195, %v1187
    %v1996 = vpack.c.b16 %v1196, %v1188
    %v1997 = vpack.c.b16 %v1197, %v1189
    %v1998 = vpack.c.b16 %v1206, %v1198
    %v1999 = vpack.c.b16 %v1207, %v1199
    %v2000 = vpack.c.b16 %v1208, %v1200
    %v2001 = vpack.c.b16 %v1209, %v1201
    %v2002 = vpack.c.b16 %v1210, %v1202
    %v2003 = vpack.c.b16 %v1211, %v1203
    %v2004 = vpack.c.b16 %v1212, %v1204
    %v2005 = vpack.c.b16 %v1213, %v1205
    %v2006 = vpack.c.b16 %v1222, %v1214
    %v2007 = vpack.c.b16 %v1223, %v1215
    %v2008 = vpack.c.b16 %v1224, %v1216
    %v2009 = vpack.c.b16 %v1225, %v1217
    %v2010 = vpack.c.b16 %v1226, %v1218
    %v2011 = vpack.c.b16 %v1227, %v1219
    %v2012 = vpack.c.b16 %v1228, %v1220
    %v2013 = vpack.c.b16 %v1229, %v1221
    %v2014 = vpack.c.b16 %v1238, %v1230
    %v2015 = vpack.c.b16 %v1239, %v1231
    %v2016 = vpack.c.b16 %v1240, %v1232
    %v2017 = vpack.c.b16 %v1241, %v1233
    %v2018 = vpack.c.b16 %v1242, %v1234
    %v2019 = vpack.c.b16 %v1243, %v1235
    %v2020 = vpack.c.b16 %v1244, %v1236
    %v2021 = vpack.c.b16 %v1245, %v1237
    %v2022 = vpack.c.b16 %v1254, %v1246
    %v2023 = vpack.c.b16 %v1255, %v1247
    %v2024 = vpack.c.b16 %v1256, %v1248
    %v2025 = vpack.c.b16 %v1257, %v1249
    %v2026 = vpack.c.b16 %v1258, %v1250
    %v2027 = vpack.c.b16 %v1259, %v1251
    %v2028 = vpack.c.b16 %v1260, %v1252
    %v2029 = vpack.c.b16 %v1261, %v1253
    %v2030 = vpack.c.b16 %v1270, %v1262
    %v2031 = vpack.c.b16 %v1271, %v1263
    %v2032 = vpack.c.b16 %v1272, %v1264
    %v2033 = vpack.c.b16 %v1273, %v1265
    %v2034 = vpack.c.b16 %v1274, %v1266
    %v2035 = vpack.c.b16 %v1275, %v1267
    %v2036 = vpack.c.b16 %v1276, %v1268
    %v2037 = vpack.c.b16 %v1277, %v1269
    %v2038 = vpack.c.b16 %v1286, %v1278
    %v2039 = vpack.c.b16 %v1287, %v1279
    %v2040 = vpack.c.b16 %v1288, %v1280
    %v2041 = vpack.c.b16 %v1289, %v1281
    %v2042 = vpack.c.b16 %v1290, %v1282
    %v2043 = vpack.c.b16 %v1291, %v1283
    %v2044 = vpack.c.b16 %v1292, %v1284
    %v2045 = vpack.c.b16 %v1293, %v1285
    %v2046 = vpack.c.b16 %v1302, %v1294
    %v2047 = vpack.c.b16 %v1303, %v1295
    %v2048 = vpack.c.b16 %v1304, %v1296
    %v2049 = vpack.c.b16 %v1305, %v1297
    %v2050 = vpack.c.b16 %v1306, %v1298
    %v2051 = vpack.c.b16 %v1307, %v1299
    %v2052 = vpack.c.b16 %v1308, %v1300
    %v2053 = vpack.c.b16 %v1309, %v1301
    %v2054 = vpack.c.b16 %v1318, %v1310
    %v2055 = vpack.c.b16 %v1319, %v1311
    %v2056 = vpack.c.b16 %v1320, %v1312
    %v2057 = vpack.c.b16 %v1321, %v1313
    %v2058 = vpack.c.b16 %v1322, %v1314
    %v2059 = vpack.c.b16 %v1323, %v1315
    %v2060 = vpack.c.b16 %v1324, %v1316
    %v2061 = vpack.c.b16 %v1325, %v1317
    %v2062 = vpack.c.b16 %v1334, %v1326
    %v2063 = vpack.c.b16 %v1335, %v1327
    %v2064 = vpack.c.b16 %v1336, %v1328
    %v2065 = vpack.c.b16 %v1337, %v1329
    %v2066 = vpack.c.b16 %v1338, %v1330
    %v2067 = vpack.c.b16 %v1339, %v1331
    %v2068 = vpack.c.b16 %v1340, %v1332
    %v2069 = vpack.c.b16 %v1341, %v1333
    %v2070 = vpack.c.b16 %v1350, %v1342
    %v2071 = vpack.c.b16 %v1351, %v1343
    %v2072 = vpack.c.b16 %v1352, %v1344
    %v2073 = vpack.c.b16 %v1353, %v1345
    %v2074 = vpack.c.b16 %v1354, %v1346
    %v2075 = vpack.c.b16 %v1355, %v1347
    %v2076 = vpack.c.b16 %v1356, %v1348
    %v2077 = vpack.c.b16 %v1357, %v1349
    %v2078 = vpack.c.b16 %v1366, %v1358
    %v2079 = vpack.c.b16 %v1367, %v1359
    %v2080 = vpack.c.b16 %v1368, %v1360
    %v2081 = vpack.c.b16 %v1369, %v1361
    %v2082 = vpack.c.b16 %v1370, %v1362
    %v2083 = vpack.c.b16 %v1371, %v1363
    %v2084 = vpack.c.b16 %v1372, %v1364
    %v2085 = vpack.c.b16 %v1373, %v1365
    %v2086 = vpack.c.b16 %v1382, %v1374
    %v2087 = vpack.c.b16 %v1383, %v1375
    %v2088 = vpack.c.b16 %v1384, %v1376
    %v2089 = vpack.c.b16 %v1385, %v1377
    %v2090 = vpack.c.b16 %v1386, %v1378
    %v2091 = vpack.c.b16 %v1387, %v1379
    %v2092 = vpack.c.b16 %v1388, %v1380
    %v2093 = vpack.c.b16 %v1389, %v1381
    %v2094 = vpack.c.b16 %v1398, %v1390
    %v2095 = vpack.c.b16 %v1399, %v1391
    %v2096 = vpack.c.b16 %v1400, %v1392
    %v2097 = vpack.c.b16 %v1401, %v1393
    %v2098 = vpack.c.b16 %v1402, %v1394
    %v2099 = vpack.c.b16 %v1403, %v1395
    %v2100 = vpack.c.b16 %v1404, %v1396
    %v2101 = vpack.c.b16 %v1405, %v1397
    %v2102 = vpack.c.b16 %v1414, %v1406
    %v2103 = vpack.c.b16 %v1415, %v1407
    %v2104 = vpack.c.b16 %v1416, %v1408
    %v2105 = vpack.c.b16 %v1417, %v1409
    %v2106 = vpack.c.b16 %v1418, %v1410
    %v2107 = vpack.c.b16 %v1419, %v1411
    %v2108 = vpack.c.b16 %v1420, %v1412
    %v2109 = vpack.c.b16 %v1421, %v1413
    %v2110 = vpack.c.b16 %v1430, %v1422
    %v2111 = vpack.c.b16 %v1431, %v1423
    %v2112 = vpack.c.b16 %v1432, %v1424
    %v2113 = vpack.c.b16 %v1433, %v1425
    %v2114 = vpack.c.b16 %v1434, %v1426
    %v2115 = vpack.c.b16 %v1435, %v1427
    %v2116 = vpack.c.b16 %v1436, %v1428
    %v2117 = vpack.c.b16 %v1437, %v1429
    %v2118 = vpack.c.b16 %v1446, %v1438
    %v2119 = vpack.c.b16 %v1447, %v1439
    %v2120 = vpack.c.b16 %v1448, %v1440
    %v2121 = vpack.c.b16 %v1449, %v1441
    %v2122 = vpack.c.b16 %v1450, %v1442
    %v2123 = vpack.c.b16 %v1451, %v1443
    %v2124 = vpack.c.b16 %v1452, %v1444
    %v2125 = vpack.c.b16 %v1453, %v1445
    %v2126 = vpack.c.b16 %v1462, %v1454
    %v2127 = vpack.c.b16 %v1463, %v1455
    %v2128 = vpack.c.b16 %v1464, %v1456
    %v2129 = vpack.c.b16 %v1465, %v1457
    %v2130 = vpack.c.b16 %v1466, %v1458
    %v2131 = vpack.c.b16 %v1467, %v1459
    %v2132 = vpack.c.b16 %v1468, %v1460
    %v2133 = vpack.c.b16 %v1469, %v1461
    %v2134 = vpack.c.b16 %v1478, %v1470
    %v2135 = vpack.c.b16 %v1479, %v1471
    %v2136 = vpack.c.b16 %v1480, %v1472
    %v2137 = vpack.c.b16 %v1481, %v1473
    %v2138 = vpack.c.b16 %v1482, %v1474
    %v2139 = vpack.c.b16 %v1483, %v1475
    %v2140 = vpack.c.b16 %v1484, %v1476
    %v2141 = vpack.c.b16 %v1485, %v1477
    %v2142 = vpack.c.b16 %v1494, %v1486
    %v2143 = vpack.c.b16 %v1495, %v1487
    %v2144 = vpack.c.b16 %v1496, %v1488
    %v2145 = vpack.c.b16 %v1497, %v1489
    %v2146 = vpack.c.b16 %v1498, %v1490
    %v2147 = vpack.c.b16 %v1499, %v1491
    %v2148 = vpack.c.b16 %v1500, %v1492
    %v2149 = vpack.c.b16 %v1501, %v1493
    %v2150 = vpack.c.b16 %v1510, %v1502
    %v2151 = vpack.c.b16 %v1511, %v1503
    %v2152 = vpack.c.b16 %v1512, %v1504
    %v2153 = vpack.c.b16 %v1513, %v1505
    %v2154 = vpack.c.b16 %v1514, %v1506
    %v2155 = vpack.c.b16 %v1515, %v1507
    %v2156 = vpack.c.b16 %v1516, %v1508
    %v2157 = vpack.c.b16 %v1517, %v1509
    %v2158 = vpack.c.b16 %v1526, %v1518
    %v2159 = vpack.c.b16 %v1527, %v1519
    %v2160 = vpack.c.b16 %v1528, %v1520
    %v2161 = vpack.c.b16 %v1529, %v1521
    %v2162 = vpack.c.b16 %v1530, %v1522
    %v2163 = vpack.c.b16 %v1531, %v1523
    %v2164 = vpack.c.b16 %v1532, %v1524
    %v2165 = vpack.c.b16 %v1533, %v1525
    %v2166 = vpack.c.b16 %v1542, %v1534
    %v2167 = vpack.c.b16 %v1543, %v1535
    %v2168 = vpack.c.b16 %v1544, %v1536
    %v2169 = vpack.c.b16 %v1545, %v1537
    %v2170 = vpack.c.b16 %v1546, %v1538
    %v2171 = vpack.c.b16 %v1547, %v1539
    %v2172 = vpack.c.b16 %v1548, %v1540
    %v2173 = vpack.c.b16 %v1549, %v1541
    %v2174 = vpack.c.b16 %v1558, %v1550
    %v2175 = vpack.c.b16 %v1559, %v1551
    %v2176 = vpack.c.b16 %v1560, %v1552
    %v2177 = vpack.c.b16 %v1561, %v1553
    %v2178 = vpack.c.b16 %v1562, %v1554
    %v2179 = vpack.c.b16 %v1563, %v1555
    %v2180 = vpack.c.b16 %v1564, %v1556
    %v2181 = vpack.c.b16 %v1565, %v1557
    %v2182 = vpack.c.b16 %v1574, %v1566
    %v2183 = vpack.c.b16 %v1575, %v1567
    %v2184 = vpack.c.b16 %v1576, %v1568
    %v2185 = vpack.c.b16 %v1577, %v1569
    %v2186 = vpack.c.b16 %v1578, %v1570
    %v2187 = vpack.c.b16 %v1579, %v1571
    %v2188 = vpack.c.b16 %v1580, %v1572
    %v2189 = vpack.c.b16 %v1581, %v1573
    %v2190 = vpack.c.b16 %v1590, %v1582
    %v2191 = vpack.c.b16 %v1591, %v1583
    %v2192 = vpack.c.b16 %v1592, %v1584
    %v2193 = vpack.c.b16 %v1593, %v1585
    %v2194 = vpack.c.b16 %v1594, %v1586
    %v2195 = vpack.c.b16 %v1595, %v1587
    %v2196 = vpack.c.b16 %v1596, %v1588
    %v2197 = vpack.c.b16 %v1597, %v1589
    %v2198 = vpack.c.b16 %v1606, %v1598
    %v2199 = vpack.c.b16 %v1607, %v1599
    %v2200 = vpack.c.b16 %v1608, %v1600
    %v2201 = vpack.c.b16 %v1609, %v1601
    %v2202 = vpack.c.b16 %v1610, %v1602
    %v2203 = vpack.c.b16 %v1611, %v1603
    %v2204 = vpack.c.b16 %v1612, %v1604
    %v2205 = vpack.c.b16 %v1613, %v1605
    %v2206 = vpack.c.b16 %v1622, %v1614
    %v2207 = vpack.c.b16 %v1623, %v1615
    %v2208 = vpack.c.b16 %v1624, %v1616
    %v2209 = vpack.c.b16 %v1625, %v1617
    %v2210 = vpack.c.b16 %v1626, %v1618
    %v2211 = vpack.c.b16 %v1627, %v1619
    %v2212 = vpack.c.b16 %v1628, %v1620
    %v2213 = vpack.c.b16 %v1629, %v1621
    %v2214 = vpack.c.b16 %v1638, %v1630
    %v2215 = vpack.c.b16 %v1639, %v1631
    %v2216 = vpack.c.b16 %v1640, %v1632
    %v2217 = vpack.c.b16 %v1641, %v1633
    %v2218 = vpack.c.b16 %v1642, %v1634
    %v2219 = vpack.c.b16 %v1643, %v1635
    %v2220 = vpack.c.b16 %v1644, %v1636
    %v2221 = vpack.c.b16 %v1645, %v1637
    %v2222 = vpack.c.b16 %v1654, %v1646
    %v2223 = vpack.c.b16 %v1655, %v1647
    %v2224 = vpack.c.b16 %v1656, %v1648
    %v2225 = vpack.c.b16 %v1657, %v1649
    %v2226 = vpack.c.b16 %v1658, %v1650
    %v2227 = vpack.c.b16 %v1659, %v1651
    %v2228 = vpack.c.b16 %v1660, %v1652
    %v2229 = vpack.c.b16 %v1661, %v1653
    %v2230 = vpack.c.b16 %v1670, %v1662
    %v2231 = vpack.c.b16 %v1671, %v1663
    %v2232 = vpack.c.b16 %v1672, %v1664
    %v2233 = vpack.c.b16 %v1673, %v1665
    %v2234 = vpack.c.b16 %v1674, %v1666
    %v2235 = vpack.c.b16 %v1675, %v1667
    %v2236 = vpack.c.b16 %v1676, %v1668
    %v2237 = vpack.c.b16 %v1677, %v1669
    %v2238 = vpack.c.b16 %v1686, %v1678
    %v2239 = vpack.c.b16 %v1687, %v1679
    %v2240 = vpack.c.b16 %v1688, %v1680
    %v2241 = vpack.c.b16 %v1689, %v1681
    %v2242 = vpack.c.b16 %v1690, %v1682
    %v2243 = vpack.c.b16 %v1691, %v1683
    %v2244 = vpack.c.b16 %v1692, %v1684
    %v2245 = vpack.c.b16 %v1693, %v1685
    %v2246 = vpack.c.b16 %v1702, %v1694
    %v2247 = vpack.c.b16 %v1703, %v1695
    %v2248 = vpack.c.b16 %v1704, %v1696
    %v2249 = vpack.c.b16 %v1705, %v1697
    %v2250 = vpack.c.b16 %v1706, %v1698
    %v2251 = vpack.c.b16 %v1707, %v1699
    %v2252 = vpack.c.b16 %v1708, %v1700
    %v2253 = vpack.c.b16 %v1709, %v1701
    %v2254 = vpack.c.b16 %v1718, %v1710
    %v2255 = vpack.c.b16 %v1719, %v1711
    %v2256 = vpack.c.b16 %v1720, %v1712
    %v2257 = vpack.c.b16 %v1721, %v1713
    %v2258 = vpack.c.b16 %v1722, %v1714
    %v2259 = vpack.c.b16 %v1723, %v1715
    %v2260 = vpack.c.b16 %v1724, %v1716
    %v2261 = vpack.c.b16 %v1725, %v1717
    %v2262 = vpack.c.b16 %v1734, %v1726
    %v2263 = vpack.c.b16 %v1735, %v1727
    %v2264 = vpack.c.b16 %v1736, %v1728
    %v2265 = vpack.c.b16 %v1737, %v1729
    %v2266 = vpack.c.b16 %v1738, %v1730
    %v2267 = vpack.c.b16 %v1739, %v1731
    %v2268 = vpack.c.b16 %v1740, %v1732
    %v2269 = vpack.c.b16 %v1741, %v1733
    %v2270 = vpack.c.b16 %v1750, %v1742
    %v2271 = vpack.c.b16 %v1751, %v1743
    %v2272 = vpack.c.b16 %v1752, %v1744
    %v2273 = vpack.c.b16 %v1753, %v1745
    %v2274 = vpack.c.b16 %v1754, %v1746
    %v2275 = vpack.c.b16 %v1755, %v1747
    %v2276 = vpack.c.b16 %v1756, %v1748
    %v2277 = vpack.c.b16 %v1757, %v1749
    %v2278 = vpack.c.b16 %v1766, %v1758
    %v2279 = vpack.c.b16 %v1767, %v1759
    %v2280 = vpack.c.b16 %v1768, %v1760
    %v2281 = vpack.c.b16 %v1769, %v1761
    %v2282 = vpack.c.b16 %v1770, %v1762
    %v2283 = vpack.c.b16 %v1771, %v1763
    %v2284 = vpack.c.b16 %v1772, %v1764
    %v2285 = vpack.c.b16 %v1773, %v1765
    %v2286 = vpack.c.b16 %v1782, %v1774
    %v2287 = vpack.c.b16 %v1783, %v1775
    %v2288 = vpack.c.b16 %v1784, %v1776
    %v2289 = vpack.c.b16 %v1785, %v1777
    %v2290 = vpack.c.b16 %v1786, %v1778
    %v2291 = vpack.c.b16 %v1787, %v1779
    %v2292 = vpack.c.b16 %v1788, %v1780
    %v2293 = vpack.c.b16 %v1789, %v1781
    %v2294 = vpack.c.b16 %v1798, %v1790
    %v2295 = vpack.c.b16 %v1799, %v1791
    %v2296 = vpack.c.b16 %v1800, %v1792
    %v2297 = vpack.c.b16 %v1801, %v1793
    %v2298 = vpack.c.b16 %v1802, %v1794
    %v2299 = vpack.c.b16 %v1803, %v1795
    %v2300 = vpack.c.b16 %v1804, %v1796
    %v2301 = vpack.c.b16 %v1805, %v1797
    %v2302 = vpack.c.b16 %v1814, %v1806
    %v2303 = vpack.c.b16 %v1815, %v1807
    %v2304 = vpack.c.b16 %v1816, %v1808
    %v2305 = vpack.c.b16 %v1817, %v1809
    %v2306 = vpack.c.b16 %v1818, %v1810
    %v2307 = vpack.c.b16 %v1819, %v1811
    %v2308 = vpack.c.b16 %v1820, %v1812
    %v2309 = vpack.c.b16 %v1821, %v1813
    %v2310 = vpack.c.b16 %v1830, %v1822
    %v2311 = vpack.c.b16 %v1831, %v1823
    %v2312 = vpack.c.b16 %v1832, %v1824
    %v2313 = vpack.c.b16 %v1833, %v1825
    %v2314 = vpack.c.b16 %v1834, %v1826
    %v2315 = vpack.c.b16 %v1835, %v1827
    %v2316 = vpack.c.b16 %v1836, %v1828
    %v2317 = vpack.c.b16 %v1837, %v1829
    %v2318 = vpack.c.b16 %v1846, %v1838
    %v2319 = vpack.c.b16 %v1847, %v1839
    %v2320 = vpack.c.b16 %v1848, %v1840
    %v2321 = vpack.c.b16 %v1849, %v1841
    %v2322 = vpack.c.b16 %v1850, %v1842
    %v2323 = vpack.c.b16 %v1851, %v1843
    %v2324 = vpack.c.b16 %v1852, %v1844
    %v2325 = vpack.c.b16 %v1853, %v1845
    %v2326 = vpack.c.b16 %v1862, %v1854
    %v2327 = vpack.c.b16 %v1863, %v1855
    %v2328 = vpack.c.b16 %v1864, %v1856
    %v2329 = vpack.c.b16 %v1865, %v1857
    %v2330 = vpack.c.b16 %v1866, %v1858
    %v2331 = vpack.c.b16 %v1867, %v1859
    %v2332 = vpack.c.b16 %v1868, %v1860
    %v2333 = vpack.c.b16 %v1869, %v1861
    %v2334 = vpack.c.b16 %v1878, %v1870
    %v2335 = vpack.c.b16 %v1879, %v1871
    %v2336 = vpack.c.b16 %v1880, %v1872
    %v2337 = vpack.c.b16 %v1881, %v1873
    %v2338 = vpack.c.b16 %v1882, %v1874
    %v2339 = vpack.c.b16 %v1883, %v1875
    %v2340 = vpack.c.b16 %v1884, %v1876
    %v2341 = vpack.c.b16 %v1885, %v1877
    %v2342 = vpack.c.b16 %v1894, %v1886
    %v2343 = vpack.c.b16 %v1895, %v1887
    %v2344 = vpack.c.b16 %v1896, %v1888
    %v2345 = vpack.c.b16 %v1897, %v1889
    %v2346 = vpack.c.b16 %v1898, %v1890
    %v2347 = vpack.c.b16 %v1899, %v1891
    %v2348 = vpack.c.b16 %v1900, %v1892
    %v2349 = vpack.c.b16 %v1901, %v1893
    %2798 = vmatpush.bf16.msra.mxu0 %v1958
    %2799 = vmatpush.bf16.msra.mxu0 %v1950
    %2800 = vmatpush.bf16.msra.mxu0 %v1942
    %2801 = vmatpush.bf16.msra.mxu0 %v1934
    %2802 = vmatpush.bf16.msra.mxu0 %v1926
    %2803 = vmatpush.bf16.msra.mxu0 %v1918
    %2804 = vmatpush.bf16.msra.mxu0 %v1910
    %2805 = vmatpush.bf16.msra.mxu0 %v1902
    %2806 = vmatmul.bf16.gmra.mxu0 %v544
    %v2807 = vpop.f32.mrf.mxu0
    %v2808 = vadd.f32 %v506, %v2807
    %v2809 = vpop.f32.mrf.mxu0
    %v2810 = vadd.f32 %v506, %v2809
    %2811 = vdwg.mxu0
    %2812 = vmatpush.bf16.msra.mxu0 %v2022
    %2813 = vmatpush.bf16.msra.mxu0 %v2014
    %2814 = vmatpush.bf16.msra.mxu0 %v2006
    %2815 = vmatpush.bf16.msra.mxu0 %v1998
    %2816 = vmatpush.bf16.msra.mxu0 %v1990
    %2817 = vmatpush.bf16.msra.mxu0 %v1982
    %2818 = vmatpush.bf16.msra.mxu0 %v1974
    %2819 = vmatpush.bf16.msra.mxu0 %v1966
    %2820 = vmatmul.bf16.gmra.mxu0 %v545
    %v2821 = vpop.f32.mrf.mxu0
    %v2822 = vadd.f32 %v2808, %v2821
    %v2823 = vpop.f32.mrf.mxu0
    %v2824 = vadd.f32 %v2810, %v2823
    %2825 = vdwg.mxu0
    %2826 = vmatpush.bf16.msra.mxu0 %v2086
    %2827 = vmatpush.bf16.msra.mxu0 %v2078
    %2828 = vmatpush.bf16.msra.mxu0 %v2070
    %2829 = vmatpush.bf16.msra.mxu0 %v2062
    %2830 = vmatpush.bf16.msra.mxu0 %v2054
    %2831 = vmatpush.bf16.msra.mxu0 %v2046
    %2832 = vmatpush.bf16.msra.mxu0 %v2038
    %2833 = vmatpush.bf16.msra.mxu0 %v2030
    %2834 = vmatmul.bf16.gmra.mxu0 %v546
    %v2835 = vpop.f32.mrf.mxu0
    %v2836 = vadd.f32 %v2822, %v2835
    %v2837 = vpop.f32.mrf.mxu0
    %v2838 = vadd.f32 %v2824, %v2837
    %2839 = vdwg.mxu0
    %2840 = vmatpush.bf16.msra.mxu0 %v2150
    %2841 = vmatpush.bf16.msra.mxu0 %v2142
    %2842 = vmatpush.bf16.msra.mxu0 %v2134
    %2843 = vmatpush.bf16.msra.mxu0 %v2126
    %2844 = vmatpush.bf16.msra.mxu0 %v2118
    %2845 = vmatpush.bf16.msra.mxu0 %v2110
    %2846 = vmatpush.bf16.msra.mxu0 %v2102
    %2847 = vmatpush.bf16.msra.mxu0 %v2094
    %2848 = vmatmul.bf16.gmra.mxu0 %v547
    %v2849 = vpop.f32.mrf.mxu0
    %v2850 = vadd.f32 %v2836, %v2849
    %v2851 = vpop.f32.mrf.mxu0
    %v2852 = vadd.f32 %v2838, %v2851
    %2853 = vdwg.mxu0
    %2854 = vmatpush.bf16.msra.mxu0 %v2214
    %2855 = vmatpush.bf16.msra.mxu0 %v2206
    %2856 = vmatpush.bf16.msra.mxu0 %v2198
    %2857 = vmatpush.bf16.msra.mxu0 %v2190
    %2858 = vmatpush.bf16.msra.mxu0 %v2182
    %2859 = vmatpush.bf16.msra.mxu0 %v2174
    %2860 = vmatpush.bf16.msra.mxu0 %v2166
    %2861 = vmatpush.bf16.msra.mxu0 %v2158
    %2862 = vmatmul.bf16.gmra.mxu0 %v548
    %v2863 = vpop.f32.mrf.mxu0
    %v2864 = vadd.f32 %v2850, %v2863
    %v2865 = vpop.f32.mrf.mxu0
    %v2866 = vadd.f32 %v2852, %v2865
    %2867 = vdwg.mxu0
    %2868 = vmatpush.bf16.msra.mxu0 %v2278
    %2869 = vmatpush.bf16.msra.mxu0 %v2270
    %2870 = vmatpush.bf16.msra.mxu0 %v2262
    %2871 = vmatpush.bf16.msra.mxu0 %v2254
    %2872 = vmatpush.bf16.msra.mxu0 %v2246
    %2873 = vmatpush.bf16.msra.mxu0 %v2238
    %2874 = vmatpush.bf16.msra.mxu0 %v2230
    %2875 = vmatpush.bf16.msra.mxu0 %v2222
    %2876 = vmatmul.bf16.gmra.mxu0 %v549
    %v2877 = vpop.f32.mrf.mxu0
    %v2878 = vadd.f32 %v2864, %v2877
    %v2879 = vpop.f32.mrf.mxu0
    %v2880 = vadd.f32 %v2866, %v2879
    %2881 = vdwg.mxu0
    %2882 = vmatpush.bf16.msra.mxu0 %v2342
    %2883 = vmatpush.bf16.msra.mxu0 %v2334
    %2884 = vmatpush.bf16.msra.mxu0 %v2326
    %2885 = vmatpush.bf16.msra.mxu0 %v2318
    %2886 = vmatpush.bf16.msra.mxu0 %v2310
    %2887 = vmatpush.bf16.msra.mxu0 %v2302
    %2888 = vmatpush.bf16.msra.mxu0 %v2294
    %2889 = vmatpush.bf16.msra.mxu0 %v2286
    %2890 = vmatmul.bf16.gmra.mxu0 %v550
    %v2891 = vpop.f32.mrf.mxu0
    %v2892 = vadd.f32 %v2878, %v2891
    %v2893 = vpop.f32.mrf.mxu0
    %v2894 = vadd.f32 %v2880, %v2893
    %2895 = vdwg.mxu0
    %2896 = vmatpush.bf16.msra.mxu0 %v1959
    %2897 = vmatpush.bf16.msra.mxu0 %v1951
    %2898 = vmatpush.bf16.msra.mxu0 %v1943
    %2899 = vmatpush.bf16.msra.mxu0 %v1935
    %2900 = vmatpush.bf16.msra.mxu0 %v1927
    %2901 = vmatpush.bf16.msra.mxu0 %v1919
    %2902 = vmatpush.bf16.msra.mxu0 %v1911
    %2903 = vmatpush.bf16.msra.mxu0 %v1903
    %2904 = vmatmul.bf16.gmra.mxu0 %v544
    %v2905 = vpop.f32.mrf.mxu0
    %v2906 = vadd.f32 %v507, %v2905
    %v2907 = vpop.f32.mrf.mxu0
    %v2908 = vadd.f32 %v507, %v2907
    %2909 = vdwg.mxu0
    %2910 = vmatpush.bf16.msra.mxu0 %v2023
    %2911 = vmatpush.bf16.msra.mxu0 %v2015
    %2912 = vmatpush.bf16.msra.mxu0 %v2007
    %2913 = vmatpush.bf16.msra.mxu0 %v1999
    %2914 = vmatpush.bf16.msra.mxu0 %v1991
    %2915 = vmatpush.bf16.msra.mxu0 %v1983
    %2916 = vmatpush.bf16.msra.mxu0 %v1975
    %2917 = vmatpush.bf16.msra.mxu0 %v1967
    %2918 = vmatmul.bf16.gmra.mxu0 %v545
    %v2919 = vpop.f32.mrf.mxu0
    %v2920 = vadd.f32 %v2906, %v2919
    %v2921 = vpop.f32.mrf.mxu0
    %v2922 = vadd.f32 %v2908, %v2921
    %2923 = vdwg.mxu0
    %2924 = vmatpush.bf16.msra.mxu0 %v2087
    %2925 = vmatpush.bf16.msra.mxu0 %v2079
    %2926 = vmatpush.bf16.msra.mxu0 %v2071
    %2927 = vmatpush.bf16.msra.mxu0 %v2063
    %2928 = vmatpush.bf16.msra.mxu0 %v2055
    %2929 = vmatpush.bf16.msra.mxu0 %v2047
    %2930 = vmatpush.bf16.msra.mxu0 %v2039
    %2931 = vmatpush.bf16.msra.mxu0 %v2031
    %2932 = vmatmul.bf16.gmra.mxu0 %v546
    %v2933 = vpop.f32.mrf.mxu0
    %v2934 = vadd.f32 %v2920, %v2933
    %v2935 = vpop.f32.mrf.mxu0
    %v2936 = vadd.f32 %v2922, %v2935
    %2937 = vdwg.mxu0
    %2938 = vmatpush.bf16.msra.mxu0 %v2151
    %2939 = vmatpush.bf16.msra.mxu0 %v2143
    %2940 = vmatpush.bf16.msra.mxu0 %v2135
    %2941 = vmatpush.bf16.msra.mxu0 %v2127
    %2942 = vmatpush.bf16.msra.mxu0 %v2119
    %2943 = vmatpush.bf16.msra.mxu0 %v2111
    %2944 = vmatpush.bf16.msra.mxu0 %v2103
    %2945 = vmatpush.bf16.msra.mxu0 %v2095
    %2946 = vmatmul.bf16.gmra.mxu0 %v547
    %v2947 = vpop.f32.mrf.mxu0
    %v2948 = vadd.f32 %v2934, %v2947
    %v2949 = vpop.f32.mrf.mxu0
    %v2950 = vadd.f32 %v2936, %v2949
    %2951 = vdwg.mxu0
    %2952 = vmatpush.bf16.msra.mxu0 %v2215
    %2953 = vmatpush.bf16.msra.mxu0 %v2207
    %2954 = vmatpush.bf16.msra.mxu0 %v2199
    %2955 = vmatpush.bf16.msra.mxu0 %v2191
    %2956 = vmatpush.bf16.msra.mxu0 %v2183
    %2957 = vmatpush.bf16.msra.mxu0 %v2175
    %2958 = vmatpush.bf16.msra.mxu0 %v2167
    %2959 = vmatpush.bf16.msra.mxu0 %v2159
    %2960 = vmatmul.bf16.gmra.mxu0 %v548
    %v2961 = vpop.f32.mrf.mxu0
    %v2962 = vadd.f32 %v2948, %v2961
    %v2963 = vpop.f32.mrf.mxu0
    %v2964 = vadd.f32 %v2950, %v2963
    %2965 = vdwg.mxu0
    %2966 = vmatpush.bf16.msra.mxu0 %v2279
    %2967 = vmatpush.bf16.msra.mxu0 %v2271
    %2968 = vmatpush.bf16.msra.mxu0 %v2263
    %2969 = vmatpush.bf16.msra.mxu0 %v2255
    %2970 = vmatpush.bf16.msra.mxu0 %v2247
    %2971 = vmatpush.bf16.msra.mxu0 %v2239
    %2972 = vmatpush.bf16.msra.mxu0 %v2231
    %2973 = vmatpush.bf16.msra.mxu0 %v2223
    %2974 = vmatmul.bf16.gmra.mxu0 %v549
    %v2975 = vpop.f32.mrf.mxu0
    %v2976 = vadd.f32 %v2962, %v2975
    %v2977 = vpop.f32.mrf.mxu0
    %v2978 = vadd.f32 %v2964, %v2977
    %2979 = vdwg.mxu0
    %2980 = vmatpush.bf16.msra.mxu0 %v2343
    %2981 = vmatpush.bf16.msra.mxu0 %v2335
    %2982 = vmatpush.bf16.msra.mxu0 %v2327
    %2983 = vmatpush.bf16.msra.mxu0 %v2319
    %2984 = vmatpush.bf16.msra.mxu0 %v2311
    %2985 = vmatpush.bf16.msra.mxu0 %v2303
    %2986 = vmatpush.bf16.msra.mxu0 %v2295
    %2987 = vmatpush.bf16.msra.mxu0 %v2287
    %2988 = vmatmul.bf16.gmra.mxu0 %v550
    %v2989 = vpop.f32.mrf.mxu0
    %v2990 = vadd.f32 %v2976, %v2989
    %v2991 = vpop.f32.mrf.mxu0
    %v2992 = vadd.f32 %v2978, %v2991
    %2993 = vdwg.mxu0
    %2994 = vmatpush.bf16.msra.mxu0 %v1960
    %2995 = vmatpush.bf16.msra.mxu0 %v1952
    %2996 = vmatpush.bf16.msra.mxu0 %v1944
    %2997 = vmatpush.bf16.msra.mxu0 %v1936
    %2998 = vmatpush.bf16.msra.mxu0 %v1928
    %2999 = vmatpush.bf16.msra.mxu0 %v1920
    %3000 = vmatpush.bf16.msra.mxu0 %v1912
    %3001 = vmatpush.bf16.msra.mxu0 %v1904
    %3002 = vmatmul.bf16.gmra.mxu0 %v544
    %v3003 = vpop.f32.mrf.mxu0
    %v3004 = vadd.f32 %v508, %v3003
    %v3005 = vpop.f32.mrf.mxu0
    %v3006 = vadd.f32 %v508, %v3005
    %3007 = vdwg.mxu0
    %3008 = vmatpush.bf16.msra.mxu0 %v2024
    %3009 = vmatpush.bf16.msra.mxu0 %v2016
    %3010 = vmatpush.bf16.msra.mxu0 %v2008
    %3011 = vmatpush.bf16.msra.mxu0 %v2000
    %3012 = vmatpush.bf16.msra.mxu0 %v1992
    %3013 = vmatpush.bf16.msra.mxu0 %v1984
    %3014 = vmatpush.bf16.msra.mxu0 %v1976
    %3015 = vmatpush.bf16.msra.mxu0 %v1968
    %3016 = vmatmul.bf16.gmra.mxu0 %v545
    %v3017 = vpop.f32.mrf.mxu0
    %v3018 = vadd.f32 %v3004, %v3017
    %v3019 = vpop.f32.mrf.mxu0
    %v3020 = vadd.f32 %v3006, %v3019
    %3021 = vdwg.mxu0
    %3022 = vmatpush.bf16.msra.mxu0 %v2088
    %3023 = vmatpush.bf16.msra.mxu0 %v2080
    %3024 = vmatpush.bf16.msra.mxu0 %v2072
    %3025 = vmatpush.bf16.msra.mxu0 %v2064
    %3026 = vmatpush.bf16.msra.mxu0 %v2056
    %3027 = vmatpush.bf16.msra.mxu0 %v2048
    %3028 = vmatpush.bf16.msra.mxu0 %v2040
    %3029 = vmatpush.bf16.msra.mxu0 %v2032
    %3030 = vmatmul.bf16.gmra.mxu0 %v546
    %v3031 = vpop.f32.mrf.mxu0
    %v3032 = vadd.f32 %v3018, %v3031
    %v3033 = vpop.f32.mrf.mxu0
    %v3034 = vadd.f32 %v3020, %v3033
    %3035 = vdwg.mxu0
    %3036 = vmatpush.bf16.msra.mxu0 %v2152
    %3037 = vmatpush.bf16.msra.mxu0 %v2144
    %3038 = vmatpush.bf16.msra.mxu0 %v2136
    %3039 = vmatpush.bf16.msra.mxu0 %v2128
    %3040 = vmatpush.bf16.msra.mxu0 %v2120
    %3041 = vmatpush.bf16.msra.mxu0 %v2112
    %3042 = vmatpush.bf16.msra.mxu0 %v2104
    %3043 = vmatpush.bf16.msra.mxu0 %v2096
    %3044 = vmatmul.bf16.gmra.mxu0 %v547
    %v3045 = vpop.f32.mrf.mxu0
    %v3046 = vadd.f32 %v3032, %v3045
    %v3047 = vpop.f32.mrf.mxu0
    %v3048 = vadd.f32 %v3034, %v3047
    %3049 = vdwg.mxu0
    %3050 = vmatpush.bf16.msra.mxu0 %v2216
    %3051 = vmatpush.bf16.msra.mxu0 %v2208
    %3052 = vmatpush.bf16.msra.mxu0 %v2200
    %3053 = vmatpush.bf16.msra.mxu0 %v2192
    %3054 = vmatpush.bf16.msra.mxu0 %v2184
    %3055 = vmatpush.bf16.msra.mxu0 %v2176
    %3056 = vmatpush.bf16.msra.mxu0 %v2168
    %3057 = vmatpush.bf16.msra.mxu0 %v2160
    %3058 = vmatmul.bf16.gmra.mxu0 %v548
    %v3059 = vpop.f32.mrf.mxu0
    %v3060 = vadd.f32 %v3046, %v3059
    %v3061 = vpop.f32.mrf.mxu0
    %v3062 = vadd.f32 %v3048, %v3061
    %3063 = vdwg.mxu0
    %3064 = vmatpush.bf16.msra.mxu0 %v2280
    %3065 = vmatpush.bf16.msra.mxu0 %v2272
    %3066 = vmatpush.bf16.msra.mxu0 %v2264
    %3067 = vmatpush.bf16.msra.mxu0 %v2256
    %3068 = vmatpush.bf16.msra.mxu0 %v2248
    %3069 = vmatpush.bf16.msra.mxu0 %v2240
    %3070 = vmatpush.bf16.msra.mxu0 %v2232
    %3071 = vmatpush.bf16.msra.mxu0 %v2224
    %3072 = vmatmul.bf16.gmra.mxu0 %v549
    %v3073 = vpop.f32.mrf.mxu0
    %v3074 = vadd.f32 %v3060, %v3073
    %v3075 = vpop.f32.mrf.mxu0
    %v3076 = vadd.f32 %v3062, %v3075
    %3077 = vdwg.mxu0
    %3078 = vmatpush.bf16.msra.mxu0 %v2344
    %3079 = vmatpush.bf16.msra.mxu0 %v2336
    %3080 = vmatpush.bf16.msra.mxu0 %v2328
    %3081 = vmatpush.bf16.msra.mxu0 %v2320
    %3082 = vmatpush.bf16.msra.mxu0 %v2312
    %3083 = vmatpush.bf16.msra.mxu0 %v2304
    %3084 = vmatpush.bf16.msra.mxu0 %v2296
    %3085 = vmatpush.bf16.msra.mxu0 %v2288
    %3086 = vmatmul.bf16.gmra.mxu0 %v550
    %v3087 = vpop.f32.mrf.mxu0
    %v3088 = vadd.f32 %v3074, %v3087
    %v3089 = vpop.f32.mrf.mxu0
    %v3090 = vadd.f32 %v3076, %v3089
    %3091 = vdwg.mxu0
    %3092 = vmatpush.bf16.msra.mxu0 %v1961
    %3093 = vmatpush.bf16.msra.mxu0 %v1953
    %3094 = vmatpush.bf16.msra.mxu0 %v1945
    %3095 = vmatpush.bf16.msra.mxu0 %v1937
    %3096 = vmatpush.bf16.msra.mxu0 %v1929
    %3097 = vmatpush.bf16.msra.mxu0 %v1921
    %3098 = vmatpush.bf16.msra.mxu0 %v1913
    %3099 = vmatpush.bf16.msra.mxu0 %v1905
    %3100 = vmatmul.bf16.gmra.mxu0 %v544
    %v3101 = vpop.f32.mrf.mxu0
    %v3102 = vadd.f32 %v509, %v3101
    %v3103 = vpop.f32.mrf.mxu0
    %v3104 = vadd.f32 %v509, %v3103
    %3105 = vdwg.mxu0
    %3106 = vmatpush.bf16.msra.mxu0 %v2025
    %3107 = vmatpush.bf16.msra.mxu0 %v2017
    %3108 = vmatpush.bf16.msra.mxu0 %v2009
    %3109 = vmatpush.bf16.msra.mxu0 %v2001
    %3110 = vmatpush.bf16.msra.mxu0 %v1993
    %3111 = vmatpush.bf16.msra.mxu0 %v1985
    %3112 = vmatpush.bf16.msra.mxu0 %v1977
    %3113 = vmatpush.bf16.msra.mxu0 %v1969
    %3114 = vmatmul.bf16.gmra.mxu0 %v545
    %v3115 = vpop.f32.mrf.mxu0
    %v3116 = vadd.f32 %v3102, %v3115
    %v3117 = vpop.f32.mrf.mxu0
    %v3118 = vadd.f32 %v3104, %v3117
    %3119 = vdwg.mxu0
    %3120 = vmatpush.bf16.msra.mxu0 %v2089
    %3121 = vmatpush.bf16.msra.mxu0 %v2081
    %3122 = vmatpush.bf16.msra.mxu0 %v2073
    %3123 = vmatpush.bf16.msra.mxu0 %v2065
    %3124 = vmatpush.bf16.msra.mxu0 %v2057
    %3125 = vmatpush.bf16.msra.mxu0 %v2049
    %3126 = vmatpush.bf16.msra.mxu0 %v2041
    %3127 = vmatpush.bf16.msra.mxu0 %v2033
    %3128 = vmatmul.bf16.gmra.mxu0 %v546
    %v3129 = vpop.f32.mrf.mxu0
    %v3130 = vadd.f32 %v3116, %v3129
    %v3131 = vpop.f32.mrf.mxu0
    %v3132 = vadd.f32 %v3118, %v3131
    %3133 = vdwg.mxu0
    %3134 = vmatpush.bf16.msra.mxu0 %v2153
    %3135 = vmatpush.bf16.msra.mxu0 %v2145
    %3136 = vmatpush.bf16.msra.mxu0 %v2137
    %3137 = vmatpush.bf16.msra.mxu0 %v2129
    %3138 = vmatpush.bf16.msra.mxu0 %v2121
    %3139 = vmatpush.bf16.msra.mxu0 %v2113
    %3140 = vmatpush.bf16.msra.mxu0 %v2105
    %3141 = vmatpush.bf16.msra.mxu0 %v2097
    %3142 = vmatmul.bf16.gmra.mxu0 %v547
    %v3143 = vpop.f32.mrf.mxu0
    %v3144 = vadd.f32 %v3130, %v3143
    %v3145 = vpop.f32.mrf.mxu0
    %v3146 = vadd.f32 %v3132, %v3145
    %3147 = vdwg.mxu0
    %3148 = vmatpush.bf16.msra.mxu0 %v2217
    %3149 = vmatpush.bf16.msra.mxu0 %v2209
    %3150 = vmatpush.bf16.msra.mxu0 %v2201
    %3151 = vmatpush.bf16.msra.mxu0 %v2193
    %3152 = vmatpush.bf16.msra.mxu0 %v2185
    %3153 = vmatpush.bf16.msra.mxu0 %v2177
    %3154 = vmatpush.bf16.msra.mxu0 %v2169
    %3155 = vmatpush.bf16.msra.mxu0 %v2161
    %3156 = vmatmul.bf16.gmra.mxu0 %v548
    %v3157 = vpop.f32.mrf.mxu0
    %v3158 = vadd.f32 %v3144, %v3157
    %v3159 = vpop.f32.mrf.mxu0
    %v3160 = vadd.f32 %v3146, %v3159
    %3161 = vdwg.mxu0
    %3162 = vmatpush.bf16.msra.mxu0 %v2281
    %3163 = vmatpush.bf16.msra.mxu0 %v2273
    %3164 = vmatpush.bf16.msra.mxu0 %v2265
    %3165 = vmatpush.bf16.msra.mxu0 %v2257
    %3166 = vmatpush.bf16.msra.mxu0 %v2249
    %3167 = vmatpush.bf16.msra.mxu0 %v2241
    %3168 = vmatpush.bf16.msra.mxu0 %v2233
    %3169 = vmatpush.bf16.msra.mxu0 %v2225
    %3170 = vmatmul.bf16.gmra.mxu0 %v549
    %v3171 = vpop.f32.mrf.mxu0
    %v3172 = vadd.f32 %v3158, %v3171
    %v3173 = vpop.f32.mrf.mxu0
    %v3174 = vadd.f32 %v3160, %v3173
    %3175 = vdwg.mxu0
    %3176 = vmatpush.bf16.msra.mxu0 %v2345
    %3177 = vmatpush.bf16.msra.mxu0 %v2337
    %3178 = vmatpush.bf16.msra.mxu0 %v2329
    %3179 = vmatpush.bf16.msra.mxu0 %v2321
    %3180 = vmatpush.bf16.msra.mxu0 %v2313
    %3181 = vmatpush.bf16.msra.mxu0 %v2305
    %3182 = vmatpush.bf16.msra.mxu0 %v2297
    %3183 = vmatpush.bf16.msra.mxu0 %v2289
    %3184 = vmatmul.bf16.gmra.mxu0 %v550
    %v3185 = vpop.f32.mrf.mxu0
    %v3186 = vadd.f32 %v3172, %v3185
    %v3187 = vpop.f32.mrf.mxu0
    %v3188 = vadd.f32 %v3174, %v3187
    %3189 = vdwg.mxu0
    %3190 = vmatpush.bf16.msra.mxu0 %v1962
    %3191 = vmatpush.bf16.msra.mxu0 %v1954
    %3192 = vmatpush.bf16.msra.mxu0 %v1946
    %3193 = vmatpush.bf16.msra.mxu0 %v1938
    %3194 = vmatpush.bf16.msra.mxu0 %v1930
    %3195 = vmatpush.bf16.msra.mxu0 %v1922
    %3196 = vmatpush.bf16.msra.mxu0 %v1914
    %3197 = vmatpush.bf16.msra.mxu0 %v1906
    %3198 = vmatmul.bf16.gmra.mxu0 %v544
    %v3199 = vpop.f32.mrf.mxu0
    %v3200 = vadd.f32 %v510, %v3199
    %v3201 = vpop.f32.mrf.mxu0
    %v3202 = vadd.f32 %v510, %v3201
    %3203 = vdwg.mxu0
    %3204 = vmatpush.bf16.msra.mxu0 %v2026
    %3205 = vmatpush.bf16.msra.mxu0 %v2018
    %3206 = vmatpush.bf16.msra.mxu0 %v2010
    %3207 = vmatpush.bf16.msra.mxu0 %v2002
    %3208 = vmatpush.bf16.msra.mxu0 %v1994
    %3209 = vmatpush.bf16.msra.mxu0 %v1986
    %3210 = vmatpush.bf16.msra.mxu0 %v1978
    %3211 = vmatpush.bf16.msra.mxu0 %v1970
    %3212 = vmatmul.bf16.gmra.mxu0 %v545
    %v3213 = vpop.f32.mrf.mxu0
    %v3214 = vadd.f32 %v3200, %v3213
    %v3215 = vpop.f32.mrf.mxu0
    %v3216 = vadd.f32 %v3202, %v3215
    %3217 = vdwg.mxu0
    %3218 = vmatpush.bf16.msra.mxu0 %v2090
    %3219 = vmatpush.bf16.msra.mxu0 %v2082
    %3220 = vmatpush.bf16.msra.mxu0 %v2074
    %3221 = vmatpush.bf16.msra.mxu0 %v2066
    %3222 = vmatpush.bf16.msra.mxu0 %v2058
    %3223 = vmatpush.bf16.msra.mxu0 %v2050
    %3224 = vmatpush.bf16.msra.mxu0 %v2042
    %3225 = vmatpush.bf16.msra.mxu0 %v2034
    %3226 = vmatmul.bf16.gmra.mxu0 %v546
    %v3227 = vpop.f32.mrf.mxu0
    %v3228 = vadd.f32 %v3214, %v3227
    %v3229 = vpop.f32.mrf.mxu0
    %v3230 = vadd.f32 %v3216, %v3229
    %3231 = vdwg.mxu0
    %3232 = vmatpush.bf16.msra.mxu0 %v2154
    %3233 = vmatpush.bf16.msra.mxu0 %v2146
    %3234 = vmatpush.bf16.msra.mxu0 %v2138
    %3235 = vmatpush.bf16.msra.mxu0 %v2130
    %3236 = vmatpush.bf16.msra.mxu0 %v2122
    %3237 = vmatpush.bf16.msra.mxu0 %v2114
    %3238 = vmatpush.bf16.msra.mxu0 %v2106
    %3239 = vmatpush.bf16.msra.mxu0 %v2098
    %3240 = vmatmul.bf16.gmra.mxu0 %v547
    %v3241 = vpop.f32.mrf.mxu0
    %v3242 = vadd.f32 %v3228, %v3241
    %v3243 = vpop.f32.mrf.mxu0
    %v3244 = vadd.f32 %v3230, %v3243
    %3245 = vdwg.mxu0
    %3246 = vmatpush.bf16.msra.mxu0 %v2218
    %3247 = vmatpush.bf16.msra.mxu0 %v2210
    %3248 = vmatpush.bf16.msra.mxu0 %v2202
    %3249 = vmatpush.bf16.msra.mxu0 %v2194
    %3250 = vmatpush.bf16.msra.mxu0 %v2186
    %3251 = vmatpush.bf16.msra.mxu0 %v2178
    %3252 = vmatpush.bf16.msra.mxu0 %v2170
    %3253 = vmatpush.bf16.msra.mxu0 %v2162
    %3254 = vmatmul.bf16.gmra.mxu0 %v548
    %v3255 = vpop.f32.mrf.mxu0
    %v3256 = vadd.f32 %v3242, %v3255
    %v3257 = vpop.f32.mrf.mxu0
    %v3258 = vadd.f32 %v3244, %v3257
    %3259 = vdwg.mxu0
    %3260 = vmatpush.bf16.msra.mxu0 %v2282
    %3261 = vmatpush.bf16.msra.mxu0 %v2274
    %3262 = vmatpush.bf16.msra.mxu0 %v2266
    %3263 = vmatpush.bf16.msra.mxu0 %v2258
    %3264 = vmatpush.bf16.msra.mxu0 %v2250
    %3265 = vmatpush.bf16.msra.mxu0 %v2242
    %3266 = vmatpush.bf16.msra.mxu0 %v2234
    %3267 = vmatpush.bf16.msra.mxu0 %v2226
    %3268 = vmatmul.bf16.gmra.mxu0 %v549
    %v3269 = vpop.f32.mrf.mxu0
    %v3270 = vadd.f32 %v3256, %v3269
    %v3271 = vpop.f32.mrf.mxu0
    %v3272 = vadd.f32 %v3258, %v3271
    %3273 = vdwg.mxu0
    %3274 = vmatpush.bf16.msra.mxu0 %v2346
    %3275 = vmatpush.bf16.msra.mxu0 %v2338
    %3276 = vmatpush.bf16.msra.mxu0 %v2330
    %3277 = vmatpush.bf16.msra.mxu0 %v2322
    %3278 = vmatpush.bf16.msra.mxu0 %v2314
    %3279 = vmatpush.bf16.msra.mxu0 %v2306
    %3280 = vmatpush.bf16.msra.mxu0 %v2298
    %3281 = vmatpush.bf16.msra.mxu0 %v2290
    %3282 = vmatmul.bf16.gmra.mxu0 %v550
    %v3283 = vpop.f32.mrf.mxu0
    %v3284 = vadd.f32 %v3270, %v3283
    %v3285 = vpop.f32.mrf.mxu0
    %v3286 = vadd.f32 %v3272, %v3285
    %3287 = vdwg.mxu0
    %3288 = vmatpush.bf16.msra.mxu0 %v1963
    %3289 = vmatpush.bf16.msra.mxu0 %v1955
    %3290 = vmatpush.bf16.msra.mxu0 %v1947
    %3291 = vmatpush.bf16.msra.mxu0 %v1939
    %3292 = vmatpush.bf16.msra.mxu0 %v1931
    %3293 = vmatpush.bf16.msra.mxu0 %v1923
    %3294 = vmatpush.bf16.msra.mxu0 %v1915
    %3295 = vmatpush.bf16.msra.mxu0 %v1907
    %3296 = vmatmul.bf16.gmra.mxu0 %v544
    %v3297 = vpop.f32.mrf.mxu0
    %v3298 = vadd.f32 %v511, %v3297
    %v3299 = vpop.f32.mrf.mxu0
    %v3300 = vadd.f32 %v511, %v3299
    %3301 = vdwg.mxu0
    %3302 = vmatpush.bf16.msra.mxu0 %v2027
    %3303 = vmatpush.bf16.msra.mxu0 %v2019
    %3304 = vmatpush.bf16.msra.mxu0 %v2011
    %3305 = vmatpush.bf16.msra.mxu0 %v2003
    %3306 = vmatpush.bf16.msra.mxu0 %v1995
    %3307 = vmatpush.bf16.msra.mxu0 %v1987
    %3308 = vmatpush.bf16.msra.mxu0 %v1979
    %3309 = vmatpush.bf16.msra.mxu0 %v1971
    %3310 = vmatmul.bf16.gmra.mxu0 %v545
    %v3311 = vpop.f32.mrf.mxu0
    %v3312 = vadd.f32 %v3298, %v3311
    %v3313 = vpop.f32.mrf.mxu0
    %v3314 = vadd.f32 %v3300, %v3313
    %3315 = vdwg.mxu0
    %3316 = vmatpush.bf16.msra.mxu0 %v2091
    %3317 = vmatpush.bf16.msra.mxu0 %v2083
    %3318 = vmatpush.bf16.msra.mxu0 %v2075
    %3319 = vmatpush.bf16.msra.mxu0 %v2067
    %3320 = vmatpush.bf16.msra.mxu0 %v2059
    %3321 = vmatpush.bf16.msra.mxu0 %v2051
    %3322 = vmatpush.bf16.msra.mxu0 %v2043
    %3323 = vmatpush.bf16.msra.mxu0 %v2035
    %3324 = vmatmul.bf16.gmra.mxu0 %v546
    %v3325 = vpop.f32.mrf.mxu0
    %v3326 = vadd.f32 %v3312, %v3325
    %v3327 = vpop.f32.mrf.mxu0
    %v3328 = vadd.f32 %v3314, %v3327
    %3329 = vdwg.mxu0
    %3330 = vmatpush.bf16.msra.mxu0 %v2155
    %3331 = vmatpush.bf16.msra.mxu0 %v2147
    %3332 = vmatpush.bf16.msra.mxu0 %v2139
    %3333 = vmatpush.bf16.msra.mxu0 %v2131
    %3334 = vmatpush.bf16.msra.mxu0 %v2123
    %3335 = vmatpush.bf16.msra.mxu0 %v2115
    %3336 = vmatpush.bf16.msra.mxu0 %v2107
    %3337 = vmatpush.bf16.msra.mxu0 %v2099
    %3338 = vmatmul.bf16.gmra.mxu0 %v547
    %v3339 = vpop.f32.mrf.mxu0
    %v3340 = vadd.f32 %v3326, %v3339
    %v3341 = vpop.f32.mrf.mxu0
    %v3342 = vadd.f32 %v3328, %v3341
    %3343 = vdwg.mxu0
    %3344 = vmatpush.bf16.msra.mxu0 %v2219
    %3345 = vmatpush.bf16.msra.mxu0 %v2211
    %3346 = vmatpush.bf16.msra.mxu0 %v2203
    %3347 = vmatpush.bf16.msra.mxu0 %v2195
    %3348 = vmatpush.bf16.msra.mxu0 %v2187
    %3349 = vmatpush.bf16.msra.mxu0 %v2179
    %3350 = vmatpush.bf16.msra.mxu0 %v2171
    %3351 = vmatpush.bf16.msra.mxu0 %v2163
    %3352 = vmatmul.bf16.gmra.mxu0 %v548
    %v3353 = vpop.f32.mrf.mxu0
    %v3354 = vadd.f32 %v3340, %v3353
    %v3355 = vpop.f32.mrf.mxu0
    %v3356 = vadd.f32 %v3342, %v3355
    %3357 = vdwg.mxu0
    %3358 = vmatpush.bf16.msra.mxu0 %v2283
    %3359 = vmatpush.bf16.msra.mxu0 %v2275
    %3360 = vmatpush.bf16.msra.mxu0 %v2267
    %3361 = vmatpush.bf16.msra.mxu0 %v2259
    %3362 = vmatpush.bf16.msra.mxu0 %v2251
    %3363 = vmatpush.bf16.msra.mxu0 %v2243
    %3364 = vmatpush.bf16.msra.mxu0 %v2235
    %3365 = vmatpush.bf16.msra.mxu0 %v2227
    %3366 = vmatmul.bf16.gmra.mxu0 %v549
    %v3367 = vpop.f32.mrf.mxu0
    %v3368 = vadd.f32 %v3354, %v3367
    %v3369 = vpop.f32.mrf.mxu0
    %v3370 = vadd.f32 %v3356, %v3369
    %3371 = vdwg.mxu0
    %3372 = vmatpush.bf16.msra.mxu0 %v2347
    %3373 = vmatpush.bf16.msra.mxu0 %v2339
    %3374 = vmatpush.bf16.msra.mxu0 %v2331
    %3375 = vmatpush.bf16.msra.mxu0 %v2323
    %3376 = vmatpush.bf16.msra.mxu0 %v2315
    %3377 = vmatpush.bf16.msra.mxu0 %v2307
    %3378 = vmatpush.bf16.msra.mxu0 %v2299
    %3379 = vmatpush.bf16.msra.mxu0 %v2291
    %3380 = vmatmul.bf16.gmra.mxu0 %v550
    %v3381 = vpop.f32.mrf.mxu0
    %v3382 = vadd.f32 %v3368, %v3381
    %v3383 = vpop.f32.mrf.mxu0
    %v3384 = vadd.f32 %v3370, %v3383
    %3385 = vdwg.mxu0
    %3386 = vmatpush.bf16.msra.mxu0 %v1964
    %3387 = vmatpush.bf16.msra.mxu0 %v1956
    %3388 = vmatpush.bf16.msra.mxu0 %v1948
    %3389 = vmatpush.bf16.msra.mxu0 %v1940
    %3390 = vmatpush.bf16.msra.mxu0 %v1932
    %3391 = vmatpush.bf16.msra.mxu0 %v1924
    %3392 = vmatpush.bf16.msra.mxu0 %v1916
    %3393 = vmatpush.bf16.msra.mxu0 %v1908
    %3394 = vmatmul.bf16.gmra.mxu0 %v544
    %v3395 = vpop.f32.mrf.mxu0
    %v3396 = vadd.f32 %v512, %v3395
    %v3397 = vpop.f32.mrf.mxu0
    %v3398 = vadd.f32 %v512, %v3397
    %3399 = vdwg.mxu0
    %3400 = vmatpush.bf16.msra.mxu0 %v2028
    %3401 = vmatpush.bf16.msra.mxu0 %v2020
    %3402 = vmatpush.bf16.msra.mxu0 %v2012
    %3403 = vmatpush.bf16.msra.mxu0 %v2004
    %3404 = vmatpush.bf16.msra.mxu0 %v1996
    %3405 = vmatpush.bf16.msra.mxu0 %v1988
    %3406 = vmatpush.bf16.msra.mxu0 %v1980
    %3407 = vmatpush.bf16.msra.mxu0 %v1972
    %3408 = vmatmul.bf16.gmra.mxu0 %v545
    %v3409 = vpop.f32.mrf.mxu0
    %v3410 = vadd.f32 %v3396, %v3409
    %v3411 = vpop.f32.mrf.mxu0
    %v3412 = vadd.f32 %v3398, %v3411
    %3413 = vdwg.mxu0
    %3414 = vmatpush.bf16.msra.mxu0 %v2092
    %3415 = vmatpush.bf16.msra.mxu0 %v2084
    %3416 = vmatpush.bf16.msra.mxu0 %v2076
    %3417 = vmatpush.bf16.msra.mxu0 %v2068
    %3418 = vmatpush.bf16.msra.mxu0 %v2060
    %3419 = vmatpush.bf16.msra.mxu0 %v2052
    %3420 = vmatpush.bf16.msra.mxu0 %v2044
    %3421 = vmatpush.bf16.msra.mxu0 %v2036
    %3422 = vmatmul.bf16.gmra.mxu0 %v546
    %v3423 = vpop.f32.mrf.mxu0
    %v3424 = vadd.f32 %v3410, %v3423
    %v3425 = vpop.f32.mrf.mxu0
    %v3426 = vadd.f32 %v3412, %v3425
    %3427 = vdwg.mxu0
    %3428 = vmatpush.bf16.msra.mxu0 %v2156
    %3429 = vmatpush.bf16.msra.mxu0 %v2148
    %3430 = vmatpush.bf16.msra.mxu0 %v2140
    %3431 = vmatpush.bf16.msra.mxu0 %v2132
    %3432 = vmatpush.bf16.msra.mxu0 %v2124
    %3433 = vmatpush.bf16.msra.mxu0 %v2116
    %3434 = vmatpush.bf16.msra.mxu0 %v2108
    %3435 = vmatpush.bf16.msra.mxu0 %v2100
    %3436 = vmatmul.bf16.gmra.mxu0 %v547
    %v3437 = vpop.f32.mrf.mxu0
    %v3438 = vadd.f32 %v3424, %v3437
    %v3439 = vpop.f32.mrf.mxu0
    %v3440 = vadd.f32 %v3426, %v3439
    %3441 = vdwg.mxu0
    %3442 = vmatpush.bf16.msra.mxu0 %v2220
    %3443 = vmatpush.bf16.msra.mxu0 %v2212
    %3444 = vmatpush.bf16.msra.mxu0 %v2204
    %3445 = vmatpush.bf16.msra.mxu0 %v2196
    %3446 = vmatpush.bf16.msra.mxu0 %v2188
    %3447 = vmatpush.bf16.msra.mxu0 %v2180
    %3448 = vmatpush.bf16.msra.mxu0 %v2172
    %3449 = vmatpush.bf16.msra.mxu0 %v2164
    %3450 = vmatmul.bf16.gmra.mxu0 %v548
    %v3451 = vpop.f32.mrf.mxu0
    %v3452 = vadd.f32 %v3438, %v3451
    %v3453 = vpop.f32.mrf.mxu0
    %v3454 = vadd.f32 %v3440, %v3453
    %3455 = vdwg.mxu0
    %3456 = vmatpush.bf16.msra.mxu0 %v2284
    %3457 = vmatpush.bf16.msra.mxu0 %v2276
    %3458 = vmatpush.bf16.msra.mxu0 %v2268
    %3459 = vmatpush.bf16.msra.mxu0 %v2260
    %3460 = vmatpush.bf16.msra.mxu0 %v2252
    %3461 = vmatpush.bf16.msra.mxu0 %v2244
    %3462 = vmatpush.bf16.msra.mxu0 %v2236
    %3463 = vmatpush.bf16.msra.mxu0 %v2228
    %3464 = vmatmul.bf16.gmra.mxu0 %v549
    %v3465 = vpop.f32.mrf.mxu0
    %v3466 = vadd.f32 %v3452, %v3465
    %v3467 = vpop.f32.mrf.mxu0
    %v3468 = vadd.f32 %v3454, %v3467
    %3469 = vdwg.mxu0
    %3470 = vmatpush.bf16.msra.mxu0 %v2348
    %3471 = vmatpush.bf16.msra.mxu0 %v2340
    %3472 = vmatpush.bf16.msra.mxu0 %v2332
    %3473 = vmatpush.bf16.msra.mxu0 %v2324
    %3474 = vmatpush.bf16.msra.mxu0 %v2316
    %3475 = vmatpush.bf16.msra.mxu0 %v2308
    %3476 = vmatpush.bf16.msra.mxu0 %v2300
    %3477 = vmatpush.bf16.msra.mxu0 %v2292
    %3478 = vmatmul.bf16.gmra.mxu0 %v550
    %v3479 = vpop.f32.mrf.mxu0
    %v3480 = vadd.f32 %v3466, %v3479
    %v3481 = vpop.f32.mrf.mxu0
    %v3482 = vadd.f32 %v3468, %v3481
    %3483 = vdwg.mxu0
    %3484 = vmatpush.bf16.msra.mxu0 %v1965
    %3485 = vmatpush.bf16.msra.mxu0 %v1957
    %3486 = vmatpush.bf16.msra.mxu0 %v1949
    %3487 = vmatpush.bf16.msra.mxu0 %v1941
    %3488 = vmatpush.bf16.msra.mxu0 %v1933
    %3489 = vmatpush.bf16.msra.mxu0 %v1925
    %3490 = vmatpush.bf16.msra.mxu0 %v1917
    %3491 = vmatpush.bf16.msra.mxu0 %v1909
    %3492 = vmatmul.bf16.gmra.mxu0 %v544
    %v3493 = vpop.f32.mrf.mxu0
    %v3494 = vadd.f32 %v513, %v3493
    %v3495 = vpop.f32.mrf.mxu0
    %v3496 = vadd.f32 %v513, %v3495
    %3497 = vdwg.mxu0
    %3498 = vmatpush.bf16.msra.mxu0 %v2029
    %3499 = vmatpush.bf16.msra.mxu0 %v2021
    %3500 = vmatpush.bf16.msra.mxu0 %v2013
    %3501 = vmatpush.bf16.msra.mxu0 %v2005
    %3502 = vmatpush.bf16.msra.mxu0 %v1997
    %3503 = vmatpush.bf16.msra.mxu0 %v1989
    %3504 = vmatpush.bf16.msra.mxu0 %v1981
    %3505 = vmatpush.bf16.msra.mxu0 %v1973
    %3506 = vmatmul.bf16.gmra.mxu0 %v545
    %v3507 = vpop.f32.mrf.mxu0
    %v3508 = vadd.f32 %v3494, %v3507
    %v3509 = vpop.f32.mrf.mxu0
    %v3510 = vadd.f32 %v3496, %v3509
    %3511 = vdwg.mxu0
    %3512 = vmatpush.bf16.msra.mxu0 %v2093
    %3513 = vmatpush.bf16.msra.mxu0 %v2085
    %3514 = vmatpush.bf16.msra.mxu0 %v2077
    %3515 = vmatpush.bf16.msra.mxu0 %v2069
    %3516 = vmatpush.bf16.msra.mxu0 %v2061
    %3517 = vmatpush.bf16.msra.mxu0 %v2053
    %3518 = vmatpush.bf16.msra.mxu0 %v2045
    %3519 = vmatpush.bf16.msra.mxu0 %v2037
    %3520 = vmatmul.bf16.gmra.mxu0 %v546
    %v3521 = vpop.f32.mrf.mxu0
    %v3522 = vadd.f32 %v3508, %v3521
    %v3523 = vpop.f32.mrf.mxu0
    %v3524 = vadd.f32 %v3510, %v3523
    %3525 = vdwg.mxu0
    %3526 = vmatpush.bf16.msra.mxu0 %v2157
    %3527 = vmatpush.bf16.msra.mxu0 %v2149
    %3528 = vmatpush.bf16.msra.mxu0 %v2141
    %3529 = vmatpush.bf16.msra.mxu0 %v2133
    %3530 = vmatpush.bf16.msra.mxu0 %v2125
    %3531 = vmatpush.bf16.msra.mxu0 %v2117
    %3532 = vmatpush.bf16.msra.mxu0 %v2109
    %3533 = vmatpush.bf16.msra.mxu0 %v2101
    %3534 = vmatmul.bf16.gmra.mxu0 %v547
    %v3535 = vpop.f32.mrf.mxu0
    %v3536 = vadd.f32 %v3522, %v3535
    %v3537 = vpop.f32.mrf.mxu0
    %v3538 = vadd.f32 %v3524, %v3537
    %3539 = vdwg.mxu0
    %3540 = vmatpush.bf16.msra.mxu0 %v2221
    %3541 = vmatpush.bf16.msra.mxu0 %v2213
    %3542 = vmatpush.bf16.msra.mxu0 %v2205
    %3543 = vmatpush.bf16.msra.mxu0 %v2197
    %3544 = vmatpush.bf16.msra.mxu0 %v2189
    %3545 = vmatpush.bf16.msra.mxu0 %v2181
    %3546 = vmatpush.bf16.msra.mxu0 %v2173
    %3547 = vmatpush.bf16.msra.mxu0 %v2165
    %3548 = vmatmul.bf16.gmra.mxu0 %v548
    %v3549 = vpop.f32.mrf.mxu0
    %v3550 = vadd.f32 %v3536, %v3549
    %v3551 = vpop.f32.mrf.mxu0
    %v3552 = vadd.f32 %v3538, %v3551
    %3553 = vdwg.mxu0
    %3554 = vmatpush.bf16.msra.mxu0 %v2285
    %3555 = vmatpush.bf16.msra.mxu0 %v2277
    %3556 = vmatpush.bf16.msra.mxu0 %v2269
    %3557 = vmatpush.bf16.msra.mxu0 %v2261
    %3558 = vmatpush.bf16.msra.mxu0 %v2253
    %3559 = vmatpush.bf16.msra.mxu0 %v2245
    %3560 = vmatpush.bf16.msra.mxu0 %v2237
    %3561 = vmatpush.bf16.msra.mxu0 %v2229
    %3562 = vmatmul.bf16.gmra.mxu0 %v549
    %v3563 = vpop.f32.mrf.mxu0
    %v3564 = vadd.f32 %v3550, %v3563
    %v3565 = vpop.f32.mrf.mxu0
    %v3566 = vadd.f32 %v3552, %v3565
    %3567 = vdwg.mxu0
    %3568 = vmatpush.bf16.msra.mxu0 %v2349
    %3569 = vmatpush.bf16.msra.mxu0 %v2341
    %3570 = vmatpush.bf16.msra.mxu0 %v2333
    %3571 = vmatpush.bf16.msra.mxu0 %v2325
    %3572 = vmatpush.bf16.msra.mxu0 %v2317
    %3573 = vmatpush.bf16.msra.mxu0 %v2309
    %3574 = vmatpush.bf16.msra.mxu0 %v2301
    %3575 = vmatpush.bf16.msra.mxu0 %v2293
    %3576 = vmatmul.bf16.gmra.mxu0 %v550
    %v3577 = vpop.f32.mrf.mxu0
    %v3578 = vadd.f32 %v3564, %v3577
    %v3579 = vpop.f32.mrf.mxu0
    %v3580 = vadd.f32 %v3566, %v3579
    %3581 = vdwg.mxu0
    %3582 = vst [vmem:[%s4] sm:$0xff] %v2892
    %3583 = vst [vmem:[%s4 + $0x8] sm:$0xff] %v2990
    %3584 = vst [vmem:[%s4 + $0x10] sm:$0xff] %v3088
    %3585 = vst [vmem:[%s4 + $0x18] sm:$0xff] %v3186
    %3586 = vst [vmem:[%s4 + $0x20] sm:$0xff] %v3284
    %3587 = vst [vmem:[%s4 + $0x28] sm:$0xff] %v3382
    %3588 = vst [vmem:[%s4 + $0x30] sm:$0xff] %v3480
    %3589 = vst [vmem:[%s4 + $0x38] sm:$0xff] %v3578
    %3590 = vst [vmem:[%s4 + $0x40] sm:$0xff] %v2894
    %3591 = vst [vmem:[%s4 + $0x48] sm:$0xff] %v2992
    %3592 = vst [vmem:[%s4 + $0x50] sm:$0xff] %v3090
    %3593 = vst [vmem:[%s4 + $0x58] sm:$0xff] %v3188
    %3594 = vst [vmem:[%s4 + $0x60] sm:$0xff] %v3286
    %3595 = vst [vmem:[%s4 + $0x68] sm:$0xff] %v3384
    %3596 = vst [vmem:[%s4 + $0x70] sm:$0xff] %v3482
    %3597 = vst [vmem:[%s4 + $0x78] sm:$0xff] %v3580
    %s3598 = smul.u32 0, 16
    %v3599 = vlaneseq
    %v3600 = vshrl.u32 %v3599, 7
    %v3601 = vadd.s32 %v3600, 8
    %v3602 = vstv %s3598
    %v3603 = vadd.s32 %v3602, %v3600
    %v3604 = vadd.s32 %v3602, %v3601
    %s3605 = sld [smem:[#allocation3]]
    %v3606 = vstv %s3605
    %vm3607 = vcmp.lt.s32.totalorder %v3603, %v3606
    %vm3608 = vcmp.lt.s32.totalorder %v3604, %v3606
    %v3609 = vsel %vm3607, 1, 0
    %v3610 = vsel %vm3608, 1, 0
    %v3611 = vcvt.s32.f32 %v3609
    %v3612 = vcvt.s32.f32 %v3610
    %v3613 = vmul.f32 %v2892, %v3611
    %v3614 = vmul.f32 %v2990, %v3611
    %v3615 = vmul.f32 %v3088, %v3611
    %v3616 = vmul.f32 %v3186, %v3611
    %v3617 = vmul.f32 %v3284, %v3611
    %v3618 = vmul.f32 %v3382, %v3611
    %v3619 = vmul.f32 %v3480, %v3611
    %v3620 = vmul.f32 %v3578, %v3611
    %v3621 = vmul.f32 %v2894, %v3612
    %v3622 = vmul.f32 %v2992, %v3612
    %v3623 = vmul.f32 %v3090, %v3612
    %v3624 = vmul.f32 %v3188, %v3612
    %v3625 = vmul.f32 %v3286, %v3612
    %v3626 = vmul.f32 %v3384, %v3612
    %v3627 = vmul.f32 %v3482, %v3612
    %v3628 = vmul.f32 %v3580, %v3612
    %v3629 = vadd.f32 %v3613, %v3621
    %v3630 = vrot.slane %v3629, 4
    %v3631 = vadd.f32 %v3629, %v3630
    %v3632 = vrot.slane %v3631, 2
    %v3633 = vadd.f32 %v3631, %v3632
    %v3634 = vrot.slane %v3633, 1
    %v3635 = vadd.f32 %v3633, %v3634
    %v3636 = vadd.f32 %v3614, %v3622
    %v3637 = vrot.slane %v3636, 4
    %v3638 = vadd.f32 %v3636, %v3637
    %v3639 = vrot.slane %v3638, 2
    %v3640 = vadd.f32 %v3638, %v3639
    %v3641 = vrot.slane %v3640, 1
    %v3642 = vadd.f32 %v3640, %v3641
    %v3643 = vadd.f32 %v3615, %v3623
    %v3644 = vrot.slane %v3643, 4
    %v3645 = vadd.f32 %v3643, %v3644
    %v3646 = vrot.slane %v3645, 2
    %v3647 = vadd.f32 %v3645, %v3646
    %v3648 = vrot.slane %v3647, 1
    %v3649 = vadd.f32 %v3647, %v3648
    %v3650 = vadd.f32 %v3616, %v3624
    %v3651 = vrot.slane %v3650, 4
    %v3652 = vadd.f32 %v3650, %v3651
    %v3653 = vrot.slane %v3652, 2
    %v3654 = vadd.f32 %v3652, %v3653
    %v3655 = vrot.slane %v3654, 1
    %v3656 = vadd.f32 %v3654, %v3655
    %v3657 = vadd.f32 %v3617, %v3625
    %v3658 = vrot.slane %v3657, 4
    %v3659 = vadd.f32 %v3657, %v3658
    %v3660 = vrot.slane %v3659, 2
    %v3661 = vadd.f32 %v3659, %v3660
    %v3662 = vrot.slane %v3661, 1
    %v3663 = vadd.f32 %v3661, %v3662
    %v3664 = vadd.f32 %v3618, %v3626
    %v3665 = vrot.slane %v3664, 4
    %v3666 = vadd.f32 %v3664, %v3665
    %v3667 = vrot.slane %v3666, 2
    %v3668 = vadd.f32 %v3666, %v3667
    %v3669 = vrot.slane %v3668, 1
    %v3670 = vadd.f32 %v3668, %v3669
    %v3671 = vadd.f32 %v3619, %v3627
    %v3672 = vrot.slane %v3671, 4
    %v3673 = vadd.f32 %v3671, %v3672
    %v3674 = vrot.slane %v3673, 2
    %v3675 = vadd.f32 %v3673, %v3674
    %v3676 = vrot.slane %v3675, 1
    %v3677 = vadd.f32 %v3675, %v3676
    %v3678 = vadd.f32 %v3620, %v3628
    %v3679 = vrot.slane %v3678, 4
    %v3680 = vadd.f32 %v3678, %v3679
    %v3681 = vrot.slane %v3680, 2
    %v3682 = vadd.f32 %v3680, %v3681
    %v3683 = vrot.slane %v3682, 1
    %v3684 = vadd.f32 %v3682, %v3683
    %v3685 = vmul.f32 %v3613, %v3613
    %v3686 = vmul.f32 %v3614, %v3614
    %v3687 = vmul.f32 %v3615, %v3615
    %v3688 = vmul.f32 %v3616, %v3616
    %v3689 = vmul.f32 %v3617, %v3617
    %v3690 = vmul.f32 %v3618, %v3618
    %v3691 = vmul.f32 %v3619, %v3619
    %v3692 = vmul.f32 %v3620, %v3620
    %v3693 = vmul.f32 %v3621, %v3621
    %v3694 = vmul.f32 %v3622, %v3622
    %v3695 = vmul.f32 %v3623, %v3623
    %v3696 = vmul.f32 %v3624, %v3624
    %v3697 = vmul.f32 %v3625, %v3625
    %v3698 = vmul.f32 %v3626, %v3626
    %v3699 = vmul.f32 %v3627, %v3627
    %v3700 = vmul.f32 %v3628, %v3628
    %v3701 = vadd.f32 %v3685, %v3693
    %v3702 = vrot.slane %v3701, 4
    %v3703 = vadd.f32 %v3701, %v3702
    %v3704 = vrot.slane %v3703, 2
    %v3705 = vadd.f32 %v3703, %v3704
    %v3706 = vrot.slane %v3705, 1
    %v3707 = vadd.f32 %v3705, %v3706
    %v3708 = vadd.f32 %v3686, %v3694
    %v3709 = vrot.slane %v3708, 4
    %v3710 = vadd.f32 %v3708, %v3709
    %v3711 = vrot.slane %v3710, 2
    %v3712 = vadd.f32 %v3710, %v3711
    %v3713 = vrot.slane %v3712, 1
    %v3714 = vadd.f32 %v3712, %v3713
    %v3715 = vadd.f32 %v3687, %v3695
    %v3716 = vrot.slane %v3715, 4
    %v3717 = vadd.f32 %v3715, %v3716
    %v3718 = vrot.slane %v3717, 2
    %v3719 = vadd.f32 %v3717, %v3718
    %v3720 = vrot.slane %v3719, 1
    %v3721 = vadd.f32 %v3719, %v3720
    %v3722 = vadd.f32 %v3688, %v3696
    %v3723 = vrot.slane %v3722, 4
    %v3724 = vadd.f32 %v3722, %v3723
    %v3725 = vrot.slane %v3724, 2
    %v3726 = vadd.f32 %v3724, %v3725
    %v3727 = vrot.slane %v3726, 1
    %v3728 = vadd.f32 %v3726, %v3727
    %v3729 = vadd.f32 %v3689, %v3697
    %v3730 = vrot.slane %v3729, 4
    %v3731 = vadd.f32 %v3729, %v3730
    %v3732 = vrot.slane %v3731, 2
    %v3733 = vadd.f32 %v3731, %v3732
    %v3734 = vrot.slane %v3733, 1
    %v3735 = vadd.f32 %v3733, %v3734
    %v3736 = vadd.f32 %v3690, %v3698
    %v3737 = vrot.slane %v3736, 4
    %v3738 = vadd.f32 %v3736, %v3737
    %v3739 = vrot.slane %v3738, 2
    %v3740 = vadd.f32 %v3738, %v3739
    %v3741 = vrot.slane %v3740, 1
    %v3742 = vadd.f32 %v3740, %v3741
    %v3743 = vadd.f32 %v3691, %v3699
    %v3744 = vrot.slane %v3743, 4
    %v3745 = vadd.f32 %v3743, %v3744
    %v3746 = vrot.slane %v3745, 2
    %v3747 = vadd.f32 %v3745, %v3746
    %v3748 = vrot.slane %v3747, 1
    %v3749 = vadd.f32 %v3747, %v3748
    %v3750 = vadd.f32 %v3692, %v3700
    %v3751 = vrot.slane %v3750, 4
    %v3752 = vadd.f32 %v3750, %v3751
    %v3753 = vrot.slane %v3752, 2
    %v3754 = vadd.f32 %v3752, %v3753
    %v3755 = vrot.slane %v3754, 1
    %v3756 = vadd.f32 %v3754, %v3755
    %vm3757 = vcmask 1040384
    %v3758 = vsel %vm3757, %v3635, %v3707
    %v3759 = vsel %vm3757, %v3642, %v3714
    %v3760 = vsel %vm3757, %v3649, %v3721
    %v3761 = vsel %vm3757, %v3656, %v3728
    %v3762 = vsel %vm3757, %v3663, %v3735
    %v3763 = vsel %vm3757, %v3670, %v3742
    %v3764 = vsel %vm3757, %v3677, %v3749
    %v3765 = vsel %vm3757, %v3684, %v3756
    %p3766 = scmp.eq.s32.totalorder 0, 0
    // Predicated region
    $region22: #{clasnet_forward.2} parent=1 // pred_check
      %p3767 = pneg %p3766
    $region23: #{clasnet_forward.2} parent=1 // pred_check_branch
      %3769 = sbr.rel (%p3767) target = $region25
    $region24: #{clasnet_forward.2} parent=1 // pred_region
      %3770 = vst [vmem:[%s5] sm:$0xff] 0.0
      %3771 = vst [vmem:[%s5 + $0x8] sm:$0xff] 0.0
    $region25: #{clasnet_forward.2} parent=1 // pred_fallthru
      _
    %v3772 = vld [vmem:[%s5] sm:$0xff]
    %v3773 = vld [vmem:[%s5 + $0x8] sm:$0xff]
    %v3782 = vrot.slane %v3759, 6
    %v3783 = vrot.slane %v3760, 4
    %v3784 = vrot.slane %v3761, 2
    %v3785 = vrot.slane %v3763, 6
    %v3786 = vrot.slane %v3764, 4
    %v3787 = vrot.slane %v3765, 2
    %vm3788 = vcmask 1041408
    %v3789 = vsel %vm3788, %v3758, %v3782
    %vm3790 = vcmask 1045508
    %v3791 = vsel %vm3790, %v3783, %v3784
    %vm3792 = vcmask 1043456
    %v3793 = vsel %vm3792, %v3789, %v3791
    %v3794 = vsel %vm3788, %v3762, %v3785
    %v3795 = vsel %vm3790, %v3786, %v3787
    %v3796 = vsel %vm3792, %v3794, %v3795
    %v3799 = vadd.f32 %v3772, %v3793
    %v3800 = vadd.f32 %v3773, %v3796
    %3801 = vst [vmem:[%s5] sm:$0xff] %v3799
    %3802 = vst [vmem:[%s5 + $0x8] sm:$0xff] %v3800
    // Predicated region
    $region26: #{clasnet_forward.2} parent=1 // pred_check
      _
    $region27: #{clasnet_forward.2} parent=1 // pred_check_branch
      %3804 = sbr.rel (0) target = $region29
    $region28: #{clasnet_forward.2} parent=1 // pred_region
      _
    $region29: #{clasnet_forward.2} parent=1 // pred_fallthru
      _
    // Predicated region
    $region30: #{clasnet_forward.2} parent=1 // pred_check
      _
    $region31: #{clasnet_forward.2} parent=1 // pred_check_branch
      %3806 = sbr.rel (0) target = $region33
    $region32: #{clasnet_forward.2} parent=1 // pred_region
      _
    $region33: #{clasnet_forward.2} parent=1 // pred_fallthru
      _
    // Predicated region
    $region34: #{clasnet_forward.2} parent=1 // pred_check
      _
    $region35: #{clasnet_forward.2} parent=1 // pred_check_branch
      %3808 = sbr.rel (0) target = $region37
    $region36: #{clasnet_forward.2} parent=1 // pred_region
      _
    $region37: #{clasnet_forward.2} parent=1 // pred_fallthru
      _
    // Predicated region
    $region38: #{clasnet_forward.2} parent=1 // pred_check
      _
    $region39: #{clasnet_forward.2} parent=1 // pred_check_branch
      %3810 = sbr.rel (0) target = $region41
    $region40: #{clasnet_forward.2} parent=1 // pred_region
      _
    $region41: #{clasnet_forward.2} parent=1 // pred_fallthru
      _
    %3811 = vsyncpa [#allocation5], 1
    %3812 = vsyncpa [#allocation7], 1

</llo_original>
